<compile_context>
chip_gen: v5e
topology: v5e:2x2
jax: 0.10.0
libtpu: 0.0.40
codegen_flags: <defaults>
</compile_context>

<pallas_src>
import functools

import jax
import jax.numpy as jnp
from jax import lax, random
from jax.experimental import pallas as pl
from jax.experimental.pallas import tpu as pltpu


def round_up(x, m):
    return ((x + m - 1) // m) * m


_PARALLEL1 = pltpu.CompilerParams(dimension_semantics=("parallel",))


# ----------------------------------------------------------------------------
# Pallas kernels
# ----------------------------------------------------------------------------
def _conv_taps_and_stats(x_bf16, w_ref, out_ref, st_ref, *, k, oh, ow):
    """Accumulate k*k shifted matmuls in f32 and emit per-channel BN statistics."""
    cin = x_bf16.shape[-1]
    cout = out_ref.shape[-1]
    acc = jnp.zeros((oh * ow, cout), jnp.float32)
    for di in range(k):
        for dj in range(k):
            patch = x_bf16[di:di + oh, dj:dj + ow, :].reshape(oh * ow, cin)
            acc = acc + jnp.dot(patch, w_ref[di * k + dj],
                                preferred_element_type=jnp.float32)
    out_ref[0] = acc.reshape(oh, ow, cout)
    ssum = jnp.sum(acc, axis=0, keepdims=True)          # (1, cout)
    ssq = jnp.sum(acc * acc, axis=0, keepdims=True)     # (1, cout)
    st_ref[0] = jnp.concatenate(
        [ssum, ssq, jnp.zeros((6, cout), jnp.float32)], axis=0)


def _conv_stats_kernel(x_ref, w_ref, out_ref, st_ref, *, k, oh, ow):
    _conv_taps_and_stats(x_ref[0].astype(jnp.bfloat16), w_ref, out_ref, st_ref,
                         k=k, oh=oh, ow=ow)


def _bnrelu_conv_stats_kernel(x_ref, s_ref, b_ref, w_ref, out_ref, st_ref,
                              *, k, oh, ow, pad):
    # Fused prologue: t = relu(x*scale + shift).  The in-kernel iota mask zeroes
    # the spatial halo so the convolution still sees zero padding of the
    # *normalised* activation.
    x = x_ref[0]                                   # (hp, wp, cin)
    hp, wp, cin = x.shape
    t = jnp.maximum(x * s_ref[...] + b_ref[...], 0.0)
    row = lax.broadcasted_iota(jnp.int32, (hp, wp, cin), 0)
    col = lax.broadcasted_iota(jnp.int32, (hp, wp, cin), 1)
    interior = ((row >= pad) & (row < pad + oh)
                & (col >= pad) & (col < pad + ow))
    t = jnp.where(interior, t, 0.0)
    _conv_taps_and_stats(t.astype(jnp.bfloat16), w_ref, out_ref, st_ref,
                         k=k, oh=oh, ow=ow)


def _bnrelu_matmul_kernel(x_ref, s_ref, b_ref, w_ref, bias_ref, y_ref, zc_ref):
    # Fused bn2-affine+ReLU (writes y_out) and the 1x1 convz matmul (+bias).
    t = jnp.maximum(x_ref[...] * s_ref[...] + b_ref[...], 0.0)
    y_ref[...] = t
    zc_ref[...] = jnp.dot(t.astype(jnp.bfloat16), w_ref[...],
                          preferred_element_type=jnp.float32) + bias_ref[...]


def _add_kernel(a_ref, b_ref, o_ref):
    o_ref[...] = a_ref[...] + b_ref[...]


# ----------------------------------------------------------------------------
# kernel wrappers (plain functions, traced inside the single outer jit)
# ----------------------------------------------------------------------------
def conv3x3_bn_stats(x, w, prologue=None):
    """3x3 'same' conv of a channel-padded NHWC tensor, BN-stats fused in epilogue.

    x: (N, H, W, Cin_p) f32, channels already lane-padded, NOT spatially padded.
    w: (9, Cin_p, Cout_p) bf16, zero-padded rows/cols.
    prologue: None, or (scale, shift) of length Cin_p applied as relu(x*s+b)
              inside the kernel (bn1+ReLU fused into conv2).
    Returns (out, stats): out (N,H,W,Cout_p) f32; stats (N,8,Cout_p) with
                          row0 = per-channel sum, row1 = per-channel sum of squares.
    """
    N, H, W, cin_p = x.shape
    k, pad = 3, 1
    cout_p = w.shape[-1]
    hp, wp = H + 2 * pad, W + 2 * pad
    xp = jnp.pad(x, ((0, 0), (pad, pad), (pad, pad), (0, 0)))

    out_shape = (jax.ShapeDtypeStruct((N, H, W, cout_p), jnp.float32),
                 jax.ShapeDtypeStruct((N, 8, cout_p), jnp.float32))
    out_specs = (pl.BlockSpec((1, H, W, cout_p), lambda n: (n, 0, 0, 0)),
                 pl.BlockSpec((1, 8, cout_p), lambda n: (n, 0, 0)))
    x_spec = pl.BlockSpec((1, hp, wp, cin_p), lambda n: (n, 0, 0, 0))
    w_spec = pl.BlockSpec((k * k, cin_p, cout_p), lambda n: (0, 0, 0))

    if prologue is None:
        kern = functools.partial(_conv_stats_kernel, k=k, oh=H, ow=W)
        return pl.pallas_call(
            kern, out_shape=out_shape, grid=(N,),
            in_specs=[x_spec, w_spec], out_specs=out_specs,
            compiler_params=_PARALLEL1)(xp, w)

    scale, shift = prologue
    s = scale.reshape(1, 1, cin_p)
    b = shift.reshape(1, 1, cin_p)
    sb_spec = pl.BlockSpec((1, 1, cin_p), lambda n: (0, 0, 0))
    kern = functools.partial(_bnrelu_conv_stats_kernel, k=k, oh=H, ow=W, pad=pad)
    return pl.pallas_call(
        kern, out_shape=out_shape, grid=(N,),
        in_specs=[x_spec, sb_spec, sb_spec, w_spec],
        out_specs=out_specs,
        compiler_params=_PARALLEL1)(xp, s, b, w)


def bn_scale_shift(stats, gamma_p, beta_p, count, eps=1e-5):
    """Finalise training-mode BatchNorm (batch stats, biased variance) in f32."""
    ssum = jnp.sum(stats[:, 0, :], axis=0)
    ssq = jnp.sum(stats[:, 1, :], axis=0)
    mean = ssum / count
    var = jnp.maximum(ssq / count - mean * mean, 0.0)
    scale = gamma_p * lax.rsqrt(var + eps)
    shift = beta_p - mean * scale
    return scale, shift


def bnrelu_conv1x1(x2d, scale, shift, w, bias):
    """y = relu(x*scale+shift)  and  zc = y @ w + bias in one row-tiled pass."""
    M, C = x2d.shape
    cz = w.shape[-1]
    tm = min(256, round_up(M, 8))
    mp = round_up(M, tm)
    x_p = jnp.pad(x2d, ((0, mp - M), (0, 0)))
    y, zc = pl.pallas_call(
        _bnrelu_matmul_kernel,
        out_shape=(jax.ShapeDtypeStruct((mp, C), jnp.float32),
                   jax.ShapeDtypeStruct((mp, cz), jnp.float32)),
        grid=(mp // tm,),
        in_specs=[pl.BlockSpec((tm, C), lambda i: (i, 0)),
                  pl.BlockSpec((1, C), lambda i: (0, 0)),
                  pl.BlockSpec((1, C), lambda i: (0, 0)),
                  pl.BlockSpec((C, cz), lambda i: (0, 0)),
                  pl.BlockSpec((1, cz), lambda i: (0, 0))],
        out_specs=(pl.BlockSpec((tm, C), lambda i: (i, 0)),
                   pl.BlockSpec((tm, cz), lambda i: (i, 0))),
        compiler_params=_PARALLEL1,
    )(x_p, scale.reshape(1, C), shift.reshape(1, C), w, bias.reshape(1, cz))
    return y[:M], zc[:M]


def residual_add(a, b):
    """z_out = a + b via a dedicated 2-input elementwise kernel (row-tiled)."""
    shp = a.shape
    lane = shp[-1] * shp[-2]                 # W*C -> lane-dense last dim
    a2 = a.reshape(-1, lane)
    b2 = b.reshape(-1, lane)
    M = a2.shape[0]
    tm = min(256, round_up(M, 8))
    mp = round_up(M, tm)
    a_p = jnp.pad(a2, ((0, mp - M), (0, 0)))
    b_p = jnp.pad(b2, ((0, mp - M), (0, 0)))
    out = pl.pallas_call(
        _add_kernel,
        out_shape=jax.ShapeDtypeStruct((mp, lane), jnp.float32),
        grid=(mp // tm,),
        in_specs=[pl.BlockSpec((tm, lane), lambda i: (i, 0)),
                  pl.BlockSpec((tm, lane), lambda i: (i, 0))],
        out_specs=pl.BlockSpec((tm, lane), lambda i: (i, 0)),
        compiler_params=_PARALLEL1,
    )(a_p, b_p)
    return out[:M].reshape(shp)


# ----------------------------------------------------------------------------
# JAX glue (fused under the single outer jit)
# ----------------------------------------------------------------------------
def maxpool3x3(x, stride):
    # TODO(synk): 3x3 stride-f max-pool stays on lax.reduce_window (plain JAX).
    init = jnp.array(-jnp.inf, dtype=x.dtype)
    return lax.reduce_window(
        x, init, lax.max,
        window_dimensions=(1, 3, 3, 1),
        window_strides=(1, stride, stride, 1),
        padding=((0, 0), (1, 1), (1, 1), (0, 0)))


def upsample_bilinear(x, factor):
    # TODO(synk): align_corners=True bilinear upsample (nn.UpsamplingBilinear2d)
    # stays as fused JAX gathers/lerps rather than a Pallas kernel.
    N, H, W, C = x.shape
    Ho, Wo = H * factor, W * factor

    def coords(n_in, n_out):
        if n_in == 1:
            z = jnp.zeros((n_out,), jnp.int32)
            return z, z, jnp.zeros((n_out,), jnp.float32)
        src = jnp.arange(n_out, dtype=jnp.float32) * (n_in - 1) / (n_out - 1)
        i0 = jnp.clip(jnp.floor(src), 0, n_in - 1).astype(jnp.int32)
        i1 = jnp.minimum(i0 + 1, n_in - 1)
        return i0, i1, src - i0.astype(jnp.float32)

    h0, h1, fh = coords(H, Ho)
    w0, w1, fw = coords(W, Wo)
    xh = (x[:, h0, :, :] * (1.0 - fh)[None, :, None, None]
          + x[:, h1, :, :] * fh[None, :, None, None])
    return (xh[:, :, w0, :] * (1.0 - fw)[None, None, :, None]
            + xh[:, :, w1, :] * fw[None, None, :, None])


# ----------------------------------------------------------------------------
# FRRU forward: one jit around everything (kernels + glue)
# ----------------------------------------------------------------------------
@functools.partial(jax.jit, static_argnames=("factor",))
def frru_forward(params, y, z, *, factor):
    """y: (N, H/f, W/f, y_in_c), z: (N, H, W, z_c), NHWC float32."""
    N, Hy, Wy, cy = y.shape
    _, Hz, Wz, cz = z.shape
    y_out_c = params["gamma1"].shape[0]
    cin = cy + cz
    cin_p = round_up(cin, 128)
    cout_p = params["w1"].shape[-1]
    cz_p = params["wz"].shape[-1]

    g1 = jnp.pad(params["gamma1"], (0, cout_p - y_out_c))
    b1 = jnp.pad(params["beta1"], (0, cout_p - y_out_c))
    g2 = jnp.pad(params["gamma2"], (0, cout_p - y_out_c))
    b2 = jnp.pad(params["beta2"], (0, cout_p - y_out_c))

    # z_ = MaxPool2d(kernel_size=3, stride=factor, padding=1)(z)
    z_pool = maxpool3x3(z, factor)

    # cat = concat((y, z_), channel); pad channels to 128 lanes once.
    cat = jnp.concatenate([y, z_pool], axis=-1)
    cat = jnp.pad(cat, ((0, 0), (0, 0), (0, 0), (0, cin_p - cin)))

    count = N * Hy * Wy
    # conv1 + fused BN batch-statistics epilogue
    r1, st1 = conv3x3_bn_stats(cat, params["w1"])
    s1, t1 = bn_scale_shift(st1, g1, b1, count)
    # conv2 with fused bn1-affine+ReLU prologue and BN batch-statistics epilogue
    r2, st2 = conv3x3_bn_stats(r1, params["w2"], prologue=(s1, t1))
    s2, t2 = bn_scale_shift(st2, g2, b2, count)
    # bn2-affine+ReLU -> y_out fused with the 1x1 convz (+bias) -> zc
    y2d, zc2d = bnrelu_conv1x1(r2.reshape(N * Hy * Wy, cout_p), s2, t2,
                               params["wz"], params["bz"])
    y_out = y2d.reshape(N, Hy, Wy, cout_p)[..., :y_out_c]
    zc = zc2d.reshape(N, Hy, Wy, cz_p)[..., :cz]

    # z_out = z + UpsamplingBilinear2d(scale_factor=factor)(zc)
    z_out = residual_add(z, upsample_bilinear(zc, factor))
    return y_out, z_out


# ----------------------------------------------------------------------------
# deterministic synthetic parameters (shapes follow FRRU.__init__)
# ----------------------------------------------------------------------------
def init_frru_params(key, y_in_c, y_out_c, z_c=32):
    cin = y_in_c + z_c
    cin_p = round_up(cin, 128)
    cout_p = round_up(y_out_c, 128)
    cz_p = round_up(z_c, 128)
    k1, k2, k3, k4 = random.split(key, 4)

    def pack3x3(k, ci, co, cip, cop):
        w = random.normal(k, (9, ci, co), jnp.float32) * 0.05
        wp = jnp.zeros((9, cip, cop), jnp.float32).at[:, :ci, :co].set(w)
        return wp.astype(jnp.bfloat16)          # bf16 MXU operands, f32 accum

    wz = random.normal(k3, (y_out_c, z_c), jnp.float32) * 0.05
    wz_p = jnp.zeros((cout_p, cz_p), jnp.float32).at[:y_out_c, :z_c].set(wz)
    bz = random.normal(k4, (z_c,), jnp.float32) * 0.05
    bz_p = jnp.zeros((cz_p,), jnp.float32).at[:z_c].set(bz)

    return {
        "w1": pack3x3(k1, cin, y_out_c, cin_p, cout_p),       # conv1, no bias
        "w2": pack3x3(k2, y_out_c, y_out_c, cout_p, cout_p),  # conv2, no bias
        "wz": wz_p.astype(jnp.bfloat16),                      # convz 1x1
        "bz": bz_p,                                           # convz bias
        "gamma1": jnp.ones((y_out_c,), jnp.float32),
        "beta1": jnp.zeros((y_out_c,), jnp.float32),
        "gamma2": jnp.ones((y_out_c,), jnp.float32),
        "beta2": jnp.zeros((y_out_c,), jnp.float32),
    }


# ----------------------------------------------------------------------------
# main
# ----------------------------------------------------------------------------
if __name__ == "__main__":
    base = random.PRNGKey(0)
    kp, ky, kz = random.split(base, 3)

    y_in_c, y_out_c, z_c, factor = 48, 96, 32, 2
    N, Hz, Wz = 2, 16, 16
    Hy, Wy = Hz // factor, Wz // factor

    params = init_frru_params(kp, y_in_c, y_out_c, z_c)

    # PyTorch-style NCHW inputs: y at reduced resolution, z at full resolution.
    y_nchw = random.normal(ky, (N, y_in_c, Hy, Wy), jnp.float32)
    z_nchw = random.normal(kz, (N, z_c, Hz, Wz), jnp.float32)
    y_nhwc = jnp.transpose(y_nchw, (0, 2, 3, 1))
    z_nhwc = jnp.transpose(z_nchw, (0, 2, 3, 1))

    y_out, z_out = jax.block_until_ready(
        frru_forward(params, y_nhwc, z_nhwc, factor=factor))

    y_out_nchw = jnp.transpose(y_out, (0, 3, 1, 2))
    z_out_nchw = jnp.transpose(z_out, (0, 3, 1, 2))
    assert y_out_nchw.shape == (N, y_out_c, Hy, Wy), y_out_nchw.shape
    assert z_out_nchw.shape == (N, z_c, Hz, Wz), z_out_nchw.shape
    assert bool(jnp.all(jnp.isfinite(y_out_nchw)))
    assert bool(jnp.all(jnp.isfinite(z_out_nchw)))
    print("KERNEL_OK")
</pallas_src>

<mosaic_0001>
module attributes {stable_mosaic.version = 11 : i64} {
  func.func @_conv_stats_kernel(%arg0: i32, %arg1: memref<1x10x10x128xf32, #tpu.memory_space<vmem>>, %arg2: memref<9x128x128xbf16, #tpu.memory_space<vmem>>, %arg3: memref<1x8x8x128xf32, #tpu.memory_space<vmem>>, %arg4: memref<1x8x128xf32, #tpu.memory_space<vmem>>) attributes {dimension_semantics = [#tpu.dimension_semantics<parallel>], iteration_bounds = array<i64: 2>, scalar_prefetch = 0 : i64, scratch_operands = 0 : i64, tpu.core_type = #tpu.core_type<tc>, window_params = [{transform_indices = @transform_0, window_bounds = array<i64: 1, 10, 10, 128>}, {pipeline_mode = #tpu.pipeline_mode<synchronous>, transform_indices = @transform_1, window_bounds = array<i64: 9, 128, 128>}, {transform_indices = @transform_2, window_bounds = array<i64: 1, 8, 8, 128>}, {transform_indices = @transform_3, window_bounds = array<i64: 1, 8, 128>}]} {
    %c0 = arith.constant 0 : index
    %c0_0 = arith.constant 0 : index
    %c0_1 = arith.constant 0 : index
    %c0_2 = arith.constant 0 : index
    %0 = vector.load %arg1[%c0, %c0_0, %c0_1, %c0_2] : memref<1x10x10x128xf32, #tpu.memory_space<vmem>>, vector<1x10x10x128xf32>
    %1 = vector.shape_cast %0 : vector<1x10x10x128xf32> to vector<10x10x128xf32>
    %2 = arith.truncf %1 : vector<10x10x128xf32> to vector<10x10x128xbf16>
    %cst = arith.constant 0.000000e+00 : f32
    %3 = vector.broadcast %cst : f32 to vector<64x128xf32>
    %4 = vector.extract_strided_slice %2 {offsets = [0, 0, 0], sizes = [8, 8, 128], strides = [1, 1, 1]} : vector<10x10x128xbf16> to vector<8x8x128xbf16>
    %5 = vector.shape_cast %4 : vector<8x8x128xbf16> to vector<64x128xbf16>
    %c0_3 = arith.constant 0 : index
    %c0_4 = arith.constant 0 : index
    %c0_5 = arith.constant 0 : index
    %6 = vector.load %arg2[%c0_3, %c0_4, %c0_5] : memref<9x128x128xbf16, #tpu.memory_space<vmem>>, vector<1x128x128xbf16>
    %7 = vector.shape_cast %6 : vector<1x128x128xbf16> to vector<128x128xbf16>
    %cst_6 = arith.constant dense<0.000000e+00> : vector<64x128xf32>
    %8 = tpu.matmul %5, %7, %cst_6 {dimension_numbers = #tpu.dot_dimension_numbers<[1], [0], [0], [1], [0, 0, 1, 1], [], []>} : vector<64x128xbf16>, vector<128x128xbf16>, vector<64x128xf32> -> vector<64x128xf32>
    %9 = arith.addf %3, %8 : vector<64x128xf32>
    %10 = vector.extract_strided_slice %2 {offsets = [0, 1, 0], sizes = [8, 8, 128], strides = [1, 1, 1]} : vector<10x10x128xbf16> to vector<8x8x128xbf16>
    %11 = vector.shape_cast %10 : vector<8x8x128xbf16> to vector<64x128xbf16>
    %c1 = arith.constant 1 : index
    %c0_7 = arith.constant 0 : index
    %c0_8 = arith.constant 0 : index
    %12 = vector.load %arg2[%c1, %c0_7, %c0_8] : memref<9x128x128xbf16, #tpu.memory_space<vmem>>, vector<1x128x128xbf16>
    %13 = vector.shape_cast %12 : vector<1x128x128xbf16> to vector<128x128xbf16>
    %cst_9 = arith.constant dense<0.000000e+00> : vector<64x128xf32>
    %14 = tpu.matmul %11, %13, %cst_9 {dimension_numbers = #tpu.dot_dimension_numbers<[1], [0], [0], [1], [0, 0, 1, 1], [], []>} : vector<64x128xbf16>, vector<128x128xbf16>, vector<64x128xf32> -> vector<64x128xf32>
    %15 = arith.addf %9, %14 : vector<64x128xf32>
    %16 = vector.extract_strided_slice %2 {offsets = [0, 2, 0], sizes = [8, 8, 128], strides = [1, 1, 1]} : vector<10x10x128xbf16> to vector<8x8x128xbf16>
    %17 = vector.shape_cast %16 : vector<8x8x128xbf16> to vector<64x128xbf16>
    %c2 = arith.constant 2 : index
    %c0_10 = arith.constant 0 : index
    %c0_11 = arith.constant 0 : index
    %18 = vector.load %arg2[%c2, %c0_10, %c0_11] : memref<9x128x128xbf16, #tpu.memory_space<vmem>>, vector<1x128x128xbf16>
    %19 = vector.shape_cast %18 : vector<1x128x128xbf16> to vector<128x128xbf16>
    %cst_12 = arith.constant dense<0.000000e+00> : vector<64x128xf32>
    %20 = tpu.matmul %17, %19, %cst_12 {dimension_numbers = #tpu.dot_dimension_numbers<[1], [0], [0], [1], [0, 0, 1, 1], [], []>} : vector<64x128xbf16>, vector<128x128xbf16>, vector<64x128xf32> -> vector<64x128xf32>
    %21 = arith.addf %15, %20 : vector<64x128xf32>
    %22 = vector.extract_strided_slice %2 {offsets = [1, 0, 0], sizes = [8, 8, 128], strides = [1, 1, 1]} : vector<10x10x128xbf16> to vector<8x8x128xbf16>
    %23 = vector.shape_cast %22 : vector<8x8x128xbf16> to vector<64x128xbf16>
    %c3 = arith.constant 3 : index
    %c0_13 = arith.constant 0 : index
    %c0_14 = arith.constant 0 : index
    %24 = vector.load %arg2[%c3, %c0_13, %c0_14] : memref<9x128x128xbf16, #tpu.memory_space<vmem>>, vector<1x128x128xbf16>
    %25 = vector.shape_cast %24 : vector<1x128x128xbf16> to vector<128x128xbf16>
    %cst_15 = arith.constant dense<0.000000e+00> : vector<64x128xf32>
    %26 = tpu.matmul %23, %25, %cst_15 {dimension_numbers = #tpu.dot_dimension_numbers<[1], [0], [0], [1], [0, 0, 1, 1], [], []>} : vector<64x128xbf16>, vector<128x128xbf16>, vector<64x128xf32> -> vector<64x128xf32>
    %27 = arith.addf %21, %26 : vector<64x128xf32>
    %28 = vector.extract_strided_slice %2 {offsets = [1, 1, 0], sizes = [8, 8, 128], strides = [1, 1, 1]} : vector<10x10x128xbf16> to vector<8x8x128xbf16>
    %29 = vector.shape_cast %28 : vector<8x8x128xbf16> to vector<64x128xbf16>
    %c4 = arith.constant 4 : index
    %c0_16 = arith.constant 0 : index
    %c0_17 = arith.constant 0 : index
    %30 = vector.load %arg2[%c4, %c0_16, %c0_17] : memref<9x128x128xbf16, #tpu.memory_space<vmem>>, vector<1x128x128xbf16>
    %31 = vector.shape_cast %30 : vector<1x128x128xbf16> to vector<128x128xbf16>
    %cst_18 = arith.constant dense<0.000000e+00> : vector<64x128xf32>
    %32 = tpu.matmul %29, %31, %cst_18 {dimension_numbers = #tpu.dot_dimension_numbers<[1], [0], [0], [1], [0, 0, 1, 1], [], []>} : vector<64x128xbf16>, vector<128x128xbf16>, vector<64x128xf32> -> vector<64x128xf32>
    %33 = arith.addf %27, %32 : vector<64x128xf32>
    %34 = vector.extract_strided_slice %2 {offsets = [1, 2, 0], sizes = [8, 8, 128], strides = [1, 1, 1]} : vector<10x10x128xbf16> to vector<8x8x128xbf16>
    %35 = vector.shape_cast %34 : vector<8x8x128xbf16> to vector<64x128xbf16>
    %c5 = arith.constant 5 : index
    %c0_19 = arith.constant 0 : index
    %c0_20 = arith.constant 0 : index
    %36 = vector.load %arg2[%c5, %c0_19, %c0_20] : memref<9x128x128xbf16, #tpu.memory_space<vmem>>, vector<1x128x128xbf16>
    %37 = vector.shape_cast %36 : vector<1x128x128xbf16> to vector<128x128xbf16>
    %cst_21 = arith.constant dense<0.000000e+00> : vector<64x128xf32>
    %38 = tpu.matmul %35, %37, %cst_21 {dimension_numbers = #tpu.dot_dimension_numbers<[1], [0], [0], [1], [0, 0, 1, 1], [], []>} : vector<64x128xbf16>, vector<128x128xbf16>, vector<64x128xf32> -> vector<64x128xf32>
    %39 = arith.addf %33, %38 : vector<64x128xf32>
    %40 = vector.extract_strided_slice %2 {offsets = [2, 0, 0], sizes = [8, 8, 128], strides = [1, 1, 1]} : vector<10x10x128xbf16> to vector<8x8x128xbf16>
    %41 = vector.shape_cast %40 : vector<8x8x128xbf16> to vector<64x128xbf16>
    %c6 = arith.constant 6 : index
    %c0_22 = arith.constant 0 : index
    %c0_23 = arith.constant 0 : index
    %42 = vector.load %arg2[%c6, %c0_22, %c0_23] : memref<9x128x128xbf16, #tpu.memory_space<vmem>>, vector<1x128x128xbf16>
    %43 = vector.shape_cast %42 : vector<1x128x128xbf16> to vector<128x128xbf16>
    %cst_24 = arith.constant dense<0.000000e+00> : vector<64x128xf32>
    %44 = tpu.matmul %41, %43, %cst_24 {dimension_numbers = #tpu.dot_dimension_numbers<[1], [0], [0], [1], [0, 0, 1, 1], [], []>} : vector<64x128xbf16>, vector<128x128xbf16>, vector<64x128xf32> -> vector<64x128xf32>
    %45 = arith.addf %39, %44 : vector<64x128xf32>
    %46 = vector.extract_strided_slice %2 {offsets = [2, 1, 0], sizes = [8, 8, 128], strides = [1, 1, 1]} : vector<10x10x128xbf16> to vector<8x8x128xbf16>
    %47 = vector.shape_cast %46 : vector<8x8x128xbf16> to vector<64x128xbf16>
    %c7 = arith.constant 7 : index
    %c0_25 = arith.constant 0 : index
    %c0_26 = arith.constant 0 : index
    %48 = vector.load %arg2[%c7, %c0_25, %c0_26] : memref<9x128x128xbf16, #tpu.memory_space<vmem>>, vector<1x128x128xbf16>
    %49 = vector.shape_cast %48 : vector<1x128x128xbf16> to vector<128x128xbf16>
    %cst_27 = arith.constant dense<0.000000e+00> : vector<64x128xf32>
    %50 = tpu.matmul %47, %49, %cst_27 {dimension_numbers = #tpu.dot_dimension_numbers<[1], [0], [0], [1], [0, 0, 1, 1], [], []>} : vector<64x128xbf16>, vector<128x128xbf16>, vector<64x128xf32> -> vector<64x128xf32>
    %51 = arith.addf %45, %50 : vector<64x128xf32>
    %52 = vector.extract_strided_slice %2 {offsets = [2, 2, 0], sizes = [8, 8, 128], strides = [1, 1, 1]} : vector<10x10x128xbf16> to vector<8x8x128xbf16>
    %53 = vector.shape_cast %52 : vector<8x8x128xbf16> to vector<64x128xbf16>
    %c8 = arith.constant 8 : index
    %c0_28 = arith.constant 0 : index
    %c0_29 = arith.constant 0 : index
    %54 = vector.load %arg2[%c8, %c0_28, %c0_29] : memref<9x128x128xbf16, #tpu.memory_space<vmem>>, vector<1x128x128xbf16>
    %55 = vector.shape_cast %54 : vector<1x128x128xbf16> to vector<128x128xbf16>
    %cst_30 = arith.constant dense<0.000000e+00> : vector<64x128xf32>
    %56 = tpu.matmul %53, %55, %cst_30 {dimension_numbers = #tpu.dot_dimension_numbers<[1], [0], [0], [1], [0, 0, 1, 1], [], []>} : vector<64x128xbf16>, vector<128x128xbf16>, vector<64x128xf32> -> vector<64x128xf32>
    %57 = arith.addf %51, %56 : vector<64x128xf32>
    %58 = vector.shape_cast %57 : vector<64x128xf32> to vector<8x8x128xf32>
    %c0_31 = arith.constant 0 : index
    %c0_32 = arith.constant 0 : index
    %c0_33 = arith.constant 0 : index
    %c0_34 = arith.constant 0 : index
    %59 = vector.load %arg3[%c0_31, %c0_32, %c0_33, %c0_34] : memref<1x8x8x128xf32, #tpu.memory_space<vmem>>, vector<1x8x8x128xf32>
    %60 = vector.shape_cast %59 : vector<1x8x8x128xf32> to vector<8x8x128xf32>
    %61 = vector.shape_cast %58 : vector<8x8x128xf32> to vector<1x8x8x128xf32>
    tpu.vector_store %arg3[%c0_31, %c0_32, %c0_33, %c0_34], %61 {strides = array<i32>} : memref<1x8x8x128xf32, #tpu.memory_space<vmem>>, vector<1x8x8x128xf32>,
    %cst_35 = arith.constant dense<0.000000e+00> : vector<128xf32>
    %62 = vector.multi_reduction <add>, %57, %cst_35 [0] : vector<64x128xf32> to vector<128xf32>
    %63 = vector.shape_cast %62 : vector<128xf32> to vector<1x128xf32>
    %64 = arith.mulf %57, %57 : vector<64x128xf32>
    %cst_36 = arith.constant dense<0.000000e+00> : vector<128xf32>
    %65 = vector.multi_reduction <add>, %64, %cst_36 [0] : vector<64x128xf32> to vector<128xf32>
    %66 = vector.shape_cast %65 : vector<128xf32> to vector<1x128xf32>
    %cst_37 = arith.constant 0.000000e+00 : f32
    %67 = vector.broadcast %cst_37 : f32 to vector<6x128xf32>
    %68 = tpu.concatenate %63, %66, %67 in 0 : vector<1x128xf32>, vector<1x128xf32>, vector<6x128xf32> -> vector<8x128xf32>
    %c0_38 = arith.constant 0 : index
    %c0_39 = arith.constant 0 : index
    %c0_40 = arith.constant 0 : index
    %69 = vector.load %arg4[%c0_38, %c0_39, %c0_40] : memref<1x8x128xf32, #tpu.memory_space<vmem>>, vector<1x8x128xf32>
    %70 = vector.shape_cast %69 : vector<1x8x128xf32> to vector<8x128xf32>
    %71 = vector.shape_cast %68 : vector<8x128xf32> to vector<1x8x128xf32>
    tpu.vector_store %arg4[%c0_38, %c0_39, %c0_40], %71 {strides = array<i32>} : memref<1x8x128xf32, #tpu.memory_space<vmem>>, vector<1x8x128xf32>,
    return
  }
  func.func @transform_0(%arg0: i32) -> (i32, i32, i32, i32) {
    %c0_i32 = arith.constant 0 : i32
    %c0_i32_0 = arith.constant 0 : i32
    %c0_i32_1 = arith.constant 0 : i32
    %c0_i32_2 = arith.constant 0 : i32
    return %arg0, %c0_i32, %c0_i32_0, %c0_i32_1 : i32, i32, i32, i32
  }
  func.func @transform_1(%arg0: i32) -> (i32, i32, i32) {
    %c0_i32 = arith.constant 0 : i32
    %c0_i32_0 = arith.constant 0 : i32
    %c0_i32_1 = arith.constant 0 : i32
    %c0_i32_2 = arith.constant 0 : i32
    return %c0_i32, %c0_i32_0, %c0_i32_1 : i32, i32, i32
  }
  func.func @transform_2(%arg0: i32) -> (i32, i32, i32, i32) {
    %c0_i32 = arith.constant 0 : i32
    %c0_i32_0 = arith.constant 0 : i32
    %c0_i32_1 = arith.constant 0 : i32
    %c0_i32_2 = arith.constant 0 : i32
    return %arg0, %c0_i32, %c0_i32_0, %c0_i32_1 : i32, i32, i32, i32
  }
  func.func @transform_3(%arg0: i32) -> (i32, i32, i32) {
    %c0_i32 = arith.constant 0 : i32
    %c0_i32_0 = arith.constant 0 : i32
    %c0_i32_1 = arith.constant 0 : i32
    return %arg0, %c0_i32, %c0_i32_0 : i32, i32, i32
  }
}

module attributes {stable_mosaic.version = 11 : i64} {
  func.func @_bnrelu_matmul_kernel(%arg0: i32, %arg1: memref<128x128xf32, #tpu.memory_space<vmem>>, %arg2: memref<1x128xf32, #tpu.memory_space<vmem>>, %arg3: memref<1x128xf32, #tpu.memory_space<vmem>>, %arg4: memref<128x128xbf16, #tpu.memory_space<vmem>>, %arg5: memref<1x128xf32, #tpu.memory_space<vmem>>, %arg6: memref<128x128xf32, #tpu.memory_space<vmem>>, %arg7: memref<128x128xf32, #tpu.memory_space<vmem>>) attributes {dimension_semantics = [#tpu.dimension_semantics<parallel>], iteration_bounds = array<i64: 1>, scalar_prefetch = 0 : i64, scratch_operands = 0 : i64, tpu.core_type = #tpu.core_type<tc>, window_params = [{transform_indices = @transform_0, window_bounds = array<i64: 128, 128>}, {pipeline_mode = #tpu.pipeline_mode<synchronous>, transform_indices = @transform_1, window_bounds = array<i64: 1, 128>}, {pipeline_mode = #tpu.pipeline_mode<synchronous>, transform_indices = @transform_2, window_bounds = array<i64: 1, 128>}, {pipeline_mode = #tpu.pipeline_mode<synchronous>, transform_indices = @transform_3, window_bounds = array<i64: 128, 128>}, {pipeline_mode = #tpu.pipeline_mode<synchronous>, transform_indices = @transform_4, window_bounds = array<i64: 1, 128>}, {transform_indices = @transform_5, window_bounds = array<i64: 128, 128>}, {transform_indices = @transform_6, window_bounds = array<i64: 128, 128>}]} {
    %c0 = arith.constant 0 : index
    %c0_0 = arith.constant 0 : index
    %0 = vector.load %arg1[%c0, %c0_0] : memref<128x128xf32, #tpu.memory_space<vmem>>, vector<128x128xf32>
    %c0_1 = arith.constant 0 : index
    %c0_2 = arith.constant 0 : index
    %1 = vector.load %arg2[%c0_1, %c0_2] : memref<1x128xf32, #tpu.memory_space<vmem>>, vector<1x128xf32>
    %2 = vector.broadcast %1 : vector<1x128xf32> to vector<128x128xf32>
    %3 = arith.mulf %0, %2 : vector<128x128xf32>
    %c0_3 = arith.constant 0 : index
    %c0_4 = arith.constant 0 : index
    %4 = vector.load %arg3[%c0_3, %c0_4] : memref<1x128xf32, #tpu.memory_space<vmem>>, vector<1x128xf32>
    %5 = vector.broadcast %4 : vector<1x128xf32> to vector<128x128xf32>
    %6 = arith.addf %3, %5 : vector<128x128xf32>
    %cst = arith.constant 0.000000e+00 : f32
    %7 = vector.broadcast %cst : f32 to vector<128x128xf32>
    %8 = arith.maximumf %6, %7 : vector<128x128xf32>
    %c0_5 = arith.constant 0 : index
    %c0_6 = arith.constant 0 : index
    %9 = vector.load %arg6[%c0_5, %c0_6] : memref<128x128xf32, #tpu.memory_space<vmem>>, vector<128x128xf32>
    tpu.vector_store %arg6[%c0_5, %c0_6], %8 {strides = array<i32>} : memref<128x128xf32, #tpu.memory_space<vmem>>, vector<128x128xf32>,
    %10 = arith.truncf %8 : vector<128x128xf32> to vector<128x128xbf16>
    %c0_7 = arith.constant 0 : index
    %c0_8 = arith.constant 0 : index
    %11 = vector.load %arg4[%c0_7, %c0_8] : memref<128x128xbf16, #tpu.memory_space<vmem>>, vector<128x128xbf16>
    %cst_9 = arith.constant dense<0.000000e+00> : vector<128x128xf32>
    %12 = tpu.matmul %10, %11, %cst_9 {dimension_numbers = #tpu.dot_dimension_numbers<[1], [0], [0], [1], [0, 0, 1, 1], [], []>} : vector<128x128xbf16>, vector<128x128xbf16>, vector<128x128xf32> -> vector<128x128xf32>
    %c0_10 = arith.constant 0 : index
    %c0_11 = arith.constant 0 : index
    %13 = vector.load %arg5[%c0_10, %c0_11] : memref<1x128xf32, #tpu.memory_space<vmem>>, vector<1x128xf32>
    %14 = vector.broadcast %13 : vector<1x128xf32> to vector<128x128xf32>
    %15 = arith.addf %12, %14 : vector<128x128xf32>
    %c0_12 = arith.constant 0 : index
    %c0_13 = arith.constant 0 : index
    %16 = vector.load %arg7[%c0_12, %c0_13] : memref<128x128xf32, #tpu.memory_space<vmem>>, vector<128x128xf32>
    tpu.vector_store %arg7[%c0_12, %c0_13], %15 {strides = array<i32>} : memref<128x128xf32, #tpu.memory_space<vmem>>, vector<128x128xf32>,
    return
  }
  func.func @transform_0(%arg0: i32) -> (i32, i32) {
    %c0_i32 = arith.constant 0 : i32
    %c0_i32_0 = arith.constant 0 : i32
    return %arg0, %c0_i32 : i32, i32
  }
  func.func @transform_1(%arg0: i32) -> (i32, i32) {
    %c0_i32 = arith.constant 0 : i32
    %c0_i32_0 = arith.constant 0 : i32
    %c0_i32_1 = arith.constant 0 : i32
    return %c0_i32, %c0_i32_0 : i32, i32
  }
  func.func @transform_2(%arg0: i32) -> (i32, i32) {
    %c0_i32 = arith.constant 0 : i32
    %c0_i32_0 = arith.constant 0 : i32
    %c0_i32_1 = arith.constant 0 : i32
    return %c0_i32, %c0_i32_0 : i32, i32
  }
  func.func @transform_3(%arg0: i32) -> (i32, i32) {
    %c0_i32 = arith.constant 0 : i32
    %c0_i32_0 = arith.constant 0 : i32
    %c0_i32_1 = arith.constant 0 : i32
    return %c0_i32, %c0_i32_0 : i32, i32
  }
  func.func @transform_4(%arg0: i32) -> (i32, i32) {
    %c0_i32 = arith.constant 0 : i32
    %c0_i32_0 = arith.constant 0 : i32
    %c0_i32_1 = arith.constant 0 : i32
    return %c0_i32, %c0_i32_0 : i32, i32
  }
  func.func @transform_5(%arg0: i32) -> (i32, i32) {
    %c0_i32 = arith.constant 0 : i32
    %c0_i32_0 = arith.constant 0 : i32
    return %arg0, %c0_i32 : i32, i32
  }
  func.func @transform_6(%arg0: i32) -> (i32, i32) {
    %c0_i32 = arith.constant 0 : i32
    %c0_i32_0 = arith.constant 0 : i32
    return %arg0, %c0_i32 : i32, i32
  }
}

module attributes {stable_mosaic.version = 11 : i64} {
  func.func @_bnrelu_conv_stats_kernel(%arg0: i32, %arg1: memref<1x10x10x128xf32, #tpu.memory_space<vmem>>, %arg2: memref<1x1x128xf32, #tpu.memory_space<vmem>>, %arg3: memref<1x1x128xf32, #tpu.memory_space<vmem>>, %arg4: memref<9x128x128xbf16, #tpu.memory_space<vmem>>, %arg5: memref<1x8x8x128xf32, #tpu.memory_space<vmem>>, %arg6: memref<1x8x128xf32, #tpu.memory_space<vmem>>) attributes {dimension_semantics = [#tpu.dimension_semantics<parallel>], iteration_bounds = array<i64: 2>, scalar_prefetch = 0 : i64, scratch_operands = 0 : i64, tpu.core_type = #tpu.core_type<tc>, window_params = [{transform_indices = @transform_0, window_bounds = array<i64: 1, 10, 10, 128>}, {pipeline_mode = #tpu.pipeline_mode<synchronous>, transform_indices = @transform_1, window_bounds = array<i64: 1, 1, 128>}, {pipeline_mode = #tpu.pipeline_mode<synchronous>, transform_indices = @transform_2, window_bounds = array<i64: 1, 1, 128>}, {pipeline_mode = #tpu.pipeline_mode<synchronous>, transform_indices = @transform_3, window_bounds = array<i64: 9, 128, 128>}, {transform_indices = @transform_4, window_bounds = array<i64: 1, 8, 8, 128>}, {transform_indices = @transform_5, window_bounds = array<i64: 1, 8, 128>}]} {
    %c0 = arith.constant 0 : index
    %c0_0 = arith.constant 0 : index
    %c0_1 = arith.constant 0 : index
    %c0_2 = arith.constant 0 : index
    %0 = vector.load %arg1[%c0, %c0_0, %c0_1, %c0_2] : memref<1x10x10x128xf32, #tpu.memory_space<vmem>>, vector<1x10x10x128xf32>
    %1 = vector.shape_cast %0 : vector<1x10x10x128xf32> to vector<10x10x128xf32>
    %c0_3 = arith.constant 0 : index
    %c0_4 = arith.constant 0 : index
    %c0_5 = arith.constant 0 : index
    %2 = vector.load %arg2[%c0_3, %c0_4, %c0_5] : memref<1x1x128xf32, #tpu.memory_space<vmem>>, vector<1x1x128xf32>
    %3 = vector.broadcast %2 : vector<1x1x128xf32> to vector<10x10x128xf32>
    %4 = arith.mulf %1, %3 : vector<10x10x128xf32>
    %c0_6 = arith.constant 0 : index
    %c0_7 = arith.constant 0 : index
    %c0_8 = arith.constant 0 : index
    %5 = vector.load %arg3[%c0_6, %c0_7, %c0_8] : memref<1x1x128xf32, #tpu.memory_space<vmem>>, vector<1x1x128xf32>
    %6 = vector.broadcast %5 : vector<1x1x128xf32> to vector<10x10x128xf32>
    %7 = arith.addf %4, %6 : vector<10x10x128xf32>
    %cst = arith.constant 0.000000e+00 : f32
    %8 = vector.broadcast %cst : f32 to vector<10x10x128xf32>
    %9 = arith.maximumf %7, %8 : vector<10x10x128xf32>
    %10 = tpu.iota {dimensions = array<i32: 0>} : vector<10x10x128xi32>
    %11 = tpu.iota {dimensions = array<i32: 1>} : vector<10x10x128xi32>
    %c1_i32 = arith.constant 1 : i32
    %12 = vector.broadcast %c1_i32 : i32 to vector<10x10x128xi32>
    %13 = arith.cmpi sge, %10, %12 : vector<10x10x128xi32>
    %c9_i32 = arith.constant 9 : i32
    %14 = vector.broadcast %c9_i32 : i32 to vector<10x10x128xi32>
    %15 = arith.cmpi slt, %10, %14 : vector<10x10x128xi32>
    %16 = arith.andi %13, %15 : vector<10x10x128xi1>
    %c1_i32_9 = arith.constant 1 : i32
    %17 = vector.broadcast %c1_i32_9 : i32 to vector<10x10x128xi32>
    %18 = arith.cmpi sge, %11, %17 : vector<10x10x128xi32>
    %19 = arith.andi %16, %18 : vector<10x10x128xi1>
    %c9_i32_10 = arith.constant 9 : i32
    %20 = vector.broadcast %c9_i32_10 : i32 to vector<10x10x128xi32>
    %21 = arith.cmpi slt, %11, %20 : vector<10x10x128xi32>
    %22 = arith.andi %19, %21 : vector<10x10x128xi1>
    %cst_11 = arith.constant 0.000000e+00 : f32
    %23 = vector.broadcast %cst_11 : f32 to vector<10x10x128xf32>
    %24 = arith.select %22, %9, %23 : vector<10x10x128xi1>, vector<10x10x128xf32>
    %25 = arith.truncf %24 : vector<10x10x128xf32> to vector<10x10x128xbf16>
    %cst_12 = arith.constant 0.000000e+00 : f32
    %26 = vector.broadcast %cst_12 : f32 to vector<64x128xf32>
    %27 = vector.extract_strided_slice %25 {offsets = [0, 0, 0], sizes = [8, 8, 128], strides = [1, 1, 1]} : vector<10x10x128xbf16> to vector<8x8x128xbf16>
    %28 = vector.shape_cast %27 : vector<8x8x128xbf16> to vector<64x128xbf16>
    %c0_13 = arith.constant 0 : index
    %c0_14 = arith.constant 0 : index
    %c0_15 = arith.constant 0 : index
    %29 = vector.load %arg4[%c0_13, %c0_14, %c0_15] : memref<9x128x128xbf16, #tpu.memory_space<vmem>>, vector<1x128x128xbf16>
    %30 = vector.shape_cast %29 : vector<1x128x128xbf16> to vector<128x128xbf16>
    %cst_16 = arith.constant dense<0.000000e+00> : vector<64x128xf32>
    %31 = tpu.matmul %28, %30, %cst_16 {dimension_numbers = #tpu.dot_dimension_numbers<[1], [0], [0], [1], [0, 0, 1, 1], [], []>} : vector<64x128xbf16>, vector<128x128xbf16>, vector<64x128xf32> -> vector<64x128xf32>
    %32 = arith.addf %26, %31 : vector<64x128xf32>
    %33 = vector.extract_strided_slice %25 {offsets = [0, 1, 0], sizes = [8, 8, 128], strides = [1, 1, 1]} : vector<10x10x128xbf16> to vector<8x8x128xbf16>
    %34 = vector.shape_cast %33 : vector<8x8x128xbf16> to vector<64x128xbf16>
    %c1 = arith.constant 1 : index
    %c0_17 = arith.constant 0 : index
    %c0_18 = arith.constant 0 : index
    %35 = vector.load %arg4[%c1, %c0_17, %c0_18] : memref<9x128x128xbf16, #tpu.memory_space<vmem>>, vector<1x128x128xbf16>
    %36 = vector.shape_cast %35 : vector<1x128x128xbf16> to vector<128x128xbf16>
    %cst_19 = arith.constant dense<0.000000e+00> : vector<64x128xf32>
    %37 = tpu.matmul %34, %36, %cst_19 {dimension_numbers = #tpu.dot_dimension_numbers<[1], [0], [0], [1], [0, 0, 1, 1], [], []>} : vector<64x128xbf16>, vector<128x128xbf16>, vector<64x128xf32> -> vector<64x128xf32>
    %38 = arith.addf %32, %37 : vector<64x128xf32>
    %39 = vector.extract_strided_slice %25 {offsets = [0, 2, 0], sizes = [8, 8, 128], strides = [1, 1, 1]} : vector<10x10x128xbf16> to vector<8x8x128xbf16>
    %40 = vector.shape_cast %39 : vector<8x8x128xbf16> to vector<64x128xbf16>
    %c2 = arith.constant 2 : index
    %c0_20 = arith.constant 0 : index
    %c0_21 = arith.constant 0 : index
    %41 = vector.load %arg4[%c2, %c0_20, %c0_21] : memref<9x128x128xbf16, #tpu.memory_space<vmem>>, vector<1x128x128xbf16>
    %42 = vector.shape_cast %41 : vector<1x128x128xbf16> to vector<128x128xbf16>
    %cst_22 = arith.constant dense<0.000000e+00> : vector<64x128xf32>
    %43 = tpu.matmul %40, %42, %cst_22 {dimension_numbers = #tpu.dot_dimension_numbers<[1], [0], [0], [1], [0, 0, 1, 1], [], []>} : vector<64x128xbf16>, vector<128x128xbf16>, vector<64x128xf32> -> vector<64x128xf32>
    %44 = arith.addf %38, %43 : vector<64x128xf32>
    %45 = vector.extract_strided_slice %25 {offsets = [1, 0, 0], sizes = [8, 8, 128], strides = [1, 1, 1]} : vector<10x10x128xbf16> to vector<8x8x128xbf16>
    %46 = vector.shape_cast %45 : vector<8x8x128xbf16> to vector<64x128xbf16>
    %c3 = arith.constant 3 : index
    %c0_23 = arith.constant 0 : index
    %c0_24 = arith.constant 0 : index
    %47 = vector.load %arg4[%c3, %c0_23, %c0_24] : memref<9x128x128xbf16, #tpu.memory_space<vmem>>, vector<1x128x128xbf16>
    %48 = vector.shape_cast %47 : vector<1x128x128xbf16> to vector<128x128xbf16>
    %cst_25 = arith.constant dense<0.000000e+00> : vector<64x128xf32>
    %49 = tpu.matmul %46, %48, %cst_25 {dimension_numbers = #tpu.dot_dimension_numbers<[1], [0], [0], [1], [0, 0, 1, 1], [], []>} : vector<64x128xbf16>, vector<128x128xbf16>, vector<64x128xf32> -> vector<64x128xf32>
    %50 = arith.addf %44, %49 : vector<64x128xf32>
    %51 = vector.extract_strided_slice %25 {offsets = [1, 1, 0], sizes = [8, 8, 128], strides = [1, 1, 1]} : vector<10x10x128xbf16> to vector<8x8x128xbf16>
    %52 = vector.shape_cast %51 : vector<8x8x128xbf16> to vector<64x128xbf16>
    %c4 = arith.constant 4 : index
    %c0_26 = arith.constant 0 : index
    %c0_27 = arith.constant 0 : index
    %53 = vector.load %arg4[%c4, %c0_26, %c0_27] : memref<9x128x128xbf16, #tpu.memory_space<vmem>>, vector<1x128x128xbf16>
    %54 = vector.shape_cast %53 : vector<1x128x128xbf16> to vector<128x128xbf16>
    %cst_28 = arith.constant dense<0.000000e+00> : vector<64x128xf32>
    %55 = tpu.matmul %52, %54, %cst_28 {dimension_numbers = #tpu.dot_dimension_numbers<[1], [0], [0], [1], [0, 0, 1, 1], [], []>} : vector<64x128xbf16>, vector<128x128xbf16>, vector<64x128xf32> -> vector<64x128xf32>
    %56 = arith.addf %50, %55 : vector<64x128xf32>
    %57 = vector.extract_strided_slice %25 {offsets = [1, 2, 0], sizes = [8, 8, 128], strides = [1, 1, 1]} : vector<10x10x128xbf16> to vector<8x8x128xbf16>
    %58 = vector.shape_cast %57 : vector<8x8x128xbf16> to vector<64x128xbf16>
    %c5 = arith.constant 5 : index
    %c0_29 = arith.constant 0 : index
    %c0_30 = arith.constant 0 : index
    %59 = vector.load %arg4[%c5, %c0_29, %c0_30] : memref<9x128x128xbf16, #tpu.memory_space<vmem>>, vector<1x128x128xbf16>
    %60 = vector.shape_cast %59 : vector<1x128x128xbf16> to vector<128x128xbf16>
    %cst_31 = arith.constant dense<0.000000e+00> : vector<64x128xf32>
    %61 = tpu.matmul %58, %60, %cst_31 {dimension_numbers = #tpu.dot_dimension_numbers<[1], [0], [0], [1], [0, 0, 1, 1], [], []>} : vector<64x128xbf16>, vector<128x128xbf16>, vector<64x128xf32> -> vector<64x128xf32>
    %62 = arith.addf %56, %61 : vector<64x128xf32>
    %63 = vector.extract_strided_slice %25 {offsets = [2, 0, 0], sizes = [8, 8, 128], strides = [1, 1, 1]} : vector<10x10x128xbf16> to vector<8x8x128xbf16>
    %64 = vector.shape_cast %63 : vector<8x8x128xbf16> to vector<64x128xbf16>
    %c6 = arith.constant 6 : index
    %c0_32 = arith.constant 0 : index
    %c0_33 = arith.constant 0 : index
    %65 = vector.load %arg4[%c6, %c0_32, %c0_33] : memref<9x128x128xbf16, #tpu.memory_space<vmem>>, vector<1x128x128xbf16>
    %66 = vector.shape_cast %65 : vector<1x128x128xbf16> to vector<128x128xbf16>
    %cst_34 = arith.constant dense<0.000000e+00> : vector<64x128xf32>
    %67 = tpu.matmul %64, %66, %cst_34 {dimension_numbers = #tpu.dot_dimension_numbers<[1], [0], [0], [1], [0, 0, 1, 1], [], []>} : vector<64x128xbf16>, vector<128x128xbf16>, vector<64x128xf32> -> vector<64x128xf32>
    %68 = arith.addf %62, %67 : vector<64x128xf32>
    %69 = vector.extract_strided_slice %25 {offsets = [2, 1, 0], sizes = [8, 8, 128], strides = [1, 1, 1]} : vector<10x10x128xbf16> to vector<8x8x128xbf16>
    %70 = vector.shape_cast %69 : vector<8x8x128xbf16> to vector<64x128xbf16>
    %c7 = arith.constant 7 : index
    %c0_35 = arith.constant 0 : index
    %c0_36 = arith.constant 0 : index
    %71 = vector.load %arg4[%c7, %c0_35, %c0_36] : memref<9x128x128xbf16, #tpu.memory_space<vmem>>, vector<1x128x128xbf16>
    %72 = vector.shape_cast %71 : vector<1x128x128xbf16> to vector<128x128xbf16>
    %cst_37 = arith.constant dense<0.000000e+00> : vector<64x128xf32>
    %73 = tpu.matmul %70, %72, %cst_37 {dimension_numbers = #tpu.dot_dimension_numbers<[1], [0], [0], [1], [0, 0, 1, 1], [], []>} : vector<64x128xbf16>, vector<128x128xbf16>, vector<64x128xf32> -> vector<64x128xf32>
    %74 = arith.addf %68, %73 : vector<64x128xf32>
    %75 = vector.extract_strided_slice %25 {offsets = [2, 2, 0], sizes = [8, 8, 128], strides = [1, 1, 1]} : vector<10x10x128xbf16> to vector<8x8x128xbf16>
    %76 = vector.shape_cast %75 : vector<8x8x128xbf16> to vector<64x128xbf16>
    %c8 = arith.constant 8 : index
    %c0_38 = arith.constant 0 : index
    %c0_39 = arith.constant 0 : index
    %77 = vector.load %arg4[%c8, %c0_38, %c0_39] : memref<9x128x128xbf16, #tpu.memory_space<vmem>>, vector<1x128x128xbf16>
    %78 = vector.shape_cast %77 : vector<1x128x128xbf16> to vector<128x128xbf16>
    %cst_40 = arith.constant dense<0.000000e+00> : vector<64x128xf32>
    %79 = tpu.matmul %76, %78, %cst_40 {dimension_numbers = #tpu.dot_dimension_numbers<[1], [0], [0], [1], [0, 0, 1, 1], [], []>} : vector<64x128xbf16>, vector<128x128xbf16>, vector<64x128xf32> -> vector<64x128xf32>
    %80 = arith.addf %74, %79 : vector<64x128xf32>
    %81 = vector.shape_cast %80 : vector<64x128xf32> to vector<8x8x128xf32>
    %c0_41 = arith.constant 0 : index
    %c0_42 = arith.constant 0 : index
    %c0_43 = arith.constant 0 : index
    %c0_44 = arith.constant 0 : index
    %82 = vector.load %arg5[%c0_41, %c0_42, %c0_43, %c0_44] : memref<1x8x8x128xf32, #tpu.memory_space<vmem>>, vector<1x8x8x128xf32>
    %83 = vector.shape_cast %82 : vector<1x8x8x128xf32> to vector<8x8x128xf32>
    %84 = vector.shape_cast %81 : vector<8x8x128xf32> to vector<1x8x8x128xf32>
    tpu.vector_store %arg5[%c0_41, %c0_42, %c0_43, %c0_44], %84 {strides = array<i32>} : memref<1x8x8x128xf32, #tpu.memory_space<vmem>>, vector<1x8x8x128xf32>,
    %cst_45 = arith.constant dense<0.000000e+00> : vector<128xf32>
    %85 = vector.multi_reduction <add>, %80, %cst_45 [0] : vector<64x128xf32> to vector<128xf32>
    %86 = vector.shape_cast %85 : vector<128xf32> to vector<1x128xf32>
    %87 = arith.mulf %80, %80 : vector<64x128xf32>
    %cst_46 = arith.constant dense<0.000000e+00> : vector<128xf32>
    %88 = vector.multi_reduction <add>, %87, %cst_46 [0] : vector<64x128xf32> to vector<128xf32>
    %89 = vector.shape_cast %88 : vector<128xf32> to vector<1x128xf32>
    %cst_47 = arith.constant 0.000000e+00 : f32
    %90 = vector.broadcast %cst_47 : f32 to vector<6x128xf32>
    %91 = tpu.concatenate %86, %89, %90 in 0 : vector<1x128xf32>, vector<1x128xf32>, vector<6x128xf32> -> vector<8x128xf32>
    %c0_48 = arith.constant 0 : index
    %c0_49 = arith.constant 0 : index
    %c0_50 = arith.constant 0 : index
    %92 = vector.load %arg6[%c0_48, %c0_49, %c0_50] : memref<1x8x128xf32, #tpu.memory_space<vmem>>, vector<1x8x128xf32>
    %93 = vector.shape_cast %92 : vector<1x8x128xf32> to vector<8x128xf32>
    %94 = vector.shape_cast %91 : vector<8x128xf32> to vector<1x8x128xf32>
    tpu.vector_store %arg6[%c0_48, %c0_49, %c0_50], %94 {strides = array<i32>} : memref<1x8x128xf32, #tpu.memory_space<vmem>>, vector<1x8x128xf32>,
    return
  }
  func.func @transform_0(%arg0: i32) -> (i32, i32, i32, i32) {
    %c0_i32 = arith.constant 0 : i32
    %c0_i32_0 = arith.constant 0 : i32
    %c0_i32_1 = arith.constant 0 : i32
    %c0_i32_2 = arith.constant 0 : i32
    return %arg0, %c0_i32, %c0_i32_0, %c0_i32_1 : i32, i32, i32, i32
  }
  func.func @transform_1(%arg0: i32) -> (i32, i32, i32) {
    %c0_i32 = arith.constant 0 : i32
    %c0_i32_0 = arith.constant 0 : i32
    %c0_i32_1 = arith.constant 0 : i32
    %c0_i32_2 = arith.constant 0 : i32
    return %c0_i32, %c0_i32_0, %c0_i32_1 : i32, i32, i32
  }
  func.func @transform_2(%arg0: i32) -> (i32, i32, i32) {
    %c0_i32 = arith.constant 0 : i32
    %c0_i32_0 = arith.constant 0 : i32
    %c0_i32_1 = arith.constant 0 : i32
    %c0_i32_2 = arith.constant 0 : i32
    return %c0_i32, %c0_i32_0, %c0_i32_1 : i32, i32, i32
  }
  func.func @transform_3(%arg0: i32) -> (i32, i32, i32) {
    %c0_i32 = arith.constant 0 : i32
    %c0_i32_0 = arith.constant 0 : i32
    %c0_i32_1 = arith.constant 0 : i32
    %c0_i32_2 = arith.constant 0 : i32
    return %c0_i32, %c0_i32_0, %c0_i32_1 : i32, i32, i32
  }
  func.func @transform_4(%arg0: i32) -> (i32, i32, i32, i32) {
    %c0_i32 = arith.constant 0 : i32
    %c0_i32_0 = arith.constant 0 : i32
    %c0_i32_1 = arith.constant 0 : i32
    %c0_i32_2 = arith.constant 0 : i32
    return %arg0, %c0_i32, %c0_i32_0, %c0_i32_1 : i32, i32, i32, i32
  }
  func.func @transform_5(%arg0: i32) -> (i32, i32, i32) {
    %c0_i32 = arith.constant 0 : i32
    %c0_i32_0 = arith.constant 0 : i32
    %c0_i32_1 = arith.constant 0 : i32
    return %arg0, %c0_i32, %c0_i32_0 : i32, i32, i32
  }
}

module attributes {stable_mosaic.version = 11 : i64} {
  func.func @_add_kernel(%arg0: i32, %arg1: memref<32x512xf32, #tpu.memory_space<vmem>>, %arg2: memref<32x512xf32, #tpu.memory_space<vmem>>, %arg3: memref<32x512xf32, #tpu.memory_space<vmem>>) attributes {dimension_semantics = [#tpu.dimension_semantics<parallel>], iteration_bounds = array<i64: 1>, scalar_prefetch = 0 : i64, scratch_operands = 0 : i64, tpu.core_type = #tpu.core_type<tc>, window_params = [{transform_indices = @transform_0, window_bounds = array<i64: 32, 512>}, {transform_indices = @transform_1, window_bounds = array<i64: 32, 512>}, {transform_indices = @transform_2, window_bounds = array<i64: 32, 512>}]} {
    %c0 = arith.constant 0 : index
    %c0_0 = arith.constant 0 : index
    %0 = vector.load %arg1[%c0, %c0_0] : memref<32x512xf32, #tpu.memory_space<vmem>>, vector<32x512xf32>
    %c0_1 = arith.constant 0 : index
    %c0_2 = arith.constant 0 : index
    %1 = vector.load %arg2[%c0_1, %c0_2] : memref<32x512xf32, #tpu.memory_space<vmem>>, vector<32x512xf32>
    %2 = arith.addf %0, %1 : vector<32x512xf32>
    %c0_3 = arith.constant 0 : index
    %c0_4 = arith.constant 0 : index
    %3 = vector.load %arg3[%c0_3, %c0_4] : memref<32x512xf32, #tpu.memory_space<vmem>>, vector<32x512xf32>
    tpu.vector_store %arg3[%c0_3, %c0_4], %2 {strides = array<i32>} : memref<32x512xf32, #tpu.memory_space<vmem>>, vector<32x512xf32>,
    return
  }
  func.func @transform_0(%arg0: i32) -> (i32, i32) {
    %c0_i32 = arith.constant 0 : i32
    %c0_i32_0 = arith.constant 0 : i32
    return %arg0, %c0_i32 : i32, i32
  }
  func.func @transform_1(%arg0: i32) -> (i32, i32) {
    %c0_i32 = arith.constant 0 : i32
    %c0_i32_0 = arith.constant 0 : i32
    return %arg0, %c0_i32 : i32, i32
  }
  func.func @transform_2(%arg0: i32) -> (i32, i32) {
    %c0_i32 = arith.constant 0 : i32
    %c0_i32_0 = arith.constant 0 : i32
    return %arg0, %c0_i32 : i32, i32
  }
}

</mosaic_0001>

<llo_original>
// kernel: frru_forward.6
$region0: #{frru_forward.6}
  #allocation0 [shape = 'u32[]', space=smem, size = 0x4, offset = 0x4, fixed_abs, tag = 'smem constant byte address 0x4 - core index']
  #allocation1 [shape = 'u32[72,128]{1,0:T(1,128)}', space=vmem, size = 0x9000, scoped, tag = 'internal scratch']
  %s0 = inlined_call_operand.vmem [shape: f32[128,128], index: 0, kind: input, shape index: {}]
  %s1 = inlined_call_operand.vmem [shape: f32[1,128], index: 1, kind: input, shape index: {}]
  %s2 = inlined_call_operand.vmem [shape: f32[1,128], index: 2, kind: input, shape index: {}]
  %s3 = inlined_call_operand.vmem [shape: bf16[128,128], index: 3, kind: input, shape index: {}]
  %s4 = inlined_call_operand.vmem [shape: f32[1,128], index: 4, kind: input, shape index: {}]
  %s5 = inlined_call_operand.hbm [shape: f32[128,128], index: 5, kind: output, shape index: {0}]
  %s6 = inlined_call_operand.vmem [shape: f32[128,128], index: 6, kind: output, shape index: {1}]
  %7 = xla_tuple %s5, %s6
  %s8 = sld [smem:[#allocation0]]
  $region38: #{frru_forward.6} parent=0
    _
  %s10 = ssub.s32 1, %s8
  %s11 = scalar_select 0, %s10, %s8
  $region1: #{frru_forward.6} parent=0
    #allocation2 [shape = 'u8[65536]{0}', space=vmem, size = 0x10000, scoped, tag = 'output window, operand 0, single buffered']
    #allocation3 [shape = 's32[1]{0}', space=sflag, size = 0x4, scoped, tag = 'scoped memory for frru_forward.6']
    %12 = vsyncpa [#allocation3], 0
    // Predicated region
    $region2: #{frru_forward.6} parent=1 // pred_check
      _
    $region3: #{frru_forward.6} parent=1 // pred_check_branch
      %14 = sbr.rel (0) target = $region5
    $region4: #{frru_forward.6} parent=1 // pred_region
      _
    $region5: #{frru_forward.6} parent=1 // pred_fallthru
      _
    // Predicated region
    $region6: #{frru_forward.6} parent=1 // pred_check
      _
    $region7: #{frru_forward.6} parent=1 // pred_check_branch
      %16 = sbr.rel (0) target = $region9
    $region8: #{frru_forward.6} parent=1 // pred_region
      _
    $region9: #{frru_forward.6} parent=1 // pred_fallthru
      _
    // Predicated region
    $region10: #{frru_forward.6} parent=1 // pred_check
      _
    $region11: #{frru_forward.6} parent=1 // pred_check_branch
      %18 = sbr.rel (0) target = $region13
    $region12: #{frru_forward.6} parent=1 // pred_region
      _
    $region13: #{frru_forward.6} parent=1 // pred_fallthru
      _
    // Predicated region
    $region14: #{frru_forward.6} parent=1 // pred_check
      _
    $region15: #{frru_forward.6} parent=1 // pred_check_branch
      %20 = sbr.rel (0) target = $region17
    $region16: #{frru_forward.6} parent=1 // pred_region
      _
    $region17: #{frru_forward.6} parent=1 // pred_fallthru
      _
    // Predicated region
    $region18: #{frru_forward.6} parent=1 // pred_check
      _
    $region19: #{frru_forward.6} parent=1 // pred_check_branch
      %22 = sbr.rel (0) target = $region21
    $region20: #{frru_forward.6} parent=1 // pred_region
      _
    $region21: #{frru_forward.6} parent=1 // pred_fallthru
      _
    %v23 = vld [vmem:[%s0] sm:$0xff]
    %v24 = vld [vmem:[%s0 + $0x8] sm:$0xff]
    %v25 = vld [vmem:[%s0 + $0x10] sm:$0xff]
    %v26 = vld [vmem:[%s0 + $0x18] sm:$0xff]
    %v27 = vld [vmem:[%s0 + $0x20] sm:$0xff]
    %v28 = vld [vmem:[%s0 + $0x28] sm:$0xff]
    %v29 = vld [vmem:[%s0 + $0x30] sm:$0xff]
    %v30 = vld [vmem:[%s0 + $0x38] sm:$0xff]
    %v31 = vld [vmem:[%s0 + $0x40] sm:$0xff]
    %v32 = vld [vmem:[%s0 + $0x48] sm:$0xff]
    %v33 = vld [vmem:[%s0 + $0x50] sm:$0xff]
    %v34 = vld [vmem:[%s0 + $0x58] sm:$0xff]
    %v35 = vld [vmem:[%s0 + $0x60] sm:$0xff]
    %v36 = vld [vmem:[%s0 + $0x68] sm:$0xff]
    %v37 = vld [vmem:[%s0 + $0x70] sm:$0xff]
    %v38 = vld [vmem:[%s0 + $0x78] sm:$0xff]
    %v39 = vld [vmem:[%s1] sm:$0x1]
    %v41 = vperm.slane %v39, 0
    %v43 = vmul.f32 %v23, %v41
    %v44 = vmul.f32 %v24, %v41
    %v45 = vmul.f32 %v25, %v41
    %v46 = vmul.f32 %v26, %v41
    %v47 = vmul.f32 %v27, %v41
    %v48 = vmul.f32 %v28, %v41
    %v49 = vmul.f32 %v29, %v41
    %v50 = vmul.f32 %v30, %v41
    %v51 = vmul.f32 %v31, %v41
    %v52 = vmul.f32 %v32, %v41
    %v53 = vmul.f32 %v33, %v41
    %v54 = vmul.f32 %v34, %v41
    %v55 = vmul.f32 %v35, %v41
    %v56 = vmul.f32 %v36, %v41
    %v57 = vmul.f32 %v37, %v41
    %v58 = vmul.f32 %v38, %v41
    %v59 = vld [vmem:[%s2] sm:$0x1]
    %v61 = vperm.slane %v59, 0
    %v63 = vadd.f32 %v43, %v61
    %v64 = vadd.f32 %v44, %v61
    %v65 = vadd.f32 %v45, %v61
    %v66 = vadd.f32 %v46, %v61
    %v67 = vadd.f32 %v47, %v61
    %v68 = vadd.f32 %v48, %v61
    %v69 = vadd.f32 %v49, %v61
    %v70 = vadd.f32 %v50, %v61
    %v71 = vadd.f32 %v51, %v61
    %v72 = vadd.f32 %v52, %v61
    %v73 = vadd.f32 %v53, %v61
    %v74 = vadd.f32 %v54, %v61
    %v75 = vadd.f32 %v55, %v61
    %v76 = vadd.f32 %v56, %v61
    %v77 = vadd.f32 %v57, %v61
    %v78 = vadd.f32 %v58, %v61
    %v79 = vmax.f32 %v63, 0.0
    %v80 = vmax.f32 %v64, 0.0
    %v81 = vmax.f32 %v65, 0.0
    %v82 = vmax.f32 %v66, 0.0
    %v83 = vmax.f32 %v67, 0.0
    %v84 = vmax.f32 %v68, 0.0
    %v85 = vmax.f32 %v69, 0.0
    %v86 = vmax.f32 %v70, 0.0
    %v87 = vmax.f32 %v71, 0.0
    %v88 = vmax.f32 %v72, 0.0
    %v89 = vmax.f32 %v73, 0.0
    %v90 = vmax.f32 %v74, 0.0
    %v91 = vmax.f32 %v75, 0.0
    %v92 = vmax.f32 %v76, 0.0
    %v93 = vmax.f32 %v77, 0.0
    %v94 = vmax.f32 %v78, 0.0
    %95 = vst [vmem:[#allocation2] sm:$0xff] %v79
    %96 = vst [vmem:[#allocation2 + $0x8] sm:$0xff] %v80
    %97 = vst [vmem:[#allocation2 + $0x10] sm:$0xff] %v81
    %98 = vst [vmem:[#allocation2 + $0x18] sm:$0xff] %v82
    %99 = vst [vmem:[#allocation2 + $0x20] sm:$0xff] %v83
    %100 = vst [vmem:[#allocation2 + $0x28] sm:$0xff] %v84
    %101 = vst [vmem:[#allocation2 + $0x30] sm:$0xff] %v85
    %102 = vst [vmem:[#allocation2 + $0x38] sm:$0xff] %v86
    %103 = vst [vmem:[#allocation2 + $0x40] sm:$0xff] %v87
    %104 = vst [vmem:[#allocation2 + $0x48] sm:$0xff] %v88
    %105 = vst [vmem:[#allocation2 + $0x50] sm:$0xff] %v89
    %106 = vst [vmem:[#allocation2 + $0x58] sm:$0xff] %v90
    %107 = vst [vmem:[#allocation2 + $0x60] sm:$0xff] %v91
    %108 = vst [vmem:[#allocation2 + $0x68] sm:$0xff] %v92
    %109 = vst [vmem:[#allocation2 + $0x70] sm:$0xff] %v93
    %110 = vst [vmem:[#allocation2 + $0x78] sm:$0xff] %v94
    %v111 = vpack.c.bf16 %v80, %v79
    %v112 = vpack.c.bf16 %v82, %v81
    %v113 = vpack.c.bf16 %v84, %v83
    %v114 = vpack.c.bf16 %v86, %v85
    %v115 = vpack.c.bf16 %v88, %v87
    %v116 = vpack.c.bf16 %v90, %v89
    %v117 = vpack.c.bf16 %v92, %v91
    %v118 = vpack.c.bf16 %v94, %v93
    %v119 = vld [vmem:[%s3] sm:$0xf]
    %v120 = vld [vmem:[%s3 + $0x4] sm:$0xf]
    %v121 = vld [vmem:[%s3 + $0x8] sm:$0xf]
    %v122 = vld [vmem:[%s3 + $0xc] sm:$0xf]
    %v123 = vld [vmem:[%s3 + $0x10] sm:$0xf]
    %v124 = vld [vmem:[%s3 + $0x14] sm:$0xf]
    %v125 = vld [vmem:[%s3 + $0x18] sm:$0xf]
    %v126 = vld [vmem:[%s3 + $0x1c] sm:$0xf]
    %v127 = vld [vmem:[%s3 + $0x20] sm:$0xf]
    %v128 = vld [vmem:[%s3 + $0x24] sm:$0xf]
    %v129 = vld [vmem:[%s3 + $0x28] sm:$0xf]
    %v130 = vld [vmem:[%s3 + $0x2c] sm:$0xf]
    %v131 = vld [vmem:[%s3 + $0x30] sm:$0xf]
    %v132 = vld [vmem:[%s3 + $0x34] sm:$0xf]
    %v133 = vld [vmem:[%s3 + $0x38] sm:$0xf]
    %v134 = vld [vmem:[%s3 + $0x3c] sm:$0xf]
    %v135 = vld [vmem:[%s4] sm:$0x1]
    %v137 = vperm.slane %v135, 0
    %v155 = vunpack.c.l.b16 %v119
    %v156 = vunpack.c.l.b16 %v120
    %v157 = vunpack.c.l.b16 %v121
    %v158 = vunpack.c.l.b16 %v122
    %v159 = vunpack.c.l.b16 %v123
    %v160 = vunpack.c.l.b16 %v124
    %v161 = vunpack.c.l.b16 %v125
    %v162 = vunpack.c.l.b16 %v126
    %v163 = vunpack.c.l.b16 %v127
    %v164 = vunpack.c.l.b16 %v128
    %v165 = vunpack.c.l.b16 %v129
    %v166 = vunpack.c.l.b16 %v130
    %v167 = vunpack.c.l.b16 %v131
    %v168 = vunpack.c.l.b16 %v132
    %v169 = vunpack.c.l.b16 %v133
    %v170 = vunpack.c.l.b16 %v134
    %v171 = vpack.c.b16 %v156, %v155
    %v172 = vpack.c.b16 %v158, %v157
    %v173 = vpack.c.b16 %v160, %v159
    %v174 = vpack.c.b16 %v162, %v161
    %v175 = vpack.c.b16 %v164, %v163
    %v176 = vpack.c.b16 %v166, %v165
    %v177 = vpack.c.b16 %v168, %v167
    %v178 = vpack.c.b16 %v170, %v169
    %187 = vmatpush.bf16.msra.mxu0 %v178
    %188 = vmatpush.bf16.msra.mxu0 %v177
    %189 = vmatpush.bf16.msra.mxu0 %v176
    %190 = vmatpush.bf16.msra.mxu0 %v175
    %191 = vmatpush.bf16.msra.mxu0 %v174
    %192 = vmatpush.bf16.msra.mxu0 %v173
    %193 = vmatpush.bf16.msra.mxu0 %v172
    %194 = vmatpush.bf16.msra.mxu0 %v171
    %195 = vmatmul.bf16.gmra.mxu0 %v111
    %v196 = vpop.f32.mrf.mxu0
    %v197 = vadd.f32 %v137, %v196
    %v198 = vpop.f32.mrf.mxu0
    %v199 = vadd.f32 %v137, %v198
    %200 = vmatmul.bf16.gmra.mxu0 %v112
    %v201 = vpop.f32.mrf.mxu0
    %v202 = vadd.f32 %v137, %v201
    %v203 = vpop.f32.mrf.mxu0
    %v204 = vadd.f32 %v137, %v203
    %205 = vmatmul.bf16.gmra.mxu0 %v113
    %v206 = vpop.f32.mrf.mxu0
    %v207 = vadd.f32 %v137, %v206
    %v208 = vpop.f32.mrf.mxu0
    %v209 = vadd.f32 %v137, %v208
    %210 = vmatmul.bf16.gmra.mxu0 %v114
    %v211 = vpop.f32.mrf.mxu0
    %v212 = vadd.f32 %v137, %v211
    %v213 = vpop.f32.mrf.mxu0
    %v214 = vadd.f32 %v137, %v213
    %215 = vmatmul.bf16.gmra.mxu0 %v115
    %v216 = vpop.f32.mrf.mxu0
    %v217 = vadd.f32 %v137, %v216
    %v218 = vpop.f32.mrf.mxu0
    %v219 = vadd.f32 %v137, %v218
    %220 = vmatmul.bf16.gmra.mxu0 %v116
    %v221 = vpop.f32.mrf.mxu0
    %v222 = vadd.f32 %v137, %v221
    %v223 = vpop.f32.mrf.mxu0
    %v224 = vadd.f32 %v137, %v223
    %225 = vmatmul.bf16.gmra.mxu0 %v117
    %v226 = vpop.f32.mrf.mxu0
    %v227 = vadd.f32 %v137, %v226
    %v228 = vpop.f32.mrf.mxu0
    %v229 = vadd.f32 %v137, %v228
    %230 = vmatmul.bf16.gmra.mxu0 %v118
    %v231 = vpop.f32.mrf.mxu0
    %v232 = vadd.f32 %v137, %v231
    %v233 = vpop.f32.mrf.mxu0
    %v234 = vadd.f32 %v137, %v233
    %235 = vdwg.mxu0
    %236 = vst [vmem:[%s6] sm:$0xff] %v197
    %237 = vst [vmem:[%s6 + $0x8] sm:$0xff] %v199
    %238 = vst [vmem:[%s6 + $0x10] sm:$0xff] %v202
    %239 = vst [vmem:[%s6 + $0x18] sm:$0xff] %v204
    %240 = vst [vmem:[%s6 + $0x20] sm:$0xff] %v207
    %241 = vst [vmem:[%s6 + $0x28] sm:$0xff] %v209
    %242 = vst [vmem:[%s6 + $0x30] sm:$0xff] %v212
    %243 = vst [vmem:[%s6 + $0x38] sm:$0xff] %v214
    %244 = vst [vmem:[%s6 + $0x40] sm:$0xff] %v217
    %245 = vst [vmem:[%s6 + $0x48] sm:$0xff] %v219
    %246 = vst [vmem:[%s6 + $0x50] sm:$0xff] %v222
    %247 = vst [vmem:[%s6 + $0x58] sm:$0xff] %v224
    %248 = vst [vmem:[%s6 + $0x60] sm:$0xff] %v227
    %249 = vst [vmem:[%s6 + $0x68] sm:$0xff] %v229
    %250 = vst [vmem:[%s6 + $0x70] sm:$0xff] %v232
    %251 = vst [vmem:[%s6 + $0x78] sm:$0xff] %v234
    // Predicated region
    $region22: #{frru_forward.6} parent=1 // pred_check
      _
    $region23: #{frru_forward.6} parent=1 // pred_check_branch
      %253 = sbr.rel (0) target = $region25
    $region24: #{frru_forward.6} parent=1 // pred_region
      %255 = vsyncadd [#allocation3], 0
      %s256 = sshll.u32 [#allocation2], 4
      %s257 = int_to_ptr.vmem [resolvable:$true] %s256
      %s258 = sshll.u32 %s5, 4
      %s259 = int_to_ptr.hbm [resolvable:$true] %s258
      %264 = dma.vmem_to_hbm [thread:$0]  %s257, 2048, %s259, [#allocation3], 128, 128, 8
    $region25: #{frru_forward.6} parent=1 // pred_fallthru
      _
    // Predicated region
    $region26: #{frru_forward.6} parent=1 // pred_check
      _
    $region27: #{frru_forward.6} parent=1 // pred_check_branch
      %266 = sbr.rel (0) target = $region29
    $region28: #{frru_forward.6} parent=1 // pred_region
      _
    $region29: #{frru_forward.6} parent=1 // pred_fallthru
      _
    // Predicated region
    $region30: #{frru_forward.6} parent=1 // pred_check
      _
    $region31: #{frru_forward.6} parent=1 // pred_check_branch
      %268 = sbr.rel (0) target = $region33
    $region32: #{frru_forward.6} parent=1 // pred_region
      %270 = dma.done [#allocation3], 2048
    $region33: #{frru_forward.6} parent=1 // pred_fallthru
      _
    // Predicated region
    $region34: #{frru_forward.6} parent=1 // pred_check
      _
    $region35: #{frru_forward.6} parent=1 // pred_check_branch
      %272 = sbr.rel (0) target = $region37
    $region36: #{frru_forward.6} parent=1 // pred_region
      _
    $region37: #{frru_forward.6} parent=1 // pred_fallthru
      _
    %273 = vsyncpa [#allocation3], 1

// kernel: frru_forward.4
$region0: #{frru_forward.4}
  #allocation0 [shape = 'u32[]', space=smem, size = 0x4, offset = 0x4, fixed_abs, tag = 'smem constant byte address 0x4 - core index']
  #allocation1 [shape = 'u32[72,128]{1,0:T(1,128)}', space=vmem, size = 0x9000, scoped, tag = 'internal scratch']
  %s0 = inlined_call_operand.vmem [shape: f32[2,10,10,128], index: 0, kind: input, shape index: {}]
  %s1 = inlined_call_operand.vmem [shape: bf16[9,128,128], index: 1, kind: input, shape index: {}]
  %s2 = inlined_call_operand.vmem [shape: f32[2,8,8,128], index: 2, kind: output, shape index: {0}]
  %s3 = inlined_call_operand.vmem [shape: f32[2,8,128], index: 3, kind: output, shape index: {1}]
  %4 = xla_tuple %s2, %s3
  %s5 = sld [smem:[#allocation0]]
  $region49: #{frru_forward.4} parent=0
    _
  %s7 = ssub.s32 1, %s5
  %s8 = scalar_select 0, %s7, %s5
  loop: start=0, step=1, limit=4
  $region2: #{frru_forward.4} parent=0 // loop_pre_header
    _
  $region3: #{frru_forward.4} parent=0 // loop_header
    %s10 = sphi 0, %s14
    %p11 = scmp.ge.s32.totalorder %s10, 4
    %s20 = sphi 0, %s22
    %s23 = sphi 0, %s20
    %s24 = sphi 0, %s23
    %s40 = sphi 0, %s24
    %s44 = sphi 0, %s44
    %s46 = sphi 0, %s44
    %s47 = sphi 0, %s46
    %s61 = sphi 0, %s47
    %s67 = sphi 0, %s69
    %s70 = sphi 0, %s67
    %s71 = sphi 0, %s70
    %s87 = sphi 0, %s71
    %s93 = sphi 0, %s95
    %s96 = sphi 0, %s93
    %s97 = sphi 0, %s96
    %s113 = sphi 0, %s97
  $region4: #{frru_forward.4} parent=0 // loop_header_branch
    %13 = sbr.rel (%p11) target = $region8
  $region5: #{frru_forward.4} parent=0 // loop_body
    %s15 = ssub.s32 %s10, 1
    %s16 = ssub.s32 %s10, 2
    %s17 = sadd.s32 %s10, 1
    %s18 = ssub.s32 %s10, %s17
    %p19 = scmp.eq.s32.totalorder %s18, 0
    %s21 = sadd.s32 %s20, 1
    %s22 = scalar_select %p19, %s20, %s21
    %p25 = pneg %p19
    %p26 = scmp.eq.s32.totalorder %s10, 1
    %p27 = por %p25, %p26
    %p28 = scmp.ne.s32.totalorder %s20, %s23
    %p29 = scmp.eq.s32.totalorder %s10, 0
    %p30 = por %p28, %p29
    %p31 = scmp.ne.s32.totalorder %s20, %s23
    %p32 = scmp.eq.s32.totalorder %s15, 1
    %p33 = por %p31, %p32
    %p34 = scmp.ne.s32.totalorder %s23, %s24
    %p35 = scmp.eq.s32.totalorder %s15, 0
    %p36 = por %p34, %p35
    %p37 = scmp.ne.s32.totalorder %s23, %s24
    %p38 = scmp.eq.s32.totalorder %s16, 1
    %p39 = por %p37, %p38
    %p41 = scmp.ne.s32.totalorder %s24, %s40
    %p42 = scmp.eq.s32.totalorder %s16, 0
    %p43 = por %p41, %p42
    %s45 = sadd.s32 %s44, 1
    %p48 = scmp.eq.s32.totalorder %s10, 1
    %p49 = scmp.ne.s32.totalorder %s44, %s46
    %p50 = scmp.eq.s32.totalorder %s10, 0
    %p51 = por %p49, %p50
    %p52 = scmp.ne.s32.totalorder %s44, %s46
    %p53 = scmp.eq.s32.totalorder %s15, 1
    %p54 = por %p52, %p53
    %p55 = scmp.ne.s32.totalorder %s46, %s47
    %p56 = scmp.eq.s32.totalorder %s15, 0
    %p57 = por %p55, %p56
    %p58 = scmp.ne.s32.totalorder %s46, %s47
    %p59 = scmp.eq.s32.totalorder %s16, 1
    %p60 = por %p58, %p59
    %p62 = scmp.ne.s32.totalorder %s47, %s61
    %p63 = scmp.eq.s32.totalorder %s16, 0
    %p64 = por %p62, %p63
    %s65 = ssub.s32 %s10, %s17
    %p66 = scmp.eq.s32.totalorder %s65, 0
    %s68 = sadd.s32 %s67, 1
    %s69 = scalar_select %p66, %s67, %s68
    %p72 = pneg %p66
    %p73 = scmp.eq.s32.totalorder %s10, 1
    %p74 = por %p72, %p73
    %p75 = scmp.ne.s32.totalorder %s67, %s70
    %p76 = scmp.eq.s32.totalorder %s10, 0
    %p77 = por %p75, %p76
    %p78 = scmp.ne.s32.totalorder %s67, %s70
    %p79 = scmp.eq.s32.totalorder %s15, 1
    %p80 = por %p78, %p79
    %p81 = scmp.ne.s32.totalorder %s70, %s71
    %p82 = scmp.eq.s32.totalorder %s15, 0
    %p83 = por %p81, %p82
    %p84 = scmp.ne.s32.totalorder %s70, %s71
    %p85 = scmp.eq.s32.totalorder %s16, 1
    %p86 = por %p84, %p85
    %p88 = scmp.ne.s32.totalorder %s71, %s87
    %p89 = scmp.eq.s32.totalorder %s16, 0
    %p90 = por %p88, %p89
    %s91 = ssub.s32 %s10, %s17
    %p92 = scmp.eq.s32.totalorder %s91, 0
    %s94 = sadd.s32 %s93, 1
    %s95 = scalar_select %p92, %s93, %s94
    %p98 = pneg %p92
    %p99 = scmp.eq.s32.totalorder %s10, 1
    %p100 = por %p98, %p99
    %p101 = scmp.ne.s32.totalorder %s93, %s96
    %p102 = scmp.eq.s32.totalorder %s10, 0
    %p103 = por %p101, %p102
    %p104 = scmp.ne.s32.totalorder %s93, %s96
    %p105 = scmp.eq.s32.totalorder %s15, 1
    %p106 = por %p104, %p105
    %p107 = scmp.ne.s32.totalorder %s96, %s97
    %p108 = scmp.eq.s32.totalorder %s15, 0
    %p109 = por %p107, %p108
    %p110 = scmp.ne.s32.totalorder %s96, %s97
    %p111 = scmp.eq.s32.totalorder %s16, 1
    %p112 = por %p110, %p111
    %p114 = scmp.ne.s32.totalorder %s97, %s113
    %p115 = scmp.eq.s32.totalorder %s16, 0
    %p116 = por %p114, %p115
    %p117 = scmp.le.s32.totalorder 1, %s10
    %p118 = scmp.lt.s32.totalorder %s10, 3
    %p119 = pnand %p117, %p118
    %p120 = pneg %p119
    // Predicated region
    $region9: #{frru_forward.4} parent=5 // pred_check
      _
    $region10: #{frru_forward.4} parent=5 // pred_check_branch
      %122 = sbr.rel (%p119) target = $region12
    $region11: #{frru_forward.4} parent=5 // pred_region
      %s123 = ssub.s32 %s10, 1
      // Predicated region
      $region13: #{frru_forward.4} parent=11 // pred_check
        %p124 = pneg %p57
      $region14: #{frru_forward.4} parent=11 // pred_check_branch
        %126 = sbr.rel (%p124) target = $region16
      $region15: #{frru_forward.4} parent=11 // pred_region
        _
      $region16: #{frru_forward.4} parent=11 // pred_fallthru
        _
    $region12: #{frru_forward.4} parent=5 // pred_fallthru
      _
    %p127 = scmp.lt.s32.totalorder %s10, 2
    // Predicated region
    $region17: #{frru_forward.4} parent=5 // pred_check
      %p128 = pneg %p127
    $region18: #{frru_forward.4} parent=5 // pred_check_branch
      %130 = sbr.rel (%p128) target = $region20
    $region19: #{frru_forward.4} parent=5 // pred_region
      // Predicated region
      $region21: #{frru_forward.4} parent=19 // pred_check
        %p131 = pneg %p30
      $region22: #{frru_forward.4} parent=19 // pred_check_branch
        %133 = sbr.rel (%p131) target = $region24
      $region23: #{frru_forward.4} parent=19 // pred_region
        %p134 = scmp.lt.s32.totalorder %s10, 1
        %s135 = scalar_select %p134, %s10, 1
        %s136 = smul.addr %s135, 20
        %s137 = smul.addr %s136, 8
        %s138 = scalar_lea.vmem %s0, %s137
      $region24: #{frru_forward.4} parent=19 // pred_fallthru
        _
    $region20: #{frru_forward.4} parent=5 // pred_fallthru
      _
    %p139 = scmp.le.s32.totalorder 1, %s10
    %p140 = scmp.lt.s32.totalorder %s10, 3
    %p141 = pnand %p139, %p140
    %p142 = pneg %p141
    // Predicated region
    $region25: #{frru_forward.4} parent=5 // pred_check
      _
    $region26: #{frru_forward.4} parent=5 // pred_check_branch
      %144 = sbr.rel (%p141) target = $region28
    $region27: #{frru_forward.4} parent=5 // pred_region
      %s145 = ssub.s32 %s10, 1
      %p146 = scmp.lt.s32.totalorder %s15, 1
      %s147 = scalar_select %p146, %s15, 1
      %s148 = smul.addr %s147, 20
      %s149 = smul.addr %s148, 8
      %s150 = scalar_lea.vmem %s0, %s149
      %p151 = pneg %p36
      %p152 = pneg %p33
      %p153 = pneg %p57
      %p154 = pneg %p54
      %p155 = pneg %p83
      %p156 = pneg %p80
      %p157 = scmp.lt.s32.totalorder %s15, 1
      %s158 = scalar_select %p157, %s15, 1
      %s159 = smul.addr %s158, 8
      %s160 = smul.addr %s159, 8
      %s161 = scalar_lea.vmem %s2, %s160
      %p162 = pneg %p109
      %p163 = pneg %p106
      %p164 = scmp.lt.s32.totalorder %s15, 1
      %s165 = scalar_select %p164, %s15, 1
      %s166 = smul.addr %s165, 8
      %s167 = scalar_lea.vmem %s3, %s166
      %p168 = scmp.lt.s32.totalorder %s15, 1
      %s169 = scalar_select %p168, %s15, 1
      %s170 = smul.addr %s169, 20
      %s171 = smul.addr %s170, 8
      %s172 = scalar_lea.vmem %s0, %s171
      %p173 = scmp.lt.s32.totalorder %s15, 1
      %s174 = scalar_select %p173, %s15, 1
      %s175 = smul.addr %s174, 8
      %s176 = smul.addr %s175, 8
      %s177 = scalar_lea.vmem %s2, %s176
      %p178 = scmp.lt.s32.totalorder %s15, 1
      %s179 = scalar_select %p178, %s15, 1
      %s180 = smul.addr %s179, 8
      %s181 = scalar_lea.vmem %s3, %s180
      %v182 = vld [vmem:[%s172] sm:$0xff]
      %v183 = vld [vmem:[%s172 + $0x8] sm:$0x3]
      %v184 = vld [vmem:[%s172 + $0x10] sm:$0xff]
      %v185 = vld [vmem:[%s172 + $0x18] sm:$0x3]
      %v186 = vld [vmem:[%s172 + $0x20] sm:$0xff]
      %v187 = vld [vmem:[%s172 + $0x28] sm:$0x3]
      %v188 = vld [vmem:[%s172 + $0x30] sm:$0xff]
      %v189 = vld [vmem:[%s172 + $0x38] sm:$0x3]
      %v190 = vld [vmem:[%s172 + $0x40] sm:$0xff]
      %v191 = vld [vmem:[%s172 + $0x48] sm:$0x3]
      %v192 = vld [vmem:[%s172 + $0x50] sm:$0xff]
      %v193 = vld [vmem:[%s172 + $0x58] sm:$0x3]
      %v194 = vld [vmem:[%s172 + $0x60] sm:$0xff]
      %v195 = vld [vmem:[%s172 + $0x68] sm:$0x3]
      %v196 = vld [vmem:[%s172 + $0x70] sm:$0xff]
      %v197 = vld [vmem:[%s172 + $0x78] sm:$0x3]
      %v198 = vld [vmem:[%s172 + $0x80] sm:$0xff]
      %v199 = vld [vmem:[%s172 + $0x88] sm:$0x3]
      %v200 = vld [vmem:[%s172 + $0x90] sm:$0xff]
      %v201 = vld [vmem:[%s172 + $0x98] sm:$0x3]
      %v202 = vpack.c.bf16 %v182, %v182
      %v203 = vpack.c.bf16 %v183, %v183
      %v204 = vpack.c.bf16 %v184, %v184
      %v205 = vpack.c.bf16 %v185, %v185
      %v206 = vpack.c.bf16 %v186, %v186
      %v207 = vpack.c.bf16 %v187, %v187
      %v208 = vpack.c.bf16 %v188, %v188
      %v209 = vpack.c.bf16 %v189, %v189
      %v210 = vpack.c.bf16 %v190, %v190
      %v211 = vpack.c.bf16 %v191, %v191
      %v212 = vpack.c.bf16 %v192, %v192
      %v213 = vpack.c.bf16 %v193, %v193
      %v214 = vpack.c.bf16 %v194, %v194
      %v215 = vpack.c.bf16 %v195, %v195
      %v216 = vpack.c.bf16 %v196, %v196
      %v217 = vpack.c.bf16 %v197, %v197
      %v218 = vpack.c.bf16 %v198, %v198
      %v219 = vpack.c.bf16 %v199, %v199
      %v220 = vpack.c.bf16 %v200, %v200
      %v221 = vpack.c.bf16 %v201, %v201
      %v222 = vld [vmem:[%s1] sm:$0xf]
      %v223 = vld [vmem:[%s1 + $0x4] sm:$0xf]
      %v224 = vld [vmem:[%s1 + $0x8] sm:$0xf]
      %v225 = vld [vmem:[%s1 + $0xc] sm:$0xf]
      %v226 = vld [vmem:[%s1 + $0x10] sm:$0xf]
      %v227 = vld [vmem:[%s1 + $0x14] sm:$0xf]
      %v228 = vld [vmem:[%s1 + $0x18] sm:$0xf]
      %v229 = vld [vmem:[%s1 + $0x1c] sm:$0xf]
      %v230 = vld [vmem:[%s1 + $0x20] sm:$0xf]
      %v231 = vld [vmem:[%s1 + $0x24] sm:$0xf]
      %v232 = vld [vmem:[%s1 + $0x28] sm:$0xf]
      %v233 = vld [vmem:[%s1 + $0x2c] sm:$0xf]
      %v234 = vld [vmem:[%s1 + $0x30] sm:$0xf]
      %v235 = vld [vmem:[%s1 + $0x34] sm:$0xf]
      %v236 = vld [vmem:[%s1 + $0x38] sm:$0xf]
      %v237 = vld [vmem:[%s1 + $0x3c] sm:$0xf]
      %vm238 = vsmask.f32 3328
      %vm239 = vsmask.f32 7440
      %vm240 = vmor %vm238, %vm239
      %v242 = vshrl.u32 %v202, 16
      %v244 = vrot.slane %v242, 4
      %v245 = vshll.u32 %v202, 16
      %v247 = vrot.slane %v245, 5
      %v248 = vor.u32 %v244, %v247
      %v249 = vrot.slane %v248, 4
      %v251 = vshll.u32 %v203, 16
      %v253 = vrot.slane %v251, 5
      %v254 = vsel %vm240, %v249, %v253
      %v256 = vshrl.u32 %v204, 16
      %v258 = vrot.slane %v256, 4
      %v259 = vshll.u32 %v204, 16
      %v261 = vrot.slane %v259, 5
      %v262 = vor.u32 %v258, %v261
      %v263 = vrot.slane %v262, 4
      %v265 = vshll.u32 %v205, 16
      %v267 = vrot.slane %v265, 5
      %v268 = vsel %vm240, %v263, %v267
      %v270 = vshrl.u32 %v206, 16
      %v272 = vrot.slane %v270, 4
      %v273 = vshll.u32 %v206, 16
      %v275 = vrot.slane %v273, 5
      %v276 = vor.u32 %v272, %v275
      %v277 = vrot.slane %v276, 4
      %v279 = vshll.u32 %v207, 16
      %v281 = vrot.slane %v279, 5
      %v282 = vsel %vm240, %v277, %v281
      %v284 = vshrl.u32 %v208, 16
      %v286 = vrot.slane %v284, 4
      %v287 = vshll.u32 %v208, 16
      %v289 = vrot.slane %v287, 5
      %v290 = vor.u32 %v286, %v289
      %v291 = vrot.slane %v290, 4
      %v293 = vshll.u32 %v209, 16
      %v295 = vrot.slane %v293, 5
      %v296 = vsel %vm240, %v291, %v295
      %v298 = vshrl.u32 %v210, 16
      %v300 = vrot.slane %v298, 4
      %v301 = vshll.u32 %v210, 16
      %v303 = vrot.slane %v301, 5
      %v304 = vor.u32 %v300, %v303
      %v305 = vrot.slane %v304, 4
      %v307 = vshll.u32 %v211, 16
      %v309 = vrot.slane %v307, 5
      %v310 = vsel %vm240, %v305, %v309
      %v312 = vshrl.u32 %v212, 16
      %v314 = vrot.slane %v312, 4
      %v315 = vshll.u32 %v212, 16
      %v317 = vrot.slane %v315, 5
      %v318 = vor.u32 %v314, %v317
      %v319 = vrot.slane %v318, 4
      %v321 = vshll.u32 %v213, 16
      %v323 = vrot.slane %v321, 5
      %v324 = vsel %vm240, %v319, %v323
      %v326 = vshrl.u32 %v214, 16
      %v328 = vrot.slane %v326, 4
      %v329 = vshll.u32 %v214, 16
      %v331 = vrot.slane %v329, 5
      %v332 = vor.u32 %v328, %v331
      %v333 = vrot.slane %v332, 4
      %v335 = vshll.u32 %v215, 16
      %v337 = vrot.slane %v335, 5
      %v338 = vsel %vm240, %v333, %v337
      %v340 = vshrl.u32 %v216, 16
      %v342 = vrot.slane %v340, 4
      %v343 = vshll.u32 %v216, 16
      %v345 = vrot.slane %v343, 5
      %v346 = vor.u32 %v342, %v345
      %v347 = vrot.slane %v346, 4
      %v349 = vshll.u32 %v217, 16
      %v351 = vrot.slane %v349, 5
      %v352 = vsel %vm240, %v347, %v351
      %s353 = scalar_lea.vmem %s1, 64
      %v354 = vld [vmem:[%s353] sm:$0xf]
      %v355 = vld [vmem:[%s353 + $0x4] sm:$0xf]
      %v356 = vld [vmem:[%s353 + $0x8] sm:$0xf]
      %v357 = vld [vmem:[%s353 + $0xc] sm:$0xf]
      %v358 = vld [vmem:[%s353 + $0x10] sm:$0xf]
      %v359 = vld [vmem:[%s353 + $0x14] sm:$0xf]
      %v360 = vld [vmem:[%s353 + $0x18] sm:$0xf]
      %v361 = vld [vmem:[%s353 + $0x1c] sm:$0xf]
      %v362 = vld [vmem:[%s353 + $0x20] sm:$0xf]
      %v363 = vld [vmem:[%s353 + $0x24] sm:$0xf]
      %v364 = vld [vmem:[%s353 + $0x28] sm:$0xf]
      %v365 = vld [vmem:[%s353 + $0x2c] sm:$0xf]
      %v366 = vld [vmem:[%s353 + $0x30] sm:$0xf]
      %v367 = vld [vmem:[%s353 + $0x34] sm:$0xf]
      %v368 = vld [vmem:[%s353 + $0x38] sm:$0xf]
      %v369 = vld [vmem:[%s353 + $0x3c] sm:$0xf]
      %v370 = vunpack.c.l.b16 %v254
      %v371 = vunpack.c.l.b16 %v268
      %v372 = vunpack.c.l.b16 %v282
      %v373 = vunpack.c.l.b16 %v296
      %v374 = vunpack.c.l.b16 %v310
      %v375 = vunpack.c.l.b16 %v324
      %v376 = vunpack.c.l.b16 %v338
      %v377 = vunpack.c.l.b16 %v352
      %v378 = vpack.c.b16 %v371, %v370
      %v379 = vpack.c.b16 %v373, %v372
      %v380 = vpack.c.b16 %v375, %v374
      %v381 = vpack.c.b16 %v377, %v376
      %v402 = vunpack.c.l.b16 %v354
      %v403 = vunpack.c.l.b16 %v355
      %v404 = vunpack.c.l.b16 %v356
      %v405 = vunpack.c.l.b16 %v357
      %v406 = vunpack.c.l.b16 %v358
      %v407 = vunpack.c.l.b16 %v359
      %v408 = vunpack.c.l.b16 %v360
      %v409 = vunpack.c.l.b16 %v361
      %v410 = vunpack.c.l.b16 %v362
      %v411 = vunpack.c.l.b16 %v363
      %v412 = vunpack.c.l.b16 %v364
      %v413 = vunpack.c.l.b16 %v365
      %v414 = vunpack.c.l.b16 %v366
      %v415 = vunpack.c.l.b16 %v367
      %v416 = vunpack.c.l.b16 %v368
      %v417 = vunpack.c.l.b16 %v369
      %v418 = vpack.c.b16 %v403, %v402
      %v419 = vpack.c.b16 %v405, %v404
      %v420 = vpack.c.b16 %v407, %v406
      %v421 = vpack.c.b16 %v409, %v408
      %v422 = vpack.c.b16 %v411, %v410
      %v423 = vpack.c.b16 %v413, %v412
      %v424 = vpack.c.b16 %v415, %v414
      %v425 = vpack.c.b16 %v417, %v416
      %434 = vmatpush.bf16.msra.mxu0 %v425
      %435 = vmatpush.bf16.msra.mxu0 %v424
      %436 = vmatpush.bf16.msra.mxu0 %v423
      %437 = vmatpush.bf16.msra.mxu0 %v422
      %438 = vmatpush.bf16.msra.mxu0 %v421
      %439 = vmatpush.bf16.msra.mxu0 %v420
      %440 = vmatpush.bf16.msra.mxu0 %v419
      %441 = vmatpush.bf16.msra.mxu0 %v418
      %442 = vmatmul.bf16.gmra.mxu0 %v378
      %v443 = vpop.f32.mrf.mxu0
      %v444 = vadd.f32 0.0, %v443
      %v445 = vpop.f32.mrf.mxu0
      %v446 = vadd.f32 0.0, %v445
      %447 = vmatmul.bf16.gmra.mxu0 %v379
      %v448 = vpop.f32.mrf.mxu0
      %v449 = vadd.f32 0.0, %v448
      %v450 = vpop.f32.mrf.mxu0
      %v451 = vadd.f32 0.0, %v450
      %452 = vmatmul.bf16.gmra.mxu0 %v380
      %v453 = vpop.f32.mrf.mxu0
      %v454 = vadd.f32 0.0, %v453
      %v455 = vpop.f32.mrf.mxu0
      %v456 = vadd.f32 0.0, %v455
      %457 = vmatmul.bf16.gmra.mxu0 %v381
      %v458 = vpop.f32.mrf.mxu0
      %v459 = vadd.f32 0.0, %v458
      %v460 = vpop.f32.mrf.mxu0
      %v461 = vadd.f32 0.0, %v460
      %462 = vdwg.mxu0
      %v471 = vunpack.c.l.b16 %v202
      %v472 = vunpack.c.l.b16 %v204
      %v473 = vunpack.c.l.b16 %v206
      %v474 = vunpack.c.l.b16 %v208
      %v475 = vunpack.c.l.b16 %v210
      %v476 = vunpack.c.l.b16 %v212
      %v477 = vunpack.c.l.b16 %v214
      %v478 = vunpack.c.l.b16 %v216
      %v479 = vpack.c.b16 %v472, %v471
      %v480 = vpack.c.b16 %v474, %v473
      %v481 = vpack.c.b16 %v476, %v475
      %v482 = vpack.c.b16 %v478, %v477
      %v503 = vunpack.c.l.b16 %v222
      %v504 = vunpack.c.l.b16 %v223
      %v505 = vunpack.c.l.b16 %v224
      %v506 = vunpack.c.l.b16 %v225
      %v507 = vunpack.c.l.b16 %v226
      %v508 = vunpack.c.l.b16 %v227
      %v509 = vunpack.c.l.b16 %v228
      %v510 = vunpack.c.l.b16 %v229
      %v511 = vunpack.c.l.b16 %v230
      %v512 = vunpack.c.l.b16 %v231
      %v513 = vunpack.c.l.b16 %v232
      %v514 = vunpack.c.l.b16 %v233
      %v515 = vunpack.c.l.b16 %v234
      %v516 = vunpack.c.l.b16 %v235
      %v517 = vunpack.c.l.b16 %v236
      %v518 = vunpack.c.l.b16 %v237
      %v519 = vpack.c.b16 %v504, %v503
      %v520 = vpack.c.b16 %v506, %v505
      %v521 = vpack.c.b16 %v508, %v507
      %v522 = vpack.c.b16 %v510, %v509
      %v523 = vpack.c.b16 %v512, %v511
      %v524 = vpack.c.b16 %v514, %v513
      %v525 = vpack.c.b16 %v516, %v515
      %v526 = vpack.c.b16 %v518, %v517
      %535 = vmatpush.bf16.msra.mxu0 %v526
      %536 = vmatpush.bf16.msra.mxu0 %v525
      %537 = vmatpush.bf16.msra.mxu0 %v524
      %538 = vmatpush.bf16.msra.mxu0 %v523
      %539 = vmatpush.bf16.msra.mxu0 %v522
      %540 = vmatpush.bf16.msra.mxu0 %v521
      %541 = vmatpush.bf16.msra.mxu0 %v520
      %542 = vmatpush.bf16.msra.mxu0 %v519
      %543 = vmatmul.bf16.gmra.mxu0 %v479
      %v544 = vpop.f32.mrf.mxu0
      %v545 = vadd.f32 %v444, %v544
      %v546 = vpop.f32.mrf.mxu0
      %v547 = vadd.f32 %v446, %v546
      %548 = vmatmul.bf16.gmra.mxu0 %v480
      %v549 = vpop.f32.mrf.mxu0
      %v550 = vadd.f32 %v449, %v549
      %v551 = vpop.f32.mrf.mxu0
      %v552 = vadd.f32 %v451, %v551
      %553 = vmatmul.bf16.gmra.mxu0 %v481
      %v554 = vpop.f32.mrf.mxu0
      %v555 = vadd.f32 %v454, %v554
      %v556 = vpop.f32.mrf.mxu0
      %v557 = vadd.f32 %v456, %v556
      %558 = vmatmul.bf16.gmra.mxu0 %v482
      %v559 = vpop.f32.mrf.mxu0
      %v560 = vadd.f32 %v459, %v559
      %v561 = vpop.f32.mrf.mxu0
      %v562 = vadd.f32 %v461, %v561
      %563 = vdwg.mxu0
      %vm572 = vcmask 1042432
      %vm573 = vcmask 1046532
      %vm574 = vmor %vm572, %vm573
      %v575 = vrot.slane %v202, 5
      %v576 = vrot.slane %v575, 4
      %v577 = vrot.slane %v203, 5
      %v578 = vsel %vm574, %v576, %v577
      %v579 = vrot.slane %v204, 5
      %v580 = vrot.slane %v579, 4
      %v581 = vrot.slane %v205, 5
      %v582 = vsel %vm574, %v580, %v581
      %v583 = vrot.slane %v206, 5
      %v584 = vrot.slane %v583, 4
      %v585 = vrot.slane %v207, 5
      %v586 = vsel %vm574, %v584, %v585
      %v587 = vrot.slane %v208, 5
      %v588 = vrot.slane %v587, 4
      %v589 = vrot.slane %v209, 5
      %v590 = vsel %vm574, %v588, %v589
      %v591 = vrot.slane %v210, 5
      %v592 = vrot.slane %v591, 4
      %v593 = vrot.slane %v211, 5
      %v594 = vsel %vm574, %v592, %v593
      %v595 = vrot.slane %v212, 5
      %v596 = vrot.slane %v595, 4
      %v597 = vrot.slane %v213, 5
      %v598 = vsel %vm574, %v596, %v597
      %v599 = vrot.slane %v214, 5
      %v600 = vrot.slane %v599, 4
      %v601 = vrot.slane %v215, 5
      %v602 = vsel %vm574, %v600, %v601
      %v603 = vrot.slane %v216, 5
      %v604 = vrot.slane %v603, 4
      %v605 = vrot.slane %v217, 5
      %v606 = vsel %vm574, %v604, %v605
      %s607 = scalar_lea.vmem %s1, 128
      %v608 = vld [vmem:[%s607] sm:$0xf]
      %v609 = vld [vmem:[%s607 + $0x4] sm:$0xf]
      %v610 = vld [vmem:[%s607 + $0x8] sm:$0xf]
      %v611 = vld [vmem:[%s607 + $0xc] sm:$0xf]
      %v612 = vld [vmem:[%s607 + $0x10] sm:$0xf]
      %v613 = vld [vmem:[%s607 + $0x14] sm:$0xf]
      %v614 = vld [vmem:[%s607 + $0x18] sm:$0xf]
      %v615 = vld [vmem:[%s607 + $0x1c] sm:$0xf]
      %v616 = vld [vmem:[%s607 + $0x20] sm:$0xf]
      %v617 = vld [vmem:[%s607 + $0x24] sm:$0xf]
      %v618 = vld [vmem:[%s607 + $0x28] sm:$0xf]
      %v619 = vld [vmem:[%s607 + $0x2c] sm:$0xf]
      %v620 = vld [vmem:[%s607 + $0x30] sm:$0xf]
      %v621 = vld [vmem:[%s607 + $0x34] sm:$0xf]
      %v622 = vld [vmem:[%s607 + $0x38] sm:$0xf]
      %v623 = vld [vmem:[%s607 + $0x3c] sm:$0xf]
      %v624 = vunpack.c.l.b16 %v578
      %v625 = vunpack.c.l.b16 %v582
      %v626 = vunpack.c.l.b16 %v586
      %v627 = vunpack.c.l.b16 %v590
      %v628 = vunpack.c.l.b16 %v594
      %v629 = vunpack.c.l.b16 %v598
      %v630 = vunpack.c.l.b16 %v602
      %v631 = vunpack.c.l.b16 %v606
      %v632 = vpack.c.b16 %v625, %v624
      %v633 = vpack.c.b16 %v627, %v626
      %v634 = vpack.c.b16 %v629, %v628
      %v635 = vpack.c.b16 %v631, %v630
      %v656 = vunpack.c.l.b16 %v608
      %v657 = vunpack.c.l.b16 %v609
      %v658 = vunpack.c.l.b16 %v610
      %v659 = vunpack.c.l.b16 %v611
      %v660 = vunpack.c.l.b16 %v612
      %v661 = vunpack.c.l.b16 %v613
      %v662 = vunpack.c.l.b16 %v614
      %v663 = vunpack.c.l.b16 %v615
      %v664 = vunpack.c.l.b16 %v616
      %v665 = vunpack.c.l.b16 %v617
      %v666 = vunpack.c.l.b16 %v618
      %v667 = vunpack.c.l.b16 %v619
      %v668 = vunpack.c.l.b16 %v620
      %v669 = vunpack.c.l.b16 %v621
      %v670 = vunpack.c.l.b16 %v622
      %v671 = vunpack.c.l.b16 %v623
      %v672 = vpack.c.b16 %v657, %v656
      %v673 = vpack.c.b16 %v659, %v658
      %v674 = vpack.c.b16 %v661, %v660
      %v675 = vpack.c.b16 %v663, %v662
      %v676 = vpack.c.b16 %v665, %v664
      %v677 = vpack.c.b16 %v667, %v666
      %v678 = vpack.c.b16 %v669, %v668
      %v679 = vpack.c.b16 %v671, %v670
      %688 = vmatpush.bf16.msra.mxu0 %v679
      %689 = vmatpush.bf16.msra.mxu0 %v678
      %690 = vmatpush.bf16.msra.mxu0 %v677
      %691 = vmatpush.bf16.msra.mxu0 %v676
      %692 = vmatpush.bf16.msra.mxu0 %v675
      %693 = vmatpush.bf16.msra.mxu0 %v674
      %694 = vmatpush.bf16.msra.mxu0 %v673
      %695 = vmatpush.bf16.msra.mxu0 %v672
      %696 = vmatmul.bf16.gmra.mxu0 %v632
      %v697 = vpop.f32.mrf.mxu0
      %v698 = vadd.f32 0.0, %v697
      %v699 = vpop.f32.mrf.mxu0
      %v700 = vadd.f32 0.0, %v699
      %701 = vmatmul.bf16.gmra.mxu0 %v633
      %v702 = vpop.f32.mrf.mxu0
      %v703 = vadd.f32 0.0, %v702
      %v704 = vpop.f32.mrf.mxu0
      %v705 = vadd.f32 0.0, %v704
      %706 = vmatmul.bf16.gmra.mxu0 %v634
      %v707 = vpop.f32.mrf.mxu0
      %v708 = vadd.f32 0.0, %v707
      %v709 = vpop.f32.mrf.mxu0
      %v710 = vadd.f32 0.0, %v709
      %711 = vmatmul.bf16.gmra.mxu0 %v635
      %v712 = vpop.f32.mrf.mxu0
      %v713 = vadd.f32 0.0, %v712
      %v714 = vpop.f32.mrf.mxu0
      %v715 = vadd.f32 0.0, %v714
      %716 = vdwg.mxu0
      %v717 = vadd.f32 %v545, %v698
      %v718 = vadd.f32 %v547, %v700
      %v719 = vadd.f32 %v550, %v703
      %v720 = vadd.f32 %v552, %v705
      %v721 = vadd.f32 %v555, %v708
      %v722 = vadd.f32 %v557, %v710
      %v723 = vadd.f32 %v560, %v713
      %v724 = vadd.f32 %v562, %v715
      %s725 = scalar_lea.vmem %s1, 192
      %v726 = vld [vmem:[%s725] sm:$0xf]
      %v727 = vld [vmem:[%s725 + $0x4] sm:$0xf]
      %v728 = vld [vmem:[%s725 + $0x8] sm:$0xf]
      %v729 = vld [vmem:[%s725 + $0xc] sm:$0xf]
      %v730 = vld [vmem:[%s725 + $0x10] sm:$0xf]
      %v731 = vld [vmem:[%s725 + $0x14] sm:$0xf]
      %v732 = vld [vmem:[%s725 + $0x18] sm:$0xf]
      %v733 = vld [vmem:[%s725 + $0x1c] sm:$0xf]
      %v734 = vld [vmem:[%s725 + $0x20] sm:$0xf]
      %v735 = vld [vmem:[%s725 + $0x24] sm:$0xf]
      %v736 = vld [vmem:[%s725 + $0x28] sm:$0xf]
      %v737 = vld [vmem:[%s725 + $0x2c] sm:$0xf]
      %v738 = vld [vmem:[%s725 + $0x30] sm:$0xf]
      %v739 = vld [vmem:[%s725 + $0x34] sm:$0xf]
      %v740 = vld [vmem:[%s725 + $0x38] sm:$0xf]
      %v741 = vld [vmem:[%s725 + $0x3c] sm:$0xf]
      %v743 = vunpack.c.l.b16 %v218
      %v744 = vpack.c.b16 %v473, %v472
      %v745 = vpack.c.b16 %v475, %v474
      %v746 = vpack.c.b16 %v477, %v476
      %v747 = vpack.c.b16 %v743, %v478
      %v768 = vunpack.c.l.b16 %v726
      %v769 = vunpack.c.l.b16 %v727
      %v770 = vunpack.c.l.b16 %v728
      %v771 = vunpack.c.l.b16 %v729
      %v772 = vunpack.c.l.b16 %v730
      %v773 = vunpack.c.l.b16 %v731
      %v774 = vunpack.c.l.b16 %v732
      %v775 = vunpack.c.l.b16 %v733
      %v776 = vunpack.c.l.b16 %v734
      %v777 = vunpack.c.l.b16 %v735
      %v778 = vunpack.c.l.b16 %v736
      %v779 = vunpack.c.l.b16 %v737
      %v780 = vunpack.c.l.b16 %v738
      %v781 = vunpack.c.l.b16 %v739
      %v782 = vunpack.c.l.b16 %v740
      %v783 = vunpack.c.l.b16 %v741
      %v784 = vpack.c.b16 %v769, %v768
      %v785 = vpack.c.b16 %v771, %v770
      %v786 = vpack.c.b16 %v773, %v772
      %v787 = vpack.c.b16 %v775, %v774
      %v788 = vpack.c.b16 %v777, %v776
      %v789 = vpack.c.b16 %v779, %v778
      %v790 = vpack.c.b16 %v781, %v780
      %v791 = vpack.c.b16 %v783, %v782
      %800 = vmatpush.bf16.msra.mxu0 %v791
      %801 = vmatpush.bf16.msra.mxu0 %v790
      %802 = vmatpush.bf16.msra.mxu0 %v789
      %803 = vmatpush.bf16.msra.mxu0 %v788
      %804 = vmatpush.bf16.msra.mxu0 %v787
      %805 = vmatpush.bf16.msra.mxu0 %v786
      %806 = vmatpush.bf16.msra.mxu0 %v785
      %807 = vmatpush.bf16.msra.mxu0 %v784
      %808 = vmatmul.bf16.gmra.mxu0 %v744
      %v809 = vpop.f32.mrf.mxu0
      %v810 = vadd.f32 0.0, %v809
      %v811 = vpop.f32.mrf.mxu0
      %v812 = vadd.f32 0.0, %v811
      %813 = vmatmul.bf16.gmra.mxu0 %v745
      %v814 = vpop.f32.mrf.mxu0
      %v815 = vadd.f32 0.0, %v814
      %v816 = vpop.f32.mrf.mxu0
      %v817 = vadd.f32 0.0, %v816
      %818 = vmatmul.bf16.gmra.mxu0 %v746
      %v819 = vpop.f32.mrf.mxu0
      %v820 = vadd.f32 0.0, %v819
      %v821 = vpop.f32.mrf.mxu0
      %v822 = vadd.f32 0.0, %v821
      %823 = vmatmul.bf16.gmra.mxu0 %v747
      %v824 = vpop.f32.mrf.mxu0
      %v825 = vadd.f32 0.0, %v824
      %v826 = vpop.f32.mrf.mxu0
      %v827 = vadd.f32 0.0, %v826
      %828 = vdwg.mxu0
      %v829 = vadd.f32 %v717, %v810
      %v830 = vadd.f32 %v718, %v812
      %v831 = vadd.f32 %v719, %v815
      %v832 = vadd.f32 %v720, %v817
      %v833 = vadd.f32 %v721, %v820
      %v834 = vadd.f32 %v722, %v822
      %v835 = vadd.f32 %v723, %v825
      %v836 = vadd.f32 %v724, %v827
      %v838 = vshrl.u32 %v218, 16
      %v840 = vrot.slane %v838, 4
      %v841 = vshll.u32 %v218, 16
      %v843 = vrot.slane %v841, 5
      %v844 = vor.u32 %v840, %v843
      %v845 = vrot.slane %v844, 4
      %v847 = vshll.u32 %v219, 16
      %v849 = vrot.slane %v847, 5
      %v850 = vsel %vm240, %v845, %v849
      %s851 = scalar_lea.vmem %s1, 256
      %v852 = vld [vmem:[%s851] sm:$0xf]
      %v853 = vld [vmem:[%s851 + $0x4] sm:$0xf]
      %v854 = vld [vmem:[%s851 + $0x8] sm:$0xf]
      %v855 = vld [vmem:[%s851 + $0xc] sm:$0xf]
      %v856 = vld [vmem:[%s851 + $0x10] sm:$0xf]
      %v857 = vld [vmem:[%s851 + $0x14] sm:$0xf]
      %v858 = vld [vmem:[%s851 + $0x18] sm:$0xf]
      %v859 = vld [vmem:[%s851 + $0x1c] sm:$0xf]
      %v860 = vld [vmem:[%s851 + $0x20] sm:$0xf]
      %v861 = vld [vmem:[%s851 + $0x24] sm:$0xf]
      %v862 = vld [vmem:[%s851 + $0x28] sm:$0xf]
      %v863 = vld [vmem:[%s851 + $0x2c] sm:$0xf]
      %v864 = vld [vmem:[%s851 + $0x30] sm:$0xf]
      %v865 = vld [vmem:[%s851 + $0x34] sm:$0xf]
      %v866 = vld [vmem:[%s851 + $0x38] sm:$0xf]
      %v867 = vld [vmem:[%s851 + $0x3c] sm:$0xf]
      %v868 = vunpack.c.l.b16 %v850
      %v869 = vpack.c.b16 %v372, %v371
      %v870 = vpack.c.b16 %v374, %v373
      %v871 = vpack.c.b16 %v376, %v375
      %v872 = vpack.c.b16 %v868, %v377
      %v893 = vunpack.c.l.b16 %v852
      %v894 = vunpack.c.l.b16 %v853
      %v895 = vunpack.c.l.b16 %v854
      %v896 = vunpack.c.l.b16 %v855
      %v897 = vunpack.c.l.b16 %v856
      %v898 = vunpack.c.l.b16 %v857
      %v899 = vunpack.c.l.b16 %v858
      %v900 = vunpack.c.l.b16 %v859
      %v901 = vunpack.c.l.b16 %v860
      %v902 = vunpack.c.l.b16 %v861
      %v903 = vunpack.c.l.b16 %v862
      %v904 = vunpack.c.l.b16 %v863
      %v905 = vunpack.c.l.b16 %v864
      %v906 = vunpack.c.l.b16 %v865
      %v907 = vunpack.c.l.b16 %v866
      %v908 = vunpack.c.l.b16 %v867
      %v909 = vpack.c.b16 %v894, %v893
      %v910 = vpack.c.b16 %v896, %v895
      %v911 = vpack.c.b16 %v898, %v897
      %v912 = vpack.c.b16 %v900, %v899
      %v913 = vpack.c.b16 %v902, %v901
      %v914 = vpack.c.b16 %v904, %v903
      %v915 = vpack.c.b16 %v906, %v905
      %v916 = vpack.c.b16 %v908, %v907
      %925 = vmatpush.bf16.msra.mxu0 %v916
      %926 = vmatpush.bf16.msra.mxu0 %v915
      %927 = vmatpush.bf16.msra.mxu0 %v914
      %928 = vmatpush.bf16.msra.mxu0 %v913
      %929 = vmatpush.bf16.msra.mxu0 %v912
      %930 = vmatpush.bf16.msra.mxu0 %v911
      %931 = vmatpush.bf16.msra.mxu0 %v910
      %932 = vmatpush.bf16.msra.mxu0 %v909
      %933 = vmatmul.bf16.gmra.mxu0 %v869
      %v934 = vpop.f32.mrf.mxu0
      %v935 = vadd.f32 0.0, %v934
      %v936 = vpop.f32.mrf.mxu0
      %v937 = vadd.f32 0.0, %v936
      %938 = vmatmul.bf16.gmra.mxu0 %v870
      %v939 = vpop.f32.mrf.mxu0
      %v940 = vadd.f32 0.0, %v939
      %v941 = vpop.f32.mrf.mxu0
      %v942 = vadd.f32 0.0, %v941
      %943 = vmatmul.bf16.gmra.mxu0 %v871
      %v944 = vpop.f32.mrf.mxu0
      %v945 = vadd.f32 0.0, %v944
      %v946 = vpop.f32.mrf.mxu0
      %v947 = vadd.f32 0.0, %v946
      %948 = vmatmul.bf16.gmra.mxu0 %v872
      %v949 = vpop.f32.mrf.mxu0
      %v950 = vadd.f32 0.0, %v949
      %v951 = vpop.f32.mrf.mxu0
      %v952 = vadd.f32 0.0, %v951
      %953 = vdwg.mxu0
      %v954 = vadd.f32 %v829, %v935
      %v955 = vadd.f32 %v830, %v937
      %v956 = vadd.f32 %v831, %v940
      %v957 = vadd.f32 %v832, %v942
      %v958 = vadd.f32 %v833, %v945
      %v959 = vadd.f32 %v834, %v947
      %v960 = vadd.f32 %v835, %v950
      %v961 = vadd.f32 %v836, %v952
      %v963 = vrot.slane %v218, 5
      %v964 = vrot.slane %v963, 4
      %v965 = vrot.slane %v219, 5
      %v966 = vsel %vm574, %v964, %v965
      %s967 = scalar_lea.vmem %s1, 320
      %v968 = vld [vmem:[%s967] sm:$0xf]
      %v969 = vld [vmem:[%s967 + $0x4] sm:$0xf]
      %v970 = vld [vmem:[%s967 + $0x8] sm:$0xf]
      %v971 = vld [vmem:[%s967 + $0xc] sm:$0xf]
      %v972 = vld [vmem:[%s967 + $0x10] sm:$0xf]
      %v973 = vld [vmem:[%s967 + $0x14] sm:$0xf]
      %v974 = vld [vmem:[%s967 + $0x18] sm:$0xf]
      %v975 = vld [vmem:[%s967 + $0x1c] sm:$0xf]
      %v976 = vld [vmem:[%s967 + $0x20] sm:$0xf]
      %v977 = vld [vmem:[%s967 + $0x24] sm:$0xf]
      %v978 = vld [vmem:[%s967 + $0x28] sm:$0xf]
      %v979 = vld [vmem:[%s967 + $0x2c] sm:$0xf]
      %v980 = vld [vmem:[%s967 + $0x30] sm:$0xf]
      %v981 = vld [vmem:[%s967 + $0x34] sm:$0xf]
      %v982 = vld [vmem:[%s967 + $0x38] sm:$0xf]
      %v983 = vld [vmem:[%s967 + $0x3c] sm:$0xf]
      %v984 = vunpack.c.l.b16 %v966
      %v985 = vpack.c.b16 %v626, %v625
      %v986 = vpack.c.b16 %v628, %v627
      %v987 = vpack.c.b16 %v630, %v629
      %v988 = vpack.c.b16 %v984, %v631
      %v1009 = vunpack.c.l.b16 %v968
      %v1010 = vunpack.c.l.b16 %v969
      %v1011 = vunpack.c.l.b16 %v970
      %v1012 = vunpack.c.l.b16 %v971
      %v1013 = vunpack.c.l.b16 %v972
      %v1014 = vunpack.c.l.b16 %v973
      %v1015 = vunpack.c.l.b16 %v974
      %v1016 = vunpack.c.l.b16 %v975
      %v1017 = vunpack.c.l.b16 %v976
      %v1018 = vunpack.c.l.b16 %v977
      %v1019 = vunpack.c.l.b16 %v978
      %v1020 = vunpack.c.l.b16 %v979
      %v1021 = vunpack.c.l.b16 %v980
      %v1022 = vunpack.c.l.b16 %v981
      %v1023 = vunpack.c.l.b16 %v982
      %v1024 = vunpack.c.l.b16 %v983
      %v1025 = vpack.c.b16 %v1010, %v1009
      %v1026 = vpack.c.b16 %v1012, %v1011
      %v1027 = vpack.c.b16 %v1014, %v1013
      %v1028 = vpack.c.b16 %v1016, %v1015
      %v1029 = vpack.c.b16 %v1018, %v1017
      %v1030 = vpack.c.b16 %v1020, %v1019
      %v1031 = vpack.c.b16 %v1022, %v1021
      %v1032 = vpack.c.b16 %v1024, %v1023
      %1041 = vmatpush.bf16.msra.mxu0 %v1032
      %1042 = vmatpush.bf16.msra.mxu0 %v1031
      %1043 = vmatpush.bf16.msra.mxu0 %v1030
      %1044 = vmatpush.bf16.msra.mxu0 %v1029
      %1045 = vmatpush.bf16.msra.mxu0 %v1028
      %1046 = vmatpush.bf16.msra.mxu0 %v1027
      %1047 = vmatpush.bf16.msra.mxu0 %v1026
      %1048 = vmatpush.bf16.msra.mxu0 %v1025
      %1049 = vmatmul.bf16.gmra.mxu0 %v985
      %v1050 = vpop.f32.mrf.mxu0
      %v1051 = vadd.f32 0.0, %v1050
      %v1052 = vpop.f32.mrf.mxu0
      %v1053 = vadd.f32 0.0, %v1052
      %1054 = vmatmul.bf16.gmra.mxu0 %v986
      %v1055 = vpop.f32.mrf.mxu0
      %v1056 = vadd.f32 0.0, %v1055
      %v1057 = vpop.f32.mrf.mxu0
      %v1058 = vadd.f32 0.0, %v1057
      %1059 = vmatmul.bf16.gmra.mxu0 %v987
      %v1060 = vpop.f32.mrf.mxu0
      %v1061 = vadd.f32 0.0, %v1060
      %v1062 = vpop.f32.mrf.mxu0
      %v1063 = vadd.f32 0.0, %v1062
      %1064 = vmatmul.bf16.gmra.mxu0 %v988
      %v1065 = vpop.f32.mrf.mxu0
      %v1066 = vadd.f32 0.0, %v1065
      %v1067 = vpop.f32.mrf.mxu0
      %v1068 = vadd.f32 0.0, %v1067
      %1069 = vdwg.mxu0
      %v1070 = vadd.f32 %v954, %v1051
      %v1071 = vadd.f32 %v955, %v1053
      %v1072 = vadd.f32 %v956, %v1056
      %v1073 = vadd.f32 %v957, %v1058
      %v1074 = vadd.f32 %v958, %v1061
      %v1075 = vadd.f32 %v959, %v1063
      %v1076 = vadd.f32 %v960, %v1066
      %v1077 = vadd.f32 %v961, %v1068
      %s1078 = scalar_lea.vmem %s1, 384
      %v1079 = vld [vmem:[%s1078] sm:$0xf]
      %v1080 = vld [vmem:[%s1078 + $0x4] sm:$0xf]
      %v1081 = vld [vmem:[%s1078 + $0x8] sm:$0xf]
      %v1082 = vld [vmem:[%s1078 + $0xc] sm:$0xf]
      %v1083 = vld [vmem:[%s1078 + $0x10] sm:$0xf]
      %v1084 = vld [vmem:[%s1078 + $0x14] sm:$0xf]
      %v1085 = vld [vmem:[%s1078 + $0x18] sm:$0xf]
      %v1086 = vld [vmem:[%s1078 + $0x1c] sm:$0xf]
      %v1087 = vld [vmem:[%s1078 + $0x20] sm:$0xf]
      %v1088 = vld [vmem:[%s1078 + $0x24] sm:$0xf]
      %v1089 = vld [vmem:[%s1078 + $0x28] sm:$0xf]
      %v1090 = vld [vmem:[%s1078 + $0x2c] sm:$0xf]
      %v1091 = vld [vmem:[%s1078 + $0x30] sm:$0xf]
      %v1092 = vld [vmem:[%s1078 + $0x34] sm:$0xf]
      %v1093 = vld [vmem:[%s1078 + $0x38] sm:$0xf]
      %v1094 = vld [vmem:[%s1078 + $0x3c] sm:$0xf]
      %v1096 = vunpack.c.l.b16 %v220
      %v1097 = vpack.c.b16 %v1096, %v743
      %v1115 = vunpack.c.l.b16 %v1079
      %v1116 = vunpack.c.l.b16 %v1080
      %v1117 = vunpack.c.l.b16 %v1081
      %v1118 = vunpack.c.l.b16 %v1082
      %v1119 = vunpack.c.l.b16 %v1083
      %v1120 = vunpack.c.l.b16 %v1084
      %v1121 = vunpack.c.l.b16 %v1085
      %v1122 = vunpack.c.l.b16 %v1086
      %v1123 = vunpack.c.l.b16 %v1087
      %v1124 = vunpack.c.l.b16 %v1088
      %v1125 = vunpack.c.l.b16 %v1089
      %v1126 = vunpack.c.l.b16 %v1090
      %v1127 = vunpack.c.l.b16 %v1091
      %v1128 = vunpack.c.l.b16 %v1092
      %v1129 = vunpack.c.l.b16 %v1093
      %v1130 = vunpack.c.l.b16 %v1094
      %v1131 = vpack.c.b16 %v1116, %v1115
      %v1132 = vpack.c.b16 %v1118, %v1117
      %v1133 = vpack.c.b16 %v1120, %v1119
      %v1134 = vpack.c.b16 %v1122, %v1121
      %v1135 = vpack.c.b16 %v1124, %v1123
      %v1136 = vpack.c.b16 %v1126, %v1125
      %v1137 = vpack.c.b16 %v1128, %v1127
      %v1138 = vpack.c.b16 %v1130, %v1129
      %1147 = vmatpush.bf16.msra.mxu0 %v1138
      %1148 = vmatpush.bf16.msra.mxu0 %v1137
      %1149 = vmatpush.bf16.msra.mxu0 %v1136
      %1150 = vmatpush.bf16.msra.mxu0 %v1135
      %1151 = vmatpush.bf16.msra.mxu0 %v1134
      %1152 = vmatpush.bf16.msra.mxu0 %v1133
      %1153 = vmatpush.bf16.msra.mxu0 %v1132
      %1154 = vmatpush.bf16.msra.mxu0 %v1131
      %1155 = vmatmul.bf16.gmra.mxu0 %v480
      %v1156 = vpop.f32.mrf.mxu0
      %v1157 = vadd.f32 0.0, %v1156
      %v1158 = vpop.f32.mrf.mxu0
      %v1159 = vadd.f32 0.0, %v1158
      %1160 = vmatmul.bf16.gmra.mxu0 %v481
      %v1161 = vpop.f32.mrf.mxu0
      %v1162 = vadd.f32 0.0, %v1161
      %v1163 = vpop.f32.mrf.mxu0
      %v1164 = vadd.f32 0.0, %v1163
      %1165 = vmatmul.bf16.gmra.mxu0 %v482
      %v1166 = vpop.f32.mrf.mxu0
      %v1167 = vadd.f32 0.0, %v1166
      %v1168 = vpop.f32.mrf.mxu0
      %v1169 = vadd.f32 0.0, %v1168
      %1170 = vmatmul.bf16.gmra.mxu0 %v1097
      %v1171 = vpop.f32.mrf.mxu0
      %v1172 = vadd.f32 0.0, %v1171
      %v1173 = vpop.f32.mrf.mxu0
      %v1174 = vadd.f32 0.0, %v1173
      %1175 = vdwg.mxu0
      %v1176 = vadd.f32 %v1070, %v1157
      %v1177 = vadd.f32 %v1071, %v1159
      %v1178 = vadd.f32 %v1072, %v1162
      %v1179 = vadd.f32 %v1073, %v1164
      %v1180 = vadd.f32 %v1074, %v1167
      %v1181 = vadd.f32 %v1075, %v1169
      %v1182 = vadd.f32 %v1076, %v1172
      %v1183 = vadd.f32 %v1077, %v1174
      %v1185 = vshrl.u32 %v220, 16
      %v1187 = vrot.slane %v1185, 4
      %v1188 = vshll.u32 %v220, 16
      %v1190 = vrot.slane %v1188, 5
      %v1191 = vor.u32 %v1187, %v1190
      %v1192 = vrot.slane %v1191, 4
      %v1194 = vshll.u32 %v221, 16
      %v1196 = vrot.slane %v1194, 5
      %v1197 = vsel %vm240, %v1192, %v1196
      %s1198 = scalar_lea.vmem %s1, 448
      %v1199 = vld [vmem:[%s1198] sm:$0xf]
      %v1200 = vld [vmem:[%s1198 + $0x4] sm:$0xf]
      %v1201 = vld [vmem:[%s1198 + $0x8] sm:$0xf]
      %v1202 = vld [vmem:[%s1198 + $0xc] sm:$0xf]
      %v1203 = vld [vmem:[%s1198 + $0x10] sm:$0xf]
      %v1204 = vld [vmem:[%s1198 + $0x14] sm:$0xf]
      %v1205 = vld [vmem:[%s1198 + $0x18] sm:$0xf]
      %v1206 = vld [vmem:[%s1198 + $0x1c] sm:$0xf]
      %v1207 = vld [vmem:[%s1198 + $0x20] sm:$0xf]
      %v1208 = vld [vmem:[%s1198 + $0x24] sm:$0xf]
      %v1209 = vld [vmem:[%s1198 + $0x28] sm:$0xf]
      %v1210 = vld [vmem:[%s1198 + $0x2c] sm:$0xf]
      %v1211 = vld [vmem:[%s1198 + $0x30] sm:$0xf]
      %v1212 = vld [vmem:[%s1198 + $0x34] sm:$0xf]
      %v1213 = vld [vmem:[%s1198 + $0x38] sm:$0xf]
      %v1214 = vld [vmem:[%s1198 + $0x3c] sm:$0xf]
      %v1215 = vunpack.c.l.b16 %v1197
      %v1216 = vpack.c.b16 %v1215, %v868
      %v1234 = vunpack.c.l.b16 %v1199
      %v1235 = vunpack.c.l.b16 %v1200
      %v1236 = vunpack.c.l.b16 %v1201
      %v1237 = vunpack.c.l.b16 %v1202
      %v1238 = vunpack.c.l.b16 %v1203
      %v1239 = vunpack.c.l.b16 %v1204
      %v1240 = vunpack.c.l.b16 %v1205
      %v1241 = vunpack.c.l.b16 %v1206
      %v1242 = vunpack.c.l.b16 %v1207
      %v1243 = vunpack.c.l.b16 %v1208
      %v1244 = vunpack.c.l.b16 %v1209
      %v1245 = vunpack.c.l.b16 %v1210
      %v1246 = vunpack.c.l.b16 %v1211
      %v1247 = vunpack.c.l.b16 %v1212
      %v1248 = vunpack.c.l.b16 %v1213
      %v1249 = vunpack.c.l.b16 %v1214
      %v1250 = vpack.c.b16 %v1235, %v1234
      %v1251 = vpack.c.b16 %v1237, %v1236
      %v1252 = vpack.c.b16 %v1239, %v1238
      %v1253 = vpack.c.b16 %v1241, %v1240
      %v1254 = vpack.c.b16 %v1243, %v1242
      %v1255 = vpack.c.b16 %v1245, %v1244
      %v1256 = vpack.c.b16 %v1247, %v1246
      %v1257 = vpack.c.b16 %v1249, %v1248
      %1266 = vmatpush.bf16.msra.mxu0 %v1257
      %1267 = vmatpush.bf16.msra.mxu0 %v1256
      %1268 = vmatpush.bf16.msra.mxu0 %v1255
      %1269 = vmatpush.bf16.msra.mxu0 %v1254
      %1270 = vmatpush.bf16.msra.mxu0 %v1253
      %1271 = vmatpush.bf16.msra.mxu0 %v1252
      %1272 = vmatpush.bf16.msra.mxu0 %v1251
      %1273 = vmatpush.bf16.msra.mxu0 %v1250
      %1274 = vmatmul.bf16.gmra.mxu0 %v379
      %v1275 = vpop.f32.mrf.mxu0
      %v1276 = vadd.f32 0.0, %v1275
      %v1277 = vpop.f32.mrf.mxu0
      %v1278 = vadd.f32 0.0, %v1277
      %1279 = vmatmul.bf16.gmra.mxu0 %v380
      %v1280 = vpop.f32.mrf.mxu0
      %v1281 = vadd.f32 0.0, %v1280
      %v1282 = vpop.f32.mrf.mxu0
      %v1283 = vadd.f32 0.0, %v1282
      %1284 = vmatmul.bf16.gmra.mxu0 %v381
      %v1285 = vpop.f32.mrf.mxu0
      %v1286 = vadd.f32 0.0, %v1285
      %v1287 = vpop.f32.mrf.mxu0
      %v1288 = vadd.f32 0.0, %v1287
      %1289 = vmatmul.bf16.gmra.mxu0 %v1216
      %v1290 = vpop.f32.mrf.mxu0
      %v1291 = vadd.f32 0.0, %v1290
      %v1292 = vpop.f32.mrf.mxu0
      %v1293 = vadd.f32 0.0, %v1292
      %1294 = vdwg.mxu0
      %v1295 = vadd.f32 %v1176, %v1276
      %v1296 = vadd.f32 %v1177, %v1278
      %v1297 = vadd.f32 %v1178, %v1281
      %v1298 = vadd.f32 %v1179, %v1283
      %v1299 = vadd.f32 %v1180, %v1286
      %v1300 = vadd.f32 %v1181, %v1288
      %v1301 = vadd.f32 %v1182, %v1291
      %v1302 = vadd.f32 %v1183, %v1293
      %v1304 = vrot.slane %v220, 5
      %v1305 = vrot.slane %v1304, 4
      %v1306 = vrot.slane %v221, 5
      %v1307 = vsel %vm574, %v1305, %v1306
      %s1308 = scalar_lea.vmem %s1, 512
      %v1309 = vld [vmem:[%s1308] sm:$0xf]
      %v1310 = vld [vmem:[%s1308 + $0x4] sm:$0xf]
      %v1311 = vld [vmem:[%s1308 + $0x8] sm:$0xf]
      %v1312 = vld [vmem:[%s1308 + $0xc] sm:$0xf]
      %v1313 = vld [vmem:[%s1308 + $0x10] sm:$0xf]
      %v1314 = vld [vmem:[%s1308 + $0x14] sm:$0xf]
      %v1315 = vld [vmem:[%s1308 + $0x18] sm:$0xf]
      %v1316 = vld [vmem:[%s1308 + $0x1c] sm:$0xf]
      %v1317 = vld [vmem:[%s1308 + $0x20] sm:$0xf]
      %v1318 = vld [vmem:[%s1308 + $0x24] sm:$0xf]
      %v1319 = vld [vmem:[%s1308 + $0x28] sm:$0xf]
      %v1320 = vld [vmem:[%s1308 + $0x2c] sm:$0xf]
      %v1321 = vld [vmem:[%s1308 + $0x30] sm:$0xf]
      %v1322 = vld [vmem:[%s1308 + $0x34] sm:$0xf]
      %v1323 = vld [vmem:[%s1308 + $0x38] sm:$0xf]
      %v1324 = vld [vmem:[%s1308 + $0x3c] sm:$0xf]
      %v1325 = vunpack.c.l.b16 %v1307
      %v1326 = vpack.c.b16 %v1325, %v984
      %v1344 = vunpack.c.l.b16 %v1309
      %v1345 = vunpack.c.l.b16 %v1310
      %v1346 = vunpack.c.l.b16 %v1311
      %v1347 = vunpack.c.l.b16 %v1312
      %v1348 = vunpack.c.l.b16 %v1313
      %v1349 = vunpack.c.l.b16 %v1314
      %v1350 = vunpack.c.l.b16 %v1315
      %v1351 = vunpack.c.l.b16 %v1316
      %v1352 = vunpack.c.l.b16 %v1317
      %v1353 = vunpack.c.l.b16 %v1318
      %v1354 = vunpack.c.l.b16 %v1319
      %v1355 = vunpack.c.l.b16 %v1320
      %v1356 = vunpack.c.l.b16 %v1321
      %v1357 = vunpack.c.l.b16 %v1322
      %v1358 = vunpack.c.l.b16 %v1323
      %v1359 = vunpack.c.l.b16 %v1324
      %v1360 = vpack.c.b16 %v1345, %v1344
      %v1361 = vpack.c.b16 %v1347, %v1346
      %v1362 = vpack.c.b16 %v1349, %v1348
      %v1363 = vpack.c.b16 %v1351, %v1350
      %v1364 = vpack.c.b16 %v1353, %v1352
      %v1365 = vpack.c.b16 %v1355, %v1354
      %v1366 = vpack.c.b16 %v1357, %v1356
      %v1367 = vpack.c.b16 %v1359, %v1358
      %1376 = vmatpush.bf16.msra.mxu0 %v1367
      %1377 = vmatpush.bf16.msra.mxu0 %v1366
      %1378 = vmatpush.bf16.msra.mxu0 %v1365
      %1379 = vmatpush.bf16.msra.mxu0 %v1364
      %1380 = vmatpush.bf16.msra.mxu0 %v1363
      %1381 = vmatpush.bf16.msra.mxu0 %v1362
      %1382 = vmatpush.bf16.msra.mxu0 %v1361
      %1383 = vmatpush.bf16.msra.mxu0 %v1360
      %1384 = vmatmul.bf16.gmra.mxu0 %v633
      %v1385 = vpop.f32.mrf.mxu0
      %v1386 = vadd.f32 0.0, %v1385
      %v1387 = vpop.f32.mrf.mxu0
      %v1388 = vadd.f32 0.0, %v1387
      %1389 = vmatmul.bf16.gmra.mxu0 %v634
      %v1390 = vpop.f32.mrf.mxu0
      %v1391 = vadd.f32 0.0, %v1390
      %v1392 = vpop.f32.mrf.mxu0
      %v1393 = vadd.f32 0.0, %v1392
      %1394 = vmatmul.bf16.gmra.mxu0 %v635
      %v1395 = vpop.f32.mrf.mxu0
      %v1396 = vadd.f32 0.0, %v1395
      %v1397 = vpop.f32.mrf.mxu0
      %v1398 = vadd.f32 0.0, %v1397
      %1399 = vmatmul.bf16.gmra.mxu0 %v1326
      %v1400 = vpop.f32.mrf.mxu0
      %v1401 = vadd.f32 0.0, %v1400
      %v1402 = vpop.f32.mrf.mxu0
      %v1403 = vadd.f32 0.0, %v1402
      %1404 = vdwg.mxu0
      %v1405 = vadd.f32 %v1295, %v1386
      %v1406 = vadd.f32 %v1296, %v1388
      %v1407 = vadd.f32 %v1297, %v1391
      %v1408 = vadd.f32 %v1298, %v1393
      %v1409 = vadd.f32 %v1299, %v1396
      %v1410 = vadd.f32 %v1300, %v1398
      %v1411 = vadd.f32 %v1301, %v1401
      %v1412 = vadd.f32 %v1302, %v1403
      %1413 = vst [vmem:[%s177] sm:$0xff] %v1405
      %1414 = vst [vmem:[%s177 + $0x8] sm:$0xff] %v1406
      %1415 = vst [vmem:[%s177 + $0x10] sm:$0xff] %v1407
      %1416 = vst [vmem:[%s177 + $0x18] sm:$0xff] %v1408
      %1417 = vst [vmem:[%s177 + $0x20] sm:$0xff] %v1409
      %1418 = vst [vmem:[%s177 + $0x28] sm:$0xff] %v1410
      %1419 = vst [vmem:[%s177 + $0x30] sm:$0xff] %v1411
      %1420 = vst [vmem:[%s177 + $0x38] sm:$0xff] %v1412
      %v1421 = vadd.f32 %v1405, %v1406
      %v1422 = vadd.f32 %v1421, %v1407
      %v1423 = vadd.f32 %v1422, %v1408
      %v1424 = vadd.f32 %v1423, %v1409
      %v1425 = vadd.f32 %v1424, %v1410
      %v1426 = vadd.f32 %v1425, %v1411
      %v1427 = vadd.f32 %v1426, %v1412
      %v1428 = vrot.slane %v1427, 4
      %v1429 = vadd.f32 %v1427, %v1428
      %v1430 = vrot.slane %v1429, 2
      %v1431 = vadd.f32 %v1429, %v1430
      %v1432 = vrot.slane %v1431, 1
      %v1433 = vadd.f32 %v1431, %v1432
      %v1434 = vmul.f32 %v1405, %v1405
      %v1435 = vmul.f32 %v1406, %v1406
      %v1436 = vmul.f32 %v1407, %v1407
      %v1437 = vmul.f32 %v1408, %v1408
      %v1438 = vmul.f32 %v1409, %v1409
      %v1439 = vmul.f32 %v1410, %v1410
      %v1440 = vmul.f32 %v1411, %v1411
      %v1441 = vmul.f32 %v1412, %v1412
      %v1442 = vadd.f32 %v1434, %v1435
      %v1443 = vadd.f32 %v1442, %v1436
      %v1444 = vadd.f32 %v1443, %v1437
      %v1445 = vadd.f32 %v1444, %v1438
      %v1446 = vadd.f32 %v1445, %v1439
      %v1447 = vadd.f32 %v1446, %v1440
      %v1448 = vadd.f32 %v1447, %v1441
      %v1449 = vrot.slane %v1448, 4
      %v1450 = vadd.f32 %v1448, %v1449
      %v1451 = vrot.slane %v1450, 2
      %v1452 = vadd.f32 %v1450, %v1451
      %v1453 = vrot.slane %v1452, 1
      %v1454 = vadd.f32 %v1452, %v1453
      %vm1455 = vcmask 1040384
      %v1456 = vsel %vm1455, %v1433, %v1454
      %vm1457 = vcmask 1041408
      %v1458 = vsel %vm1457, %v1456, 0.0
      %1459 = vst [vmem:[%s181] sm:$0xff] %v1458
      %p1460 = scmp.lt.s32.totalorder %s15, 1
      %s1461 = scalar_select %p1460, %s15, 1
      %s1462 = smul.addr %s1461, 8
      %s1463 = smul.addr %s1462, 8
      %s1464 = scalar_lea.vmem %s2, %s1463
      %p1465 = scmp.lt.s32.totalorder %s15, 1
      %s1466 = scalar_select %p1465, %s15, 1
      %s1467 = smul.addr %s1466, 8
      %s1468 = scalar_lea.vmem %s3, %s1467
      // Predicated region
      $region29: #{frru_forward.4} parent=27 // pred_check
        %p1469 = pneg %p80
      $region30: #{frru_forward.4} parent=27 // pred_check_branch
        %1471 = sbr.rel (%p1469) target = $region32
      $region31: #{frru_forward.4} parent=27 // pred_region
        _
      $region32: #{frru_forward.4} parent=27 // pred_fallthru
        _
      // Predicated region
      $region33: #{frru_forward.4} parent=27 // pred_check
        %p1472 = pneg %p106
      $region34: #{frru_forward.4} parent=27 // pred_check_branch
        %1474 = sbr.rel (%p1472) target = $region36
      $region35: #{frru_forward.4} parent=27 // pred_region
        _
      $region36: #{frru_forward.4} parent=27 // pred_fallthru
        _
    $region28: #{frru_forward.4} parent=5 // pred_fallthru
      _
    %p1475 = scmp.le.s32.totalorder 2, %s10
    // Predicated region
    $region37: #{frru_forward.4} parent=5 // pred_check
      %p1476 = pneg %p1475
    $region38: #{frru_forward.4} parent=5 // pred_check_branch
      %1478 = sbr.rel (%p1476) target = $region40
    $region39: #{frru_forward.4} parent=5 // pred_region
      %s1479 = ssub.s32 %s10, 2
      // Predicated region
      $region41: #{frru_forward.4} parent=39 // pred_check
        %p1480 = pneg %p86
      $region42: #{frru_forward.4} parent=39 // pred_check_branch
        %1482 = sbr.rel (%p1480) target = $region44
      $region43: #{frru_forward.4} parent=39 // pred_region
        %p1483 = scmp.lt.s32.totalorder %s16, 1
        %s1484 = scalar_select %p1483, %s16, 1
        %s1485 = smul.addr %s1484, 8
        %s1486 = smul.addr %s1485, 8
        %s1487 = scalar_lea.vmem %s2, %s1486
      $region44: #{frru_forward.4} parent=39 // pred_fallthru
        _
      // Predicated region
      $region45: #{frru_forward.4} parent=39 // pred_check
        %p1488 = pneg %p112
      $region46: #{frru_forward.4} parent=39 // pred_check_branch
        %1490 = sbr.rel (%p1488) target = $region48
      $region47: #{frru_forward.4} parent=39 // pred_region
        %p1491 = scmp.lt.s32.totalorder %s16, 1
        %s1492 = scalar_select %p1491, %s16, 1
        %s1493 = smul.addr %s1492, 8
        %s1494 = scalar_lea.vmem %s3, %s1493
      $region48: #{frru_forward.4} parent=39 // pred_fallthru
        _
    $region40: #{frru_forward.4} parent=5 // pred_fallthru
      _
  $region6: #{frru_forward.4} parent=0 // loop_footer
    %s14 = sadd.s32 1, %s10
  $region7: #{frru_forward.4} parent=0 // loop_footer_branch
    %9 = sbr.rel target = $region3
  $region8: #{frru_forward.4} parent=0 // loop_exit
    _

// kernel: frru_forward.5
$region0: #{frru_forward.5}
  #allocation0 [shape = 'u32[]', space=smem, size = 0x4, offset = 0x4, fixed_abs, tag = 'smem constant byte address 0x4 - core index']
  #allocation1 [shape = 'u32[72,128]{1,0:T(1,128)}', space=vmem, size = 0x9000, scoped, tag = 'internal scratch']
  %s0 = inlined_call_operand.vmem [shape: f32[2,10,10,128], index: 0, kind: input, shape index: {}]
  %s1 = inlined_call_operand.vmem [shape: f32[1,1,128], index: 1, kind: input, shape index: {}]
  %s2 = inlined_call_operand.vmem [shape: f32[1,1,128], index: 2, kind: input, shape index: {}]
  %s3 = inlined_call_operand.vmem [shape: bf16[9,128,128], index: 3, kind: input, shape index: {}]
  %s4 = inlined_call_operand.vmem [shape: f32[2,8,8,128], index: 4, kind: output, shape index: {0}]
  %s5 = inlined_call_operand.vmem [shape: f32[2,8,128], index: 5, kind: output, shape index: {1}]
  %6 = xla_tuple %s4, %s5
  %s7 = sld [smem:[#allocation0]]
  $region57: #{frru_forward.5} parent=0
    _
  %s9 = ssub.s32 1, %s7
  %s10 = scalar_select 0, %s9, %s7
  loop: start=0, step=1, limit=4
  $region2: #{frru_forward.5} parent=0 // loop_pre_header
    _
  $region3: #{frru_forward.5} parent=0 // loop_header
    %s12 = sphi 0, %s16
    %p13 = scmp.ge.s32.totalorder %s12, 4
    %s22 = sphi 0, %s24
    %s25 = sphi 0, %s22
    %s26 = sphi 0, %s25
    %s42 = sphi 0, %s26
    %s46 = sphi 0, %s46
    %s48 = sphi 0, %s46
    %s49 = sphi 0, %s48
    %s63 = sphi 0, %s49
    %s67 = sphi 0, %s67
    %s69 = sphi 0, %s67
    %s70 = sphi 0, %s69
    %s84 = sphi 0, %s70
    %s88 = sphi 0, %s88
    %s90 = sphi 0, %s88
    %s91 = sphi 0, %s90
    %s105 = sphi 0, %s91
    %s111 = sphi 0, %s113
    %s114 = sphi 0, %s111
    %s115 = sphi 0, %s114
    %s131 = sphi 0, %s115
    %s137 = sphi 0, %s139
    %s140 = sphi 0, %s137
    %s141 = sphi 0, %s140
    %s157 = sphi 0, %s141
  $region4: #{frru_forward.5} parent=0 // loop_header_branch
    %15 = sbr.rel (%p13) target = $region8
  $region5: #{frru_forward.5} parent=0 // loop_body
    %s17 = ssub.s32 %s12, 1
    %s18 = ssub.s32 %s12, 2
    %s19 = sadd.s32 %s12, 1
    %s20 = ssub.s32 %s12, %s19
    %p21 = scmp.eq.s32.totalorder %s20, 0
    %s23 = sadd.s32 %s22, 1
    %s24 = scalar_select %p21, %s22, %s23
    %p27 = pneg %p21
    %p28 = scmp.eq.s32.totalorder %s12, 1
    %p29 = por %p27, %p28
    %p30 = scmp.ne.s32.totalorder %s22, %s25
    %p31 = scmp.eq.s32.totalorder %s12, 0
    %p32 = por %p30, %p31
    %p33 = scmp.ne.s32.totalorder %s22, %s25
    %p34 = scmp.eq.s32.totalorder %s17, 1
    %p35 = por %p33, %p34
    %p36 = scmp.ne.s32.totalorder %s25, %s26
    %p37 = scmp.eq.s32.totalorder %s17, 0
    %p38 = por %p36, %p37
    %p39 = scmp.ne.s32.totalorder %s25, %s26
    %p40 = scmp.eq.s32.totalorder %s18, 1
    %p41 = por %p39, %p40
    %p43 = scmp.ne.s32.totalorder %s26, %s42
    %p44 = scmp.eq.s32.totalorder %s18, 0
    %p45 = por %p43, %p44
    %s47 = sadd.s32 %s46, 1
    %p50 = scmp.eq.s32.totalorder %s12, 1
    %p51 = scmp.ne.s32.totalorder %s46, %s48
    %p52 = scmp.eq.s32.totalorder %s12, 0
    %p53 = por %p51, %p52
    %p54 = scmp.ne.s32.totalorder %s46, %s48
    %p55 = scmp.eq.s32.totalorder %s17, 1
    %p56 = por %p54, %p55
    %p57 = scmp.ne.s32.totalorder %s48, %s49
    %p58 = scmp.eq.s32.totalorder %s17, 0
    %p59 = por %p57, %p58
    %p60 = scmp.ne.s32.totalorder %s48, %s49
    %p61 = scmp.eq.s32.totalorder %s18, 1
    %p62 = por %p60, %p61
    %p64 = scmp.ne.s32.totalorder %s49, %s63
    %p65 = scmp.eq.s32.totalorder %s18, 0
    %p66 = por %p64, %p65
    %s68 = sadd.s32 %s67, 1
    %p71 = scmp.eq.s32.totalorder %s12, 1
    %p72 = scmp.ne.s32.totalorder %s67, %s69
    %p73 = scmp.eq.s32.totalorder %s12, 0
    %p74 = por %p72, %p73
    %p75 = scmp.ne.s32.totalorder %s67, %s69
    %p76 = scmp.eq.s32.totalorder %s17, 1
    %p77 = por %p75, %p76
    %p78 = scmp.ne.s32.totalorder %s69, %s70
    %p79 = scmp.eq.s32.totalorder %s17, 0
    %p80 = por %p78, %p79
    %p81 = scmp.ne.s32.totalorder %s69, %s70
    %p82 = scmp.eq.s32.totalorder %s18, 1
    %p83 = por %p81, %p82
    %p85 = scmp.ne.s32.totalorder %s70, %s84
    %p86 = scmp.eq.s32.totalorder %s18, 0
    %p87 = por %p85, %p86
    %s89 = sadd.s32 %s88, 1
    %p92 = scmp.eq.s32.totalorder %s12, 1
    %p93 = scmp.ne.s32.totalorder %s88, %s90
    %p94 = scmp.eq.s32.totalorder %s12, 0
    %p95 = por %p93, %p94
    %p96 = scmp.ne.s32.totalorder %s88, %s90
    %p97 = scmp.eq.s32.totalorder %s17, 1
    %p98 = por %p96, %p97
    %p99 = scmp.ne.s32.totalorder %s90, %s91
    %p100 = scmp.eq.s32.totalorder %s17, 0
    %p101 = por %p99, %p100
    %p102 = scmp.ne.s32.totalorder %s90, %s91
    %p103 = scmp.eq.s32.totalorder %s18, 1
    %p104 = por %p102, %p103
    %p106 = scmp.ne.s32.totalorder %s91, %s105
    %p107 = scmp.eq.s32.totalorder %s18, 0
    %p108 = por %p106, %p107
    %s109 = ssub.s32 %s12, %s19
    %p110 = scmp.eq.s32.totalorder %s109, 0
    %s112 = sadd.s32 %s111, 1
    %s113 = scalar_select %p110, %s111, %s112
    %p116 = pneg %p110
    %p117 = scmp.eq.s32.totalorder %s12, 1
    %p118 = por %p116, %p117
    %p119 = scmp.ne.s32.totalorder %s111, %s114
    %p120 = scmp.eq.s32.totalorder %s12, 0
    %p121 = por %p119, %p120
    %p122 = scmp.ne.s32.totalorder %s111, %s114
    %p123 = scmp.eq.s32.totalorder %s17, 1
    %p124 = por %p122, %p123
    %p125 = scmp.ne.s32.totalorder %s114, %s115
    %p126 = scmp.eq.s32.totalorder %s17, 0
    %p127 = por %p125, %p126
    %p128 = scmp.ne.s32.totalorder %s114, %s115
    %p129 = scmp.eq.s32.totalorder %s18, 1
    %p130 = por %p128, %p129
    %p132 = scmp.ne.s32.totalorder %s115, %s131
    %p133 = scmp.eq.s32.totalorder %s18, 0
    %p134 = por %p132, %p133
    %s135 = ssub.s32 %s12, %s19
    %p136 = scmp.eq.s32.totalorder %s135, 0
    %s138 = sadd.s32 %s137, 1
    %s139 = scalar_select %p136, %s137, %s138
    %p142 = pneg %p136
    %p143 = scmp.eq.s32.totalorder %s12, 1
    %p144 = por %p142, %p143
    %p145 = scmp.ne.s32.totalorder %s137, %s140
    %p146 = scmp.eq.s32.totalorder %s12, 0
    %p147 = por %p145, %p146
    %p148 = scmp.ne.s32.totalorder %s137, %s140
    %p149 = scmp.eq.s32.totalorder %s17, 1
    %p150 = por %p148, %p149
    %p151 = scmp.ne.s32.totalorder %s140, %s141
    %p152 = scmp.eq.s32.totalorder %s17, 0
    %p153 = por %p151, %p152
    %p154 = scmp.ne.s32.totalorder %s140, %s141
    %p155 = scmp.eq.s32.totalorder %s18, 1
    %p156 = por %p154, %p155
    %p158 = scmp.ne.s32.totalorder %s141, %s157
    %p159 = scmp.eq.s32.totalorder %s18, 0
    %p160 = por %p158, %p159
    %p161 = scmp.le.s32.totalorder 1, %s12
    %p162 = scmp.lt.s32.totalorder %s12, 3
    %p163 = pnand %p161, %p162
    %p164 = pneg %p163
    // Predicated region
    $region9: #{frru_forward.5} parent=5 // pred_check
      _
    $region10: #{frru_forward.5} parent=5 // pred_check_branch
      %166 = sbr.rel (%p163) target = $region12
    $region11: #{frru_forward.5} parent=5 // pred_region
      %s167 = ssub.s32 %s12, 1
      // Predicated region
      $region13: #{frru_forward.5} parent=11 // pred_check
        %p168 = pneg %p59
      $region14: #{frru_forward.5} parent=11 // pred_check_branch
        %170 = sbr.rel (%p168) target = $region16
      $region15: #{frru_forward.5} parent=11 // pred_region
        _
      $region16: #{frru_forward.5} parent=11 // pred_fallthru
        _
      // Predicated region
      $region17: #{frru_forward.5} parent=11 // pred_check
        %p171 = pneg %p80
      $region18: #{frru_forward.5} parent=11 // pred_check_branch
        %173 = sbr.rel (%p171) target = $region20
      $region19: #{frru_forward.5} parent=11 // pred_region
        _
      $region20: #{frru_forward.5} parent=11 // pred_fallthru
        _
      // Predicated region
      $region21: #{frru_forward.5} parent=11 // pred_check
        %p174 = pneg %p101
      $region22: #{frru_forward.5} parent=11 // pred_check_branch
        %176 = sbr.rel (%p174) target = $region24
      $region23: #{frru_forward.5} parent=11 // pred_region
        _
      $region24: #{frru_forward.5} parent=11 // pred_fallthru
        _
    $region12: #{frru_forward.5} parent=5 // pred_fallthru
      _
    %p177 = scmp.lt.s32.totalorder %s12, 2
    // Predicated region
    $region25: #{frru_forward.5} parent=5 // pred_check
      %p178 = pneg %p177
    $region26: #{frru_forward.5} parent=5 // pred_check_branch
      %180 = sbr.rel (%p178) target = $region28
    $region27: #{frru_forward.5} parent=5 // pred_region
      // Predicated region
      $region29: #{frru_forward.5} parent=27 // pred_check
        %p181 = pneg %p32
      $region30: #{frru_forward.5} parent=27 // pred_check_branch
        %183 = sbr.rel (%p181) target = $region32
      $region31: #{frru_forward.5} parent=27 // pred_region
        %p184 = scmp.lt.s32.totalorder %s12, 1
        %s185 = scalar_select %p184, %s12, 1
        %s186 = smul.addr %s185, 20
        %s187 = smul.addr %s186, 8
        %s188 = scalar_lea.vmem %s0, %s187
      $region32: #{frru_forward.5} parent=27 // pred_fallthru
        _
    $region28: #{frru_forward.5} parent=5 // pred_fallthru
      _
    %p189 = scmp.le.s32.totalorder 1, %s12
    %p190 = scmp.lt.s32.totalorder %s12, 3
    %p191 = pnand %p189, %p190
    %p192 = pneg %p191
    // Predicated region
    $region33: #{frru_forward.5} parent=5 // pred_check
      _
    $region34: #{frru_forward.5} parent=5 // pred_check_branch
      %194 = sbr.rel (%p191) target = $region36
    $region35: #{frru_forward.5} parent=5 // pred_region
      %s195 = ssub.s32 %s12, 1
      %p196 = scmp.lt.s32.totalorder %s17, 1
      %s197 = scalar_select %p196, %s17, 1
      %s198 = smul.addr %s197, 20
      %s199 = smul.addr %s198, 8
      %s200 = scalar_lea.vmem %s0, %s199
      %p201 = pneg %p38
      %p202 = pneg %p35
      %p203 = pneg %p59
      %p204 = pneg %p56
      %p205 = pneg %p80
      %p206 = pneg %p77
      %p207 = pneg %p101
      %p208 = pneg %p98
      %p209 = pneg %p127
      %p210 = pneg %p124
      %p211 = scmp.lt.s32.totalorder %s17, 1
      %s212 = scalar_select %p211, %s17, 1
      %s213 = smul.addr %s212, 8
      %s214 = smul.addr %s213, 8
      %s215 = scalar_lea.vmem %s4, %s214
      %p216 = pneg %p153
      %p217 = pneg %p150
      %p218 = scmp.lt.s32.totalorder %s17, 1
      %s219 = scalar_select %p218, %s17, 1
      %s220 = smul.addr %s219, 8
      %s221 = scalar_lea.vmem %s5, %s220
      %p222 = scmp.lt.s32.totalorder %s17, 1
      %s223 = scalar_select %p222, %s17, 1
      %s224 = smul.addr %s223, 20
      %s225 = smul.addr %s224, 8
      %s226 = scalar_lea.vmem %s0, %s225
      %p227 = scmp.lt.s32.totalorder %s17, 1
      %s228 = scalar_select %p227, %s17, 1
      %s229 = smul.addr %s228, 8
      %s230 = smul.addr %s229, 8
      %s231 = scalar_lea.vmem %s4, %s230
      %p232 = scmp.lt.s32.totalorder %s17, 1
      %s233 = scalar_select %p232, %s17, 1
      %s234 = smul.addr %s233, 8
      %s235 = scalar_lea.vmem %s5, %s234
      %v236 = vld [vmem:[%s226] sm:$0xff]
      %v237 = vld [vmem:[%s226 + $0x8] sm:$0x3]
      %v238 = vld [vmem:[%s226 + $0x10] sm:$0xff]
      %v239 = vld [vmem:[%s226 + $0x18] sm:$0x3]
      %v240 = vld [vmem:[%s226 + $0x20] sm:$0xff]
      %v241 = vld [vmem:[%s226 + $0x28] sm:$0x3]
      %v242 = vld [vmem:[%s226 + $0x30] sm:$0xff]
      %v243 = vld [vmem:[%s226 + $0x38] sm:$0x3]
      %v244 = vld [vmem:[%s226 + $0x40] sm:$0xff]
      %v245 = vld [vmem:[%s226 + $0x48] sm:$0x3]
      %v246 = vld [vmem:[%s226 + $0x50] sm:$0xff]
      %v247 = vld [vmem:[%s226 + $0x58] sm:$0x3]
      %v248 = vld [vmem:[%s226 + $0x60] sm:$0xff]
      %v249 = vld [vmem:[%s226 + $0x68] sm:$0x3]
      %v250 = vld [vmem:[%s226 + $0x70] sm:$0xff]
      %v251 = vld [vmem:[%s226 + $0x78] sm:$0x3]
      %v252 = vld [vmem:[%s226 + $0x80] sm:$0xff]
      %v253 = vld [vmem:[%s226 + $0x88] sm:$0x3]
      %v254 = vld [vmem:[%s226 + $0x90] sm:$0xff]
      %v255 = vld [vmem:[%s226 + $0x98] sm:$0x3]
      %v256 = vld [vmem:[%s1] sm:$0x1]
      %v258 = vperm.slane %v256, 0
      %v260 = vmul.f32 %v236, %v258
      %v261 = vmul.f32 %v237, %v258
      %v262 = vmul.f32 %v238, %v258
      %v263 = vmul.f32 %v239, %v258
      %v264 = vmul.f32 %v240, %v258
      %v265 = vmul.f32 %v241, %v258
      %v266 = vmul.f32 %v242, %v258
      %v267 = vmul.f32 %v243, %v258
      %v268 = vmul.f32 %v244, %v258
      %v269 = vmul.f32 %v245, %v258
      %v270 = vmul.f32 %v246, %v258
      %v271 = vmul.f32 %v247, %v258
      %v272 = vmul.f32 %v248, %v258
      %v273 = vmul.f32 %v249, %v258
      %v274 = vmul.f32 %v250, %v258
      %v275 = vmul.f32 %v251, %v258
      %v276 = vmul.f32 %v252, %v258
      %v277 = vmul.f32 %v253, %v258
      %v278 = vmul.f32 %v254, %v258
      %v279 = vmul.f32 %v255, %v258
      %v280 = vld [vmem:[%s2] sm:$0x1]
      %v282 = vperm.slane %v280, 0
      %v284 = vadd.f32 %v260, %v282
      %v285 = vadd.f32 %v261, %v282
      %v286 = vadd.f32 %v262, %v282
      %v287 = vadd.f32 %v263, %v282
      %v288 = vadd.f32 %v264, %v282
      %v289 = vadd.f32 %v265, %v282
      %v290 = vadd.f32 %v266, %v282
      %v291 = vadd.f32 %v267, %v282
      %v292 = vadd.f32 %v268, %v282
      %v293 = vadd.f32 %v269, %v282
      %v294 = vadd.f32 %v270, %v282
      %v295 = vadd.f32 %v271, %v282
      %v296 = vadd.f32 %v272, %v282
      %v297 = vadd.f32 %v273, %v282
      %v298 = vadd.f32 %v274, %v282
      %v299 = vadd.f32 %v275, %v282
      %v300 = vadd.f32 %v276, %v282
      %v301 = vadd.f32 %v277, %v282
      %v302 = vadd.f32 %v278, %v282
      %v303 = vadd.f32 %v279, %v282
      %v304 = vmax.f32 %v284, 0.0
      %v305 = vmax.f32 %v285, 0.0
      %v306 = vmax.f32 %v286, 0.0
      %v307 = vmax.f32 %v287, 0.0
      %v308 = vmax.f32 %v288, 0.0
      %v309 = vmax.f32 %v289, 0.0
      %v310 = vmax.f32 %v290, 0.0
      %v311 = vmax.f32 %v291, 0.0
      %v312 = vmax.f32 %v292, 0.0
      %v313 = vmax.f32 %v293, 0.0
      %v314 = vmax.f32 %v294, 0.0
      %v315 = vmax.f32 %v295, 0.0
      %v316 = vmax.f32 %v296, 0.0
      %v317 = vmax.f32 %v297, 0.0
      %v318 = vmax.f32 %v298, 0.0
      %v319 = vmax.f32 %v299, 0.0
      %v320 = vmax.f32 %v300, 0.0
      %v321 = vmax.f32 %v301, 0.0
      %v322 = vmax.f32 %v302, 0.0
      %v323 = vmax.f32 %v303, 0.0
      %v324 = vlaneseq
      %v325 = vshrl.u32 %v324, 7
      %v326 = vadd.s32 %v325, 8
      %vm327 = vcmp.ge.s32.totalorder %v325, 1
      %vm328 = vcmp.ge.s32.totalorder %v326, 1
      %vm329 = vmand 0, %vm327
      %vm330 = vmand 0, %vm328
      %vm331 = vmand 1, %vm327
      %vm332 = vmand 1, %vm328
      %vm333 = vcmp.lt.s32.totalorder %v325, 9
      %vm334 = vcmp.lt.s32.totalorder %v326, 9
      %vm335 = vmand %vm329, %vm333
      %vm336 = vmand %vm330, %vm334
      %vm337 = vmand %vm331, %vm333
      %vm338 = vmand %vm332, %vm334
      %v339 = vsel %vm335, %v304, 0.0
      %v340 = vsel %vm336, %v305, 0.0
      %v341 = vsel %vm337, %v306, 0.0
      %v342 = vsel %vm338, %v307, 0.0
      %v343 = vsel %vm337, %v308, 0.0
      %v344 = vsel %vm338, %v309, 0.0
      %v345 = vsel %vm337, %v310, 0.0
      %v346 = vsel %vm338, %v311, 0.0
      %v347 = vsel %vm337, %v312, 0.0
      %v348 = vsel %vm338, %v313, 0.0
      %v349 = vsel %vm337, %v314, 0.0
      %v350 = vsel %vm338, %v315, 0.0
      %v351 = vsel %vm337, %v316, 0.0
      %v352 = vsel %vm338, %v317, 0.0
      %v353 = vsel %vm337, %v318, 0.0
      %v354 = vsel %vm338, %v319, 0.0
      %v355 = vsel %vm337, %v320, 0.0
      %v356 = vsel %vm338, %v321, 0.0
      %v357 = vsel %vm335, %v322, 0.0
      %v358 = vsel %vm336, %v323, 0.0
      %v359 = vpack.c.bf16 %v339, %v339
      %v360 = vpack.c.bf16 %v340, %v340
      %v361 = vpack.c.bf16 %v341, %v341
      %v362 = vpack.c.bf16 %v342, %v342
      %v363 = vpack.c.bf16 %v343, %v343
      %v364 = vpack.c.bf16 %v344, %v344
      %v365 = vpack.c.bf16 %v345, %v345
      %v366 = vpack.c.bf16 %v346, %v346
      %v367 = vpack.c.bf16 %v347, %v347
      %v368 = vpack.c.bf16 %v348, %v348
      %v369 = vpack.c.bf16 %v349, %v349
      %v370 = vpack.c.bf16 %v350, %v350
      %v371 = vpack.c.bf16 %v351, %v351
      %v372 = vpack.c.bf16 %v352, %v352
      %v373 = vpack.c.bf16 %v353, %v353
      %v374 = vpack.c.bf16 %v354, %v354
      %v375 = vpack.c.bf16 %v355, %v355
      %v376 = vpack.c.bf16 %v356, %v356
      %v377 = vpack.c.bf16 %v357, %v357
      %v378 = vpack.c.bf16 %v358, %v358
      %v379 = vld [vmem:[%s3] sm:$0xf]
      %v380 = vld [vmem:[%s3 + $0x4] sm:$0xf]
      %v381 = vld [vmem:[%s3 + $0x8] sm:$0xf]
      %v382 = vld [vmem:[%s3 + $0xc] sm:$0xf]
      %v383 = vld [vmem:[%s3 + $0x10] sm:$0xf]
      %v384 = vld [vmem:[%s3 + $0x14] sm:$0xf]
      %v385 = vld [vmem:[%s3 + $0x18] sm:$0xf]
      %v386 = vld [vmem:[%s3 + $0x1c] sm:$0xf]
      %v387 = vld [vmem:[%s3 + $0x20] sm:$0xf]
      %v388 = vld [vmem:[%s3 + $0x24] sm:$0xf]
      %v389 = vld [vmem:[%s3 + $0x28] sm:$0xf]
      %v390 = vld [vmem:[%s3 + $0x2c] sm:$0xf]
      %v391 = vld [vmem:[%s3 + $0x30] sm:$0xf]
      %v392 = vld [vmem:[%s3 + $0x34] sm:$0xf]
      %v393 = vld [vmem:[%s3 + $0x38] sm:$0xf]
      %v394 = vld [vmem:[%s3 + $0x3c] sm:$0xf]
      %vm395 = vsmask.f32 3328
      %vm396 = vsmask.f32 7440
      %vm397 = vmor %vm395, %vm396
      %v399 = vshrl.u32 %v359, 16
      %v401 = vrot.slane %v399, 4
      %v402 = vshll.u32 %v359, 16
      %v404 = vrot.slane %v402, 5
      %v405 = vor.u32 %v401, %v404
      %v406 = vrot.slane %v405, 4
      %v408 = vshll.u32 %v360, 16
      %v410 = vrot.slane %v408, 5
      %v411 = vsel %vm397, %v406, %v410
      %v413 = vshrl.u32 %v361, 16
      %v415 = vrot.slane %v413, 4
      %v416 = vshll.u32 %v361, 16
      %v418 = vrot.slane %v416, 5
      %v419 = vor.u32 %v415, %v418
      %v420 = vrot.slane %v419, 4
      %v422 = vshll.u32 %v362, 16
      %v424 = vrot.slane %v422, 5
      %v425 = vsel %vm397, %v420, %v424
      %v427 = vshrl.u32 %v363, 16
      %v429 = vrot.slane %v427, 4
      %v430 = vshll.u32 %v363, 16
      %v432 = vrot.slane %v430, 5
      %v433 = vor.u32 %v429, %v432
      %v434 = vrot.slane %v433, 4
      %v436 = vshll.u32 %v364, 16
      %v438 = vrot.slane %v436, 5
      %v439 = vsel %vm397, %v434, %v438
      %v441 = vshrl.u32 %v365, 16
      %v443 = vrot.slane %v441, 4
      %v444 = vshll.u32 %v365, 16
      %v446 = vrot.slane %v444, 5
      %v447 = vor.u32 %v443, %v446
      %v448 = vrot.slane %v447, 4
      %v450 = vshll.u32 %v366, 16
      %v452 = vrot.slane %v450, 5
      %v453 = vsel %vm397, %v448, %v452
      %v455 = vshrl.u32 %v367, 16
      %v457 = vrot.slane %v455, 4
      %v458 = vshll.u32 %v367, 16
      %v460 = vrot.slane %v458, 5
      %v461 = vor.u32 %v457, %v460
      %v462 = vrot.slane %v461, 4
      %v464 = vshll.u32 %v368, 16
      %v466 = vrot.slane %v464, 5
      %v467 = vsel %vm397, %v462, %v466
      %v469 = vshrl.u32 %v369, 16
      %v471 = vrot.slane %v469, 4
      %v472 = vshll.u32 %v369, 16
      %v474 = vrot.slane %v472, 5
      %v475 = vor.u32 %v471, %v474
      %v476 = vrot.slane %v475, 4
      %v478 = vshll.u32 %v370, 16
      %v480 = vrot.slane %v478, 5
      %v481 = vsel %vm397, %v476, %v480
      %v483 = vshrl.u32 %v371, 16
      %v485 = vrot.slane %v483, 4
      %v486 = vshll.u32 %v371, 16
      %v488 = vrot.slane %v486, 5
      %v489 = vor.u32 %v485, %v488
      %v490 = vrot.slane %v489, 4
      %v492 = vshll.u32 %v372, 16
      %v494 = vrot.slane %v492, 5
      %v495 = vsel %vm397, %v490, %v494
      %v497 = vshrl.u32 %v373, 16
      %v499 = vrot.slane %v497, 4
      %v500 = vshll.u32 %v373, 16
      %v502 = vrot.slane %v500, 5
      %v503 = vor.u32 %v499, %v502
      %v504 = vrot.slane %v503, 4
      %v506 = vshll.u32 %v374, 16
      %v508 = vrot.slane %v506, 5
      %v509 = vsel %vm397, %v504, %v508
      %s510 = scalar_lea.vmem %s3, 64
      %v511 = vld [vmem:[%s510] sm:$0xf]
      %v512 = vld [vmem:[%s510 + $0x4] sm:$0xf]
      %v513 = vld [vmem:[%s510 + $0x8] sm:$0xf]
      %v514 = vld [vmem:[%s510 + $0xc] sm:$0xf]
      %v515 = vld [vmem:[%s510 + $0x10] sm:$0xf]
      %v516 = vld [vmem:[%s510 + $0x14] sm:$0xf]
      %v517 = vld [vmem:[%s510 + $0x18] sm:$0xf]
      %v518 = vld [vmem:[%s510 + $0x1c] sm:$0xf]
      %v519 = vld [vmem:[%s510 + $0x20] sm:$0xf]
      %v520 = vld [vmem:[%s510 + $0x24] sm:$0xf]
      %v521 = vld [vmem:[%s510 + $0x28] sm:$0xf]
      %v522 = vld [vmem:[%s510 + $0x2c] sm:$0xf]
      %v523 = vld [vmem:[%s510 + $0x30] sm:$0xf]
      %v524 = vld [vmem:[%s510 + $0x34] sm:$0xf]
      %v525 = vld [vmem:[%s510 + $0x38] sm:$0xf]
      %v526 = vld [vmem:[%s510 + $0x3c] sm:$0xf]
      %v527 = vunpack.c.l.b16 %v411
      %v528 = vunpack.c.l.b16 %v425
      %v529 = vunpack.c.l.b16 %v439
      %v530 = vunpack.c.l.b16 %v453
      %v531 = vunpack.c.l.b16 %v467
      %v532 = vunpack.c.l.b16 %v481
      %v533 = vunpack.c.l.b16 %v495
      %v534 = vunpack.c.l.b16 %v509
      %v535 = vpack.c.b16 %v528, %v527
      %v536 = vpack.c.b16 %v530, %v529
      %v537 = vpack.c.b16 %v532, %v531
      %v538 = vpack.c.b16 %v534, %v533
      %v559 = vunpack.c.l.b16 %v511
      %v560 = vunpack.c.l.b16 %v512
      %v561 = vunpack.c.l.b16 %v513
      %v562 = vunpack.c.l.b16 %v514
      %v563 = vunpack.c.l.b16 %v515
      %v564 = vunpack.c.l.b16 %v516
      %v565 = vunpack.c.l.b16 %v517
      %v566 = vunpack.c.l.b16 %v518
      %v567 = vunpack.c.l.b16 %v519
      %v568 = vunpack.c.l.b16 %v520
      %v569 = vunpack.c.l.b16 %v521
      %v570 = vunpack.c.l.b16 %v522
      %v571 = vunpack.c.l.b16 %v523
      %v572 = vunpack.c.l.b16 %v524
      %v573 = vunpack.c.l.b16 %v525
      %v574 = vunpack.c.l.b16 %v526
      %v575 = vpack.c.b16 %v560, %v559
      %v576 = vpack.c.b16 %v562, %v561
      %v577 = vpack.c.b16 %v564, %v563
      %v578 = vpack.c.b16 %v566, %v565
      %v579 = vpack.c.b16 %v568, %v567
      %v580 = vpack.c.b16 %v570, %v569
      %v581 = vpack.c.b16 %v572, %v571
      %v582 = vpack.c.b16 %v574, %v573
      %591 = vmatpush.bf16.msra.mxu0 %v582
      %592 = vmatpush.bf16.msra.mxu0 %v581
      %593 = vmatpush.bf16.msra.mxu0 %v580
      %594 = vmatpush.bf16.msra.mxu0 %v579
      %595 = vmatpush.bf16.msra.mxu0 %v578
      %596 = vmatpush.bf16.msra.mxu0 %v577
      %597 = vmatpush.bf16.msra.mxu0 %v576
      %598 = vmatpush.bf16.msra.mxu0 %v575
      %599 = vmatmul.bf16.gmra.mxu0 %v535
      %v600 = vpop.f32.mrf.mxu0
      %v601 = vadd.f32 0.0, %v600
      %v602 = vpop.f32.mrf.mxu0
      %v603 = vadd.f32 0.0, %v602
      %604 = vmatmul.bf16.gmra.mxu0 %v536
      %v605 = vpop.f32.mrf.mxu0
      %v606 = vadd.f32 0.0, %v605
      %v607 = vpop.f32.mrf.mxu0
      %v608 = vadd.f32 0.0, %v607
      %609 = vmatmul.bf16.gmra.mxu0 %v537
      %v610 = vpop.f32.mrf.mxu0
      %v611 = vadd.f32 0.0, %v610
      %v612 = vpop.f32.mrf.mxu0
      %v613 = vadd.f32 0.0, %v612
      %614 = vmatmul.bf16.gmra.mxu0 %v538
      %v615 = vpop.f32.mrf.mxu0
      %v616 = vadd.f32 0.0, %v615
      %v617 = vpop.f32.mrf.mxu0
      %v618 = vadd.f32 0.0, %v617
      %619 = vdwg.mxu0
      %v628 = vunpack.c.l.b16 %v359
      %v629 = vunpack.c.l.b16 %v361
      %v630 = vunpack.c.l.b16 %v363
      %v631 = vunpack.c.l.b16 %v365
      %v632 = vunpack.c.l.b16 %v367
      %v633 = vunpack.c.l.b16 %v369
      %v634 = vunpack.c.l.b16 %v371
      %v635 = vunpack.c.l.b16 %v373
      %v636 = vpack.c.b16 %v629, %v628
      %v637 = vpack.c.b16 %v631, %v630
      %v638 = vpack.c.b16 %v633, %v632
      %v639 = vpack.c.b16 %v635, %v634
      %v660 = vunpack.c.l.b16 %v379
      %v661 = vunpack.c.l.b16 %v380
      %v662 = vunpack.c.l.b16 %v381
      %v663 = vunpack.c.l.b16 %v382
      %v664 = vunpack.c.l.b16 %v383
      %v665 = vunpack.c.l.b16 %v384
      %v666 = vunpack.c.l.b16 %v385
      %v667 = vunpack.c.l.b16 %v386
      %v668 = vunpack.c.l.b16 %v387
      %v669 = vunpack.c.l.b16 %v388
      %v670 = vunpack.c.l.b16 %v389
      %v671 = vunpack.c.l.b16 %v390
      %v672 = vunpack.c.l.b16 %v391
      %v673 = vunpack.c.l.b16 %v392
      %v674 = vunpack.c.l.b16 %v393
      %v675 = vunpack.c.l.b16 %v394
      %v676 = vpack.c.b16 %v661, %v660
      %v677 = vpack.c.b16 %v663, %v662
      %v678 = vpack.c.b16 %v665, %v664
      %v679 = vpack.c.b16 %v667, %v666
      %v680 = vpack.c.b16 %v669, %v668
      %v681 = vpack.c.b16 %v671, %v670
      %v682 = vpack.c.b16 %v673, %v672
      %v683 = vpack.c.b16 %v675, %v674
      %692 = vmatpush.bf16.msra.mxu0 %v683
      %693 = vmatpush.bf16.msra.mxu0 %v682
      %694 = vmatpush.bf16.msra.mxu0 %v681
      %695 = vmatpush.bf16.msra.mxu0 %v680
      %696 = vmatpush.bf16.msra.mxu0 %v679
      %697 = vmatpush.bf16.msra.mxu0 %v678
      %698 = vmatpush.bf16.msra.mxu0 %v677
      %699 = vmatpush.bf16.msra.mxu0 %v676
      %700 = vmatmul.bf16.gmra.mxu0 %v636
      %v701 = vpop.f32.mrf.mxu0
      %v702 = vadd.f32 %v601, %v701
      %v703 = vpop.f32.mrf.mxu0
      %v704 = vadd.f32 %v603, %v703
      %705 = vmatmul.bf16.gmra.mxu0 %v637
      %v706 = vpop.f32.mrf.mxu0
      %v707 = vadd.f32 %v606, %v706
      %v708 = vpop.f32.mrf.mxu0
      %v709 = vadd.f32 %v608, %v708
      %710 = vmatmul.bf16.gmra.mxu0 %v638
      %v711 = vpop.f32.mrf.mxu0
      %v712 = vadd.f32 %v611, %v711
      %v713 = vpop.f32.mrf.mxu0
      %v714 = vadd.f32 %v613, %v713
      %715 = vmatmul.bf16.gmra.mxu0 %v639
      %v716 = vpop.f32.mrf.mxu0
      %v717 = vadd.f32 %v616, %v716
      %v718 = vpop.f32.mrf.mxu0
      %v719 = vadd.f32 %v618, %v718
      %720 = vdwg.mxu0
      %vm729 = vcmask 1042432
      %vm730 = vcmask 1046532
      %vm731 = vmor %vm729, %vm730
      %v732 = vrot.slane %v359, 5
      %v733 = vrot.slane %v732, 4
      %v734 = vrot.slane %v360, 5
      %v735 = vsel %vm731, %v733, %v734
      %v736 = vrot.slane %v361, 5
      %v737 = vrot.slane %v736, 4
      %v738 = vrot.slane %v362, 5
      %v739 = vsel %vm731, %v737, %v738
      %v740 = vrot.slane %v363, 5
      %v741 = vrot.slane %v740, 4
      %v742 = vrot.slane %v364, 5
      %v743 = vsel %vm731, %v741, %v742
      %v744 = vrot.slane %v365, 5
      %v745 = vrot.slane %v744, 4
      %v746 = vrot.slane %v366, 5
      %v747 = vsel %vm731, %v745, %v746
      %v748 = vrot.slane %v367, 5
      %v749 = vrot.slane %v748, 4
      %v750 = vrot.slane %v368, 5
      %v751 = vsel %vm731, %v749, %v750
      %v752 = vrot.slane %v369, 5
      %v753 = vrot.slane %v752, 4
      %v754 = vrot.slane %v370, 5
      %v755 = vsel %vm731, %v753, %v754
      %v756 = vrot.slane %v371, 5
      %v757 = vrot.slane %v756, 4
      %v758 = vrot.slane %v372, 5
      %v759 = vsel %vm731, %v757, %v758
      %v760 = vrot.slane %v373, 5
      %v761 = vrot.slane %v760, 4
      %v762 = vrot.slane %v374, 5
      %v763 = vsel %vm731, %v761, %v762
      %s764 = scalar_lea.vmem %s3, 128
      %v765 = vld [vmem:[%s764] sm:$0xf]
      %v766 = vld [vmem:[%s764 + $0x4] sm:$0xf]
      %v767 = vld [vmem:[%s764 + $0x8] sm:$0xf]
      %v768 = vld [vmem:[%s764 + $0xc] sm:$0xf]
      %v769 = vld [vmem:[%s764 + $0x10] sm:$0xf]
      %v770 = vld [vmem:[%s764 + $0x14] sm:$0xf]
      %v771 = vld [vmem:[%s764 + $0x18] sm:$0xf]
      %v772 = vld [vmem:[%s764 + $0x1c] sm:$0xf]
      %v773 = vld [vmem:[%s764 + $0x20] sm:$0xf]
      %v774 = vld [vmem:[%s764 + $0x24] sm:$0xf]
      %v775 = vld [vmem:[%s764 + $0x28] sm:$0xf]
      %v776 = vld [vmem:[%s764 + $0x2c] sm:$0xf]
      %v777 = vld [vmem:[%s764 + $0x30] sm:$0xf]
      %v778 = vld [vmem:[%s764 + $0x34] sm:$0xf]
      %v779 = vld [vmem:[%s764 + $0x38] sm:$0xf]
      %v780 = vld [vmem:[%s764 + $0x3c] sm:$0xf]
      %v781 = vunpack.c.l.b16 %v735
      %v782 = vunpack.c.l.b16 %v739
      %v783 = vunpack.c.l.b16 %v743
      %v784 = vunpack.c.l.b16 %v747
      %v785 = vunpack.c.l.b16 %v751
      %v786 = vunpack.c.l.b16 %v755
      %v787 = vunpack.c.l.b16 %v759
      %v788 = vunpack.c.l.b16 %v763
      %v789 = vpack.c.b16 %v782, %v781
      %v790 = vpack.c.b16 %v784, %v783
      %v791 = vpack.c.b16 %v786, %v785
      %v792 = vpack.c.b16 %v788, %v787
      %v813 = vunpack.c.l.b16 %v765
      %v814 = vunpack.c.l.b16 %v766
      %v815 = vunpack.c.l.b16 %v767
      %v816 = vunpack.c.l.b16 %v768
      %v817 = vunpack.c.l.b16 %v769
      %v818 = vunpack.c.l.b16 %v770
      %v819 = vunpack.c.l.b16 %v771
      %v820 = vunpack.c.l.b16 %v772
      %v821 = vunpack.c.l.b16 %v773
      %v822 = vunpack.c.l.b16 %v774
      %v823 = vunpack.c.l.b16 %v775
      %v824 = vunpack.c.l.b16 %v776
      %v825 = vunpack.c.l.b16 %v777
      %v826 = vunpack.c.l.b16 %v778
      %v827 = vunpack.c.l.b16 %v779
      %v828 = vunpack.c.l.b16 %v780
      %v829 = vpack.c.b16 %v814, %v813
      %v830 = vpack.c.b16 %v816, %v815
      %v831 = vpack.c.b16 %v818, %v817
      %v832 = vpack.c.b16 %v820, %v819
      %v833 = vpack.c.b16 %v822, %v821
      %v834 = vpack.c.b16 %v824, %v823
      %v835 = vpack.c.b16 %v826, %v825
      %v836 = vpack.c.b16 %v828, %v827
      %845 = vmatpush.bf16.msra.mxu0 %v836
      %846 = vmatpush.bf16.msra.mxu0 %v835
      %847 = vmatpush.bf16.msra.mxu0 %v834
      %848 = vmatpush.bf16.msra.mxu0 %v833
      %849 = vmatpush.bf16.msra.mxu0 %v832
      %850 = vmatpush.bf16.msra.mxu0 %v831
      %851 = vmatpush.bf16.msra.mxu0 %v830
      %852 = vmatpush.bf16.msra.mxu0 %v829
      %853 = vmatmul.bf16.gmra.mxu0 %v789
      %v854 = vpop.f32.mrf.mxu0
      %v855 = vadd.f32 0.0, %v854
      %v856 = vpop.f32.mrf.mxu0
      %v857 = vadd.f32 0.0, %v856
      %858 = vmatmul.bf16.gmra.mxu0 %v790
      %v859 = vpop.f32.mrf.mxu0
      %v860 = vadd.f32 0.0, %v859
      %v861 = vpop.f32.mrf.mxu0
      %v862 = vadd.f32 0.0, %v861
      %863 = vmatmul.bf16.gmra.mxu0 %v791
      %v864 = vpop.f32.mrf.mxu0
      %v865 = vadd.f32 0.0, %v864
      %v866 = vpop.f32.mrf.mxu0
      %v867 = vadd.f32 0.0, %v866
      %868 = vmatmul.bf16.gmra.mxu0 %v792
      %v869 = vpop.f32.mrf.mxu0
      %v870 = vadd.f32 0.0, %v869
      %v871 = vpop.f32.mrf.mxu0
      %v872 = vadd.f32 0.0, %v871
      %873 = vdwg.mxu0
      %v874 = vadd.f32 %v702, %v855
      %v875 = vadd.f32 %v704, %v857
      %v876 = vadd.f32 %v707, %v860
      %v877 = vadd.f32 %v709, %v862
      %v878 = vadd.f32 %v712, %v865
      %v879 = vadd.f32 %v714, %v867
      %v880 = vadd.f32 %v717, %v870
      %v881 = vadd.f32 %v719, %v872
      %s882 = scalar_lea.vmem %s3, 192
      %v883 = vld [vmem:[%s882] sm:$0xf]
      %v884 = vld [vmem:[%s882 + $0x4] sm:$0xf]
      %v885 = vld [vmem:[%s882 + $0x8] sm:$0xf]
      %v886 = vld [vmem:[%s882 + $0xc] sm:$0xf]
      %v887 = vld [vmem:[%s882 + $0x10] sm:$0xf]
      %v888 = vld [vmem:[%s882 + $0x14] sm:$0xf]
      %v889 = vld [vmem:[%s882 + $0x18] sm:$0xf]
      %v890 = vld [vmem:[%s882 + $0x1c] sm:$0xf]
      %v891 = vld [vmem:[%s882 + $0x20] sm:$0xf]
      %v892 = vld [vmem:[%s882 + $0x24] sm:$0xf]
      %v893 = vld [vmem:[%s882 + $0x28] sm:$0xf]
      %v894 = vld [vmem:[%s882 + $0x2c] sm:$0xf]
      %v895 = vld [vmem:[%s882 + $0x30] sm:$0xf]
      %v896 = vld [vmem:[%s882 + $0x34] sm:$0xf]
      %v897 = vld [vmem:[%s882 + $0x38] sm:$0xf]
      %v898 = vld [vmem:[%s882 + $0x3c] sm:$0xf]
      %v900 = vunpack.c.l.b16 %v375
      %v901 = vpack.c.b16 %v630, %v629
      %v902 = vpack.c.b16 %v632, %v631
      %v903 = vpack.c.b16 %v634, %v633
      %v904 = vpack.c.b16 %v900, %v635
      %v925 = vunpack.c.l.b16 %v883
      %v926 = vunpack.c.l.b16 %v884
      %v927 = vunpack.c.l.b16 %v885
      %v928 = vunpack.c.l.b16 %v886
      %v929 = vunpack.c.l.b16 %v887
      %v930 = vunpack.c.l.b16 %v888
      %v931 = vunpack.c.l.b16 %v889
      %v932 = vunpack.c.l.b16 %v890
      %v933 = vunpack.c.l.b16 %v891
      %v934 = vunpack.c.l.b16 %v892
      %v935 = vunpack.c.l.b16 %v893
      %v936 = vunpack.c.l.b16 %v894
      %v937 = vunpack.c.l.b16 %v895
      %v938 = vunpack.c.l.b16 %v896
      %v939 = vunpack.c.l.b16 %v897
      %v940 = vunpack.c.l.b16 %v898
      %v941 = vpack.c.b16 %v926, %v925
      %v942 = vpack.c.b16 %v928, %v927
      %v943 = vpack.c.b16 %v930, %v929
      %v944 = vpack.c.b16 %v932, %v931
      %v945 = vpack.c.b16 %v934, %v933
      %v946 = vpack.c.b16 %v936, %v935
      %v947 = vpack.c.b16 %v938, %v937
      %v948 = vpack.c.b16 %v940, %v939
      %957 = vmatpush.bf16.msra.mxu0 %v948
      %958 = vmatpush.bf16.msra.mxu0 %v947
      %959 = vmatpush.bf16.msra.mxu0 %v946
      %960 = vmatpush.bf16.msra.mxu0 %v945
      %961 = vmatpush.bf16.msra.mxu0 %v944
      %962 = vmatpush.bf16.msra.mxu0 %v943
      %963 = vmatpush.bf16.msra.mxu0 %v942
      %964 = vmatpush.bf16.msra.mxu0 %v941
      %965 = vmatmul.bf16.gmra.mxu0 %v901
      %v966 = vpop.f32.mrf.mxu0
      %v967 = vadd.f32 0.0, %v966
      %v968 = vpop.f32.mrf.mxu0
      %v969 = vadd.f32 0.0, %v968
      %970 = vmatmul.bf16.gmra.mxu0 %v902
      %v971 = vpop.f32.mrf.mxu0
      %v972 = vadd.f32 0.0, %v971
      %v973 = vpop.f32.mrf.mxu0
      %v974 = vadd.f32 0.0, %v973
      %975 = vmatmul.bf16.gmra.mxu0 %v903
      %v976 = vpop.f32.mrf.mxu0
      %v977 = vadd.f32 0.0, %v976
      %v978 = vpop.f32.mrf.mxu0
      %v979 = vadd.f32 0.0, %v978
      %980 = vmatmul.bf16.gmra.mxu0 %v904
      %v981 = vpop.f32.mrf.mxu0
      %v982 = vadd.f32 0.0, %v981
      %v983 = vpop.f32.mrf.mxu0
      %v984 = vadd.f32 0.0, %v983
      %985 = vdwg.mxu0
      %v986 = vadd.f32 %v874, %v967
      %v987 = vadd.f32 %v875, %v969
      %v988 = vadd.f32 %v876, %v972
      %v989 = vadd.f32 %v877, %v974
      %v990 = vadd.f32 %v878, %v977
      %v991 = vadd.f32 %v879, %v979
      %v992 = vadd.f32 %v880, %v982
      %v993 = vadd.f32 %v881, %v984
      %v995 = vshrl.u32 %v375, 16
      %v997 = vrot.slane %v995, 4
      %v998 = vshll.u32 %v375, 16
      %v1000 = vrot.slane %v998, 5
      %v1001 = vor.u32 %v997, %v1000
      %v1002 = vrot.slane %v1001, 4
      %v1004 = vshll.u32 %v376, 16
      %v1006 = vrot.slane %v1004, 5
      %v1007 = vsel %vm397, %v1002, %v1006
      %s1008 = scalar_lea.vmem %s3, 256
      %v1009 = vld [vmem:[%s1008] sm:$0xf]
      %v1010 = vld [vmem:[%s1008 + $0x4] sm:$0xf]
      %v1011 = vld [vmem:[%s1008 + $0x8] sm:$0xf]
      %v1012 = vld [vmem:[%s1008 + $0xc] sm:$0xf]
      %v1013 = vld [vmem:[%s1008 + $0x10] sm:$0xf]
      %v1014 = vld [vmem:[%s1008 + $0x14] sm:$0xf]
      %v1015 = vld [vmem:[%s1008 + $0x18] sm:$0xf]
      %v1016 = vld [vmem:[%s1008 + $0x1c] sm:$0xf]
      %v1017 = vld [vmem:[%s1008 + $0x20] sm:$0xf]
      %v1018 = vld [vmem:[%s1008 + $0x24] sm:$0xf]
      %v1019 = vld [vmem:[%s1008 + $0x28] sm:$0xf]
      %v1020 = vld [vmem:[%s1008 + $0x2c] sm:$0xf]
      %v1021 = vld [vmem:[%s1008 + $0x30] sm:$0xf]
      %v1022 = vld [vmem:[%s1008 + $0x34] sm:$0xf]
      %v1023 = vld [vmem:[%s1008 + $0x38] sm:$0xf]
      %v1024 = vld [vmem:[%s1008 + $0x3c] sm:$0xf]
      %v1025 = vunpack.c.l.b16 %v1007
      %v1026 = vpack.c.b16 %v529, %v528
      %v1027 = vpack.c.b16 %v531, %v530
      %v1028 = vpack.c.b16 %v533, %v532
      %v1029 = vpack.c.b16 %v1025, %v534
      %v1050 = vunpack.c.l.b16 %v1009
      %v1051 = vunpack.c.l.b16 %v1010
      %v1052 = vunpack.c.l.b16 %v1011
      %v1053 = vunpack.c.l.b16 %v1012
      %v1054 = vunpack.c.l.b16 %v1013
      %v1055 = vunpack.c.l.b16 %v1014
      %v1056 = vunpack.c.l.b16 %v1015
      %v1057 = vunpack.c.l.b16 %v1016
      %v1058 = vunpack.c.l.b16 %v1017
      %v1059 = vunpack.c.l.b16 %v1018
      %v1060 = vunpack.c.l.b16 %v1019
      %v1061 = vunpack.c.l.b16 %v1020
      %v1062 = vunpack.c.l.b16 %v1021
      %v1063 = vunpack.c.l.b16 %v1022
      %v1064 = vunpack.c.l.b16 %v1023
      %v1065 = vunpack.c.l.b16 %v1024
      %v1066 = vpack.c.b16 %v1051, %v1050
      %v1067 = vpack.c.b16 %v1053, %v1052
      %v1068 = vpack.c.b16 %v1055, %v1054
      %v1069 = vpack.c.b16 %v1057, %v1056
      %v1070 = vpack.c.b16 %v1059, %v1058
      %v1071 = vpack.c.b16 %v1061, %v1060
      %v1072 = vpack.c.b16 %v1063, %v1062
      %v1073 = vpack.c.b16 %v1065, %v1064
      %1082 = vmatpush.bf16.msra.mxu0 %v1073
      %1083 = vmatpush.bf16.msra.mxu0 %v1072
      %1084 = vmatpush.bf16.msra.mxu0 %v1071
      %1085 = vmatpush.bf16.msra.mxu0 %v1070
      %1086 = vmatpush.bf16.msra.mxu0 %v1069
      %1087 = vmatpush.bf16.msra.mxu0 %v1068
      %1088 = vmatpush.bf16.msra.mxu0 %v1067
      %1089 = vmatpush.bf16.msra.mxu0 %v1066
      %1090 = vmatmul.bf16.gmra.mxu0 %v1026
      %v1091 = vpop.f32.mrf.mxu0
      %v1092 = vadd.f32 0.0, %v1091
      %v1093 = vpop.f32.mrf.mxu0
      %v1094 = vadd.f32 0.0, %v1093
      %1095 = vmatmul.bf16.gmra.mxu0 %v1027
      %v1096 = vpop.f32.mrf.mxu0
      %v1097 = vadd.f32 0.0, %v1096
      %v1098 = vpop.f32.mrf.mxu0
      %v1099 = vadd.f32 0.0, %v1098
      %1100 = vmatmul.bf16.gmra.mxu0 %v1028
      %v1101 = vpop.f32.mrf.mxu0
      %v1102 = vadd.f32 0.0, %v1101
      %v1103 = vpop.f32.mrf.mxu0
      %v1104 = vadd.f32 0.0, %v1103
      %1105 = vmatmul.bf16.gmra.mxu0 %v1029
      %v1106 = vpop.f32.mrf.mxu0
      %v1107 = vadd.f32 0.0, %v1106
      %v1108 = vpop.f32.mrf.mxu0
      %v1109 = vadd.f32 0.0, %v1108
      %1110 = vdwg.mxu0
      %v1111 = vadd.f32 %v986, %v1092
      %v1112 = vadd.f32 %v987, %v1094
      %v1113 = vadd.f32 %v988, %v1097
      %v1114 = vadd.f32 %v989, %v1099
      %v1115 = vadd.f32 %v990, %v1102
      %v1116 = vadd.f32 %v991, %v1104
      %v1117 = vadd.f32 %v992, %v1107
      %v1118 = vadd.f32 %v993, %v1109
      %v1120 = vrot.slane %v375, 5
      %v1121 = vrot.slane %v1120, 4
      %v1122 = vrot.slane %v376, 5
      %v1123 = vsel %vm731, %v1121, %v1122
      %s1124 = scalar_lea.vmem %s3, 320
      %v1125 = vld [vmem:[%s1124] sm:$0xf]
      %v1126 = vld [vmem:[%s1124 + $0x4] sm:$0xf]
      %v1127 = vld [vmem:[%s1124 + $0x8] sm:$0xf]
      %v1128 = vld [vmem:[%s1124 + $0xc] sm:$0xf]
      %v1129 = vld [vmem:[%s1124 + $0x10] sm:$0xf]
      %v1130 = vld [vmem:[%s1124 + $0x14] sm:$0xf]
      %v1131 = vld [vmem:[%s1124 + $0x18] sm:$0xf]
      %v1132 = vld [vmem:[%s1124 + $0x1c] sm:$0xf]
      %v1133 = vld [vmem:[%s1124 + $0x20] sm:$0xf]
      %v1134 = vld [vmem:[%s1124 + $0x24] sm:$0xf]
      %v1135 = vld [vmem:[%s1124 + $0x28] sm:$0xf]
      %v1136 = vld [vmem:[%s1124 + $0x2c] sm:$0xf]
      %v1137 = vld [vmem:[%s1124 + $0x30] sm:$0xf]
      %v1138 = vld [vmem:[%s1124 + $0x34] sm:$0xf]
      %v1139 = vld [vmem:[%s1124 + $0x38] sm:$0xf]
      %v1140 = vld [vmem:[%s1124 + $0x3c] sm:$0xf]
      %v1141 = vunpack.c.l.b16 %v1123
      %v1142 = vpack.c.b16 %v783, %v782
      %v1143 = vpack.c.b16 %v785, %v784
      %v1144 = vpack.c.b16 %v787, %v786
      %v1145 = vpack.c.b16 %v1141, %v788
      %v1166 = vunpack.c.l.b16 %v1125
      %v1167 = vunpack.c.l.b16 %v1126
      %v1168 = vunpack.c.l.b16 %v1127
      %v1169 = vunpack.c.l.b16 %v1128
      %v1170 = vunpack.c.l.b16 %v1129
      %v1171 = vunpack.c.l.b16 %v1130
      %v1172 = vunpack.c.l.b16 %v1131
      %v1173 = vunpack.c.l.b16 %v1132
      %v1174 = vunpack.c.l.b16 %v1133
      %v1175 = vunpack.c.l.b16 %v1134
      %v1176 = vunpack.c.l.b16 %v1135
      %v1177 = vunpack.c.l.b16 %v1136
      %v1178 = vunpack.c.l.b16 %v1137
      %v1179 = vunpack.c.l.b16 %v1138
      %v1180 = vunpack.c.l.b16 %v1139
      %v1181 = vunpack.c.l.b16 %v1140
      %v1182 = vpack.c.b16 %v1167, %v1166
      %v1183 = vpack.c.b16 %v1169, %v1168
      %v1184 = vpack.c.b16 %v1171, %v1170
      %v1185 = vpack.c.b16 %v1173, %v1172
      %v1186 = vpack.c.b16 %v1175, %v1174
      %v1187 = vpack.c.b16 %v1177, %v1176
      %v1188 = vpack.c.b16 %v1179, %v1178
      %v1189 = vpack.c.b16 %v1181, %v1180
      %1198 = vmatpush.bf16.msra.mxu0 %v1189
      %1199 = vmatpush.bf16.msra.mxu0 %v1188
      %1200 = vmatpush.bf16.msra.mxu0 %v1187
      %1201 = vmatpush.bf16.msra.mxu0 %v1186
      %1202 = vmatpush.bf16.msra.mxu0 %v1185
      %1203 = vmatpush.bf16.msra.mxu0 %v1184
      %1204 = vmatpush.bf16.msra.mxu0 %v1183
      %1205 = vmatpush.bf16.msra.mxu0 %v1182
      %1206 = vmatmul.bf16.gmra.mxu0 %v1142
      %v1207 = vpop.f32.mrf.mxu0
      %v1208 = vadd.f32 0.0, %v1207
      %v1209 = vpop.f32.mrf.mxu0
      %v1210 = vadd.f32 0.0, %v1209
      %1211 = vmatmul.bf16.gmra.mxu0 %v1143
      %v1212 = vpop.f32.mrf.mxu0
      %v1213 = vadd.f32 0.0, %v1212
      %v1214 = vpop.f32.mrf.mxu0
      %v1215 = vadd.f32 0.0, %v1214
      %1216 = vmatmul.bf16.gmra.mxu0 %v1144
      %v1217 = vpop.f32.mrf.mxu0
      %v1218 = vadd.f32 0.0, %v1217
      %v1219 = vpop.f32.mrf.mxu0
      %v1220 = vadd.f32 0.0, %v1219
      %1221 = vmatmul.bf16.gmra.mxu0 %v1145
      %v1222 = vpop.f32.mrf.mxu0
      %v1223 = vadd.f32 0.0, %v1222
      %v1224 = vpop.f32.mrf.mxu0
      %v1225 = vadd.f32 0.0, %v1224
      %1226 = vdwg.mxu0
      %v1227 = vadd.f32 %v1111, %v1208
      %v1228 = vadd.f32 %v1112, %v1210
      %v1229 = vadd.f32 %v1113, %v1213
      %v1230 = vadd.f32 %v1114, %v1215
      %v1231 = vadd.f32 %v1115, %v1218
      %v1232 = vadd.f32 %v1116, %v1220
      %v1233 = vadd.f32 %v1117, %v1223
      %v1234 = vadd.f32 %v1118, %v1225
      %s1235 = scalar_lea.vmem %s3, 384
      %v1236 = vld [vmem:[%s1235] sm:$0xf]
      %v1237 = vld [vmem:[%s1235 + $0x4] sm:$0xf]
      %v1238 = vld [vmem:[%s1235 + $0x8] sm:$0xf]
      %v1239 = vld [vmem:[%s1235 + $0xc] sm:$0xf]
      %v1240 = vld [vmem:[%s1235 + $0x10] sm:$0xf]
      %v1241 = vld [vmem:[%s1235 + $0x14] sm:$0xf]
      %v1242 = vld [vmem:[%s1235 + $0x18] sm:$0xf]
      %v1243 = vld [vmem:[%s1235 + $0x1c] sm:$0xf]
      %v1244 = vld [vmem:[%s1235 + $0x20] sm:$0xf]
      %v1245 = vld [vmem:[%s1235 + $0x24] sm:$0xf]
      %v1246 = vld [vmem:[%s1235 + $0x28] sm:$0xf]
      %v1247 = vld [vmem:[%s1235 + $0x2c] sm:$0xf]
      %v1248 = vld [vmem:[%s1235 + $0x30] sm:$0xf]
      %v1249 = vld [vmem:[%s1235 + $0x34] sm:$0xf]
      %v1250 = vld [vmem:[%s1235 + $0x38] sm:$0xf]
      %v1251 = vld [vmem:[%s1235 + $0x3c] sm:$0xf]
      %v1253 = vunpack.c.l.b16 %v377
      %v1254 = vpack.c.b16 %v1253, %v900
      %v1272 = vunpack.c.l.b16 %v1236
      %v1273 = vunpack.c.l.b16 %v1237
      %v1274 = vunpack.c.l.b16 %v1238
      %v1275 = vunpack.c.l.b16 %v1239
      %v1276 = vunpack.c.l.b16 %v1240
      %v1277 = vunpack.c.l.b16 %v1241
      %v1278 = vunpack.c.l.b16 %v1242
      %v1279 = vunpack.c.l.b16 %v1243
      %v1280 = vunpack.c.l.b16 %v1244
      %v1281 = vunpack.c.l.b16 %v1245
      %v1282 = vunpack.c.l.b16 %v1246
      %v1283 = vunpack.c.l.b16 %v1247
      %v1284 = vunpack.c.l.b16 %v1248
      %v1285 = vunpack.c.l.b16 %v1249
      %v1286 = vunpack.c.l.b16 %v1250
      %v1287 = vunpack.c.l.b16 %v1251
      %v1288 = vpack.c.b16 %v1273, %v1272
      %v1289 = vpack.c.b16 %v1275, %v1274
      %v1290 = vpack.c.b16 %v1277, %v1276
      %v1291 = vpack.c.b16 %v1279, %v1278
      %v1292 = vpack.c.b16 %v1281, %v1280
      %v1293 = vpack.c.b16 %v1283, %v1282
      %v1294 = vpack.c.b16 %v1285, %v1284
      %v1295 = vpack.c.b16 %v1287, %v1286
      %1304 = vmatpush.bf16.msra.mxu0 %v1295
      %1305 = vmatpush.bf16.msra.mxu0 %v1294
      %1306 = vmatpush.bf16.msra.mxu0 %v1293
      %1307 = vmatpush.bf16.msra.mxu0 %v1292
      %1308 = vmatpush.bf16.msra.mxu0 %v1291
      %1309 = vmatpush.bf16.msra.mxu0 %v1290
      %1310 = vmatpush.bf16.msra.mxu0 %v1289
      %1311 = vmatpush.bf16.msra.mxu0 %v1288
      %1312 = vmatmul.bf16.gmra.mxu0 %v637
      %v1313 = vpop.f32.mrf.mxu0
      %v1314 = vadd.f32 0.0, %v1313
      %v1315 = vpop.f32.mrf.mxu0
      %v1316 = vadd.f32 0.0, %v1315
      %1317 = vmatmul.bf16.gmra.mxu0 %v638
      %v1318 = vpop.f32.mrf.mxu0
      %v1319 = vadd.f32 0.0, %v1318
      %v1320 = vpop.f32.mrf.mxu0
      %v1321 = vadd.f32 0.0, %v1320
      %1322 = vmatmul.bf16.gmra.mxu0 %v639
      %v1323 = vpop.f32.mrf.mxu0
      %v1324 = vadd.f32 0.0, %v1323
      %v1325 = vpop.f32.mrf.mxu0
      %v1326 = vadd.f32 0.0, %v1325
      %1327 = vmatmul.bf16.gmra.mxu0 %v1254
      %v1328 = vpop.f32.mrf.mxu0
      %v1329 = vadd.f32 0.0, %v1328
      %v1330 = vpop.f32.mrf.mxu0
      %v1331 = vadd.f32 0.0, %v1330
      %1332 = vdwg.mxu0
      %v1333 = vadd.f32 %v1227, %v1314
      %v1334 = vadd.f32 %v1228, %v1316
      %v1335 = vadd.f32 %v1229, %v1319
      %v1336 = vadd.f32 %v1230, %v1321
      %v1337 = vadd.f32 %v1231, %v1324
      %v1338 = vadd.f32 %v1232, %v1326
      %v1339 = vadd.f32 %v1233, %v1329
      %v1340 = vadd.f32 %v1234, %v1331
      %v1342 = vshrl.u32 %v377, 16
      %v1344 = vrot.slane %v1342, 4
      %v1345 = vshll.u32 %v377, 16
      %v1347 = vrot.slane %v1345, 5
      %v1348 = vor.u32 %v1344, %v1347
      %v1349 = vrot.slane %v1348, 4
      %v1351 = vshll.u32 %v378, 16
      %v1353 = vrot.slane %v1351, 5
      %v1354 = vsel %vm397, %v1349, %v1353
      %s1355 = scalar_lea.vmem %s3, 448
      %v1356 = vld [vmem:[%s1355] sm:$0xf]
      %v1357 = vld [vmem:[%s1355 + $0x4] sm:$0xf]
      %v1358 = vld [vmem:[%s1355 + $0x8] sm:$0xf]
      %v1359 = vld [vmem:[%s1355 + $0xc] sm:$0xf]
      %v1360 = vld [vmem:[%s1355 + $0x10] sm:$0xf]
      %v1361 = vld [vmem:[%s1355 + $0x14] sm:$0xf]
      %v1362 = vld [vmem:[%s1355 + $0x18] sm:$0xf]
      %v1363 = vld [vmem:[%s1355 + $0x1c] sm:$0xf]
      %v1364 = vld [vmem:[%s1355 + $0x20] sm:$0xf]
      %v1365 = vld [vmem:[%s1355 + $0x24] sm:$0xf]
      %v1366 = vld [vmem:[%s1355 + $0x28] sm:$0xf]
      %v1367 = vld [vmem:[%s1355 + $0x2c] sm:$0xf]
      %v1368 = vld [vmem:[%s1355 + $0x30] sm:$0xf]
      %v1369 = vld [vmem:[%s1355 + $0x34] sm:$0xf]
      %v1370 = vld [vmem:[%s1355 + $0x38] sm:$0xf]
      %v1371 = vld [vmem:[%s1355 + $0x3c] sm:$0xf]
      %v1372 = vunpack.c.l.b16 %v1354
      %v1373 = vpack.c.b16 %v1372, %v1025
      %v1391 = vunpack.c.l.b16 %v1356
      %v1392 = vunpack.c.l.b16 %v1357
      %v1393 = vunpack.c.l.b16 %v1358
      %v1394 = vunpack.c.l.b16 %v1359
      %v1395 = vunpack.c.l.b16 %v1360
      %v1396 = vunpack.c.l.b16 %v1361
      %v1397 = vunpack.c.l.b16 %v1362
      %v1398 = vunpack.c.l.b16 %v1363
      %v1399 = vunpack.c.l.b16 %v1364
      %v1400 = vunpack.c.l.b16 %v1365
      %v1401 = vunpack.c.l.b16 %v1366
      %v1402 = vunpack.c.l.b16 %v1367
      %v1403 = vunpack.c.l.b16 %v1368
      %v1404 = vunpack.c.l.b16 %v1369
      %v1405 = vunpack.c.l.b16 %v1370
      %v1406 = vunpack.c.l.b16 %v1371
      %v1407 = vpack.c.b16 %v1392, %v1391
      %v1408 = vpack.c.b16 %v1394, %v1393
      %v1409 = vpack.c.b16 %v1396, %v1395
      %v1410 = vpack.c.b16 %v1398, %v1397
      %v1411 = vpack.c.b16 %v1400, %v1399
      %v1412 = vpack.c.b16 %v1402, %v1401
      %v1413 = vpack.c.b16 %v1404, %v1403
      %v1414 = vpack.c.b16 %v1406, %v1405
      %1423 = vmatpush.bf16.msra.mxu0 %v1414
      %1424 = vmatpush.bf16.msra.mxu0 %v1413
      %1425 = vmatpush.bf16.msra.mxu0 %v1412
      %1426 = vmatpush.bf16.msra.mxu0 %v1411
      %1427 = vmatpush.bf16.msra.mxu0 %v1410
      %1428 = vmatpush.bf16.msra.mxu0 %v1409
      %1429 = vmatpush.bf16.msra.mxu0 %v1408
      %1430 = vmatpush.bf16.msra.mxu0 %v1407
      %1431 = vmatmul.bf16.gmra.mxu0 %v536
      %v1432 = vpop.f32.mrf.mxu0
      %v1433 = vadd.f32 0.0, %v1432
      %v1434 = vpop.f32.mrf.mxu0
      %v1435 = vadd.f32 0.0, %v1434
      %1436 = vmatmul.bf16.gmra.mxu0 %v537
      %v1437 = vpop.f32.mrf.mxu0
      %v1438 = vadd.f32 0.0, %v1437
      %v1439 = vpop.f32.mrf.mxu0
      %v1440 = vadd.f32 0.0, %v1439
      %1441 = vmatmul.bf16.gmra.mxu0 %v538
      %v1442 = vpop.f32.mrf.mxu0
      %v1443 = vadd.f32 0.0, %v1442
      %v1444 = vpop.f32.mrf.mxu0
      %v1445 = vadd.f32 0.0, %v1444
      %1446 = vmatmul.bf16.gmra.mxu0 %v1373
      %v1447 = vpop.f32.mrf.mxu0
      %v1448 = vadd.f32 0.0, %v1447
      %v1449 = vpop.f32.mrf.mxu0
      %v1450 = vadd.f32 0.0, %v1449
      %1451 = vdwg.mxu0
      %v1452 = vadd.f32 %v1333, %v1433
      %v1453 = vadd.f32 %v1334, %v1435
      %v1454 = vadd.f32 %v1335, %v1438
      %v1455 = vadd.f32 %v1336, %v1440
      %v1456 = vadd.f32 %v1337, %v1443
      %v1457 = vadd.f32 %v1338, %v1445
      %v1458 = vadd.f32 %v1339, %v1448
      %v1459 = vadd.f32 %v1340, %v1450
      %v1461 = vrot.slane %v377, 5
      %v1462 = vrot.slane %v1461, 4
      %v1463 = vrot.slane %v378, 5
      %v1464 = vsel %vm731, %v1462, %v1463
      %s1465 = scalar_lea.vmem %s3, 512
      %v1466 = vld [vmem:[%s1465] sm:$0xf]
      %v1467 = vld [vmem:[%s1465 + $0x4] sm:$0xf]
      %v1468 = vld [vmem:[%s1465 + $0x8] sm:$0xf]
      %v1469 = vld [vmem:[%s1465 + $0xc] sm:$0xf]
      %v1470 = vld [vmem:[%s1465 + $0x10] sm:$0xf]
      %v1471 = vld [vmem:[%s1465 + $0x14] sm:$0xf]
      %v1472 = vld [vmem:[%s1465 + $0x18] sm:$0xf]
      %v1473 = vld [vmem:[%s1465 + $0x1c] sm:$0xf]
      %v1474 = vld [vmem:[%s1465 + $0x20] sm:$0xf]
      %v1475 = vld [vmem:[%s1465 + $0x24] sm:$0xf]
      %v1476 = vld [vmem:[%s1465 + $0x28] sm:$0xf]
      %v1477 = vld [vmem:[%s1465 + $0x2c] sm:$0xf]
      %v1478 = vld [vmem:[%s1465 + $0x30] sm:$0xf]
      %v1479 = vld [vmem:[%s1465 + $0x34] sm:$0xf]
      %v1480 = vld [vmem:[%s1465 + $0x38] sm:$0xf]
      %v1481 = vld [vmem:[%s1465 + $0x3c] sm:$0xf]
      %v1482 = vunpack.c.l.b16 %v1464
      %v1483 = vpack.c.b16 %v1482, %v1141
      %v1501 = vunpack.c.l.b16 %v1466
      %v1502 = vunpack.c.l.b16 %v1467
      %v1503 = vunpack.c.l.b16 %v1468
      %v1504 = vunpack.c.l.b16 %v1469
      %v1505 = vunpack.c.l.b16 %v1470
      %v1506 = vunpack.c.l.b16 %v1471
      %v1507 = vunpack.c.l.b16 %v1472
      %v1508 = vunpack.c.l.b16 %v1473
      %v1509 = vunpack.c.l.b16 %v1474
      %v1510 = vunpack.c.l.b16 %v1475
      %v1511 = vunpack.c.l.b16 %v1476
      %v1512 = vunpack.c.l.b16 %v1477
      %v1513 = vunpack.c.l.b16 %v1478
      %v1514 = vunpack.c.l.b16 %v1479
      %v1515 = vunpack.c.l.b16 %v1480
      %v1516 = vunpack.c.l.b16 %v1481
      %v1517 = vpack.c.b16 %v1502, %v1501
      %v1518 = vpack.c.b16 %v1504, %v1503
      %v1519 = vpack.c.b16 %v1506, %v1505
      %v1520 = vpack.c.b16 %v1508, %v1507
      %v1521 = vpack.c.b16 %v1510, %v1509
      %v1522 = vpack.c.b16 %v1512, %v1511
      %v1523 = vpack.c.b16 %v1514, %v1513
      %v1524 = vpack.c.b16 %v1516, %v1515
      %1533 = vmatpush.bf16.msra.mxu0 %v1524
      %1534 = vmatpush.bf16.msra.mxu0 %v1523
      %1535 = vmatpush.bf16.msra.mxu0 %v1522
      %1536 = vmatpush.bf16.msra.mxu0 %v1521
      %1537 = vmatpush.bf16.msra.mxu0 %v1520
      %1538 = vmatpush.bf16.msra.mxu0 %v1519
      %1539 = vmatpush.bf16.msra.mxu0 %v1518
      %1540 = vmatpush.bf16.msra.mxu0 %v1517
      %1541 = vmatmul.bf16.gmra.mxu0 %v790
      %v1542 = vpop.f32.mrf.mxu0
      %v1543 = vadd.f32 0.0, %v1542
      %v1544 = vpop.f32.mrf.mxu0
      %v1545 = vadd.f32 0.0, %v1544
      %1546 = vmatmul.bf16.gmra.mxu0 %v791
      %v1547 = vpop.f32.mrf.mxu0
      %v1548 = vadd.f32 0.0, %v1547
      %v1549 = vpop.f32.mrf.mxu0
      %v1550 = vadd.f32 0.0, %v1549
      %1551 = vmatmul.bf16.gmra.mxu0 %v792
      %v1552 = vpop.f32.mrf.mxu0
      %v1553 = vadd.f32 0.0, %v1552
      %v1554 = vpop.f32.mrf.mxu0
      %v1555 = vadd.f32 0.0, %v1554
      %1556 = vmatmul.bf16.gmra.mxu0 %v1483
      %v1557 = vpop.f32.mrf.mxu0
      %v1558 = vadd.f32 0.0, %v1557
      %v1559 = vpop.f32.mrf.mxu0
      %v1560 = vadd.f32 0.0, %v1559
      %1561 = vdwg.mxu0
      %v1562 = vadd.f32 %v1452, %v1543
      %v1563 = vadd.f32 %v1453, %v1545
      %v1564 = vadd.f32 %v1454, %v1548
      %v1565 = vadd.f32 %v1455, %v1550
      %v1566 = vadd.f32 %v1456, %v1553
      %v1567 = vadd.f32 %v1457, %v1555
      %v1568 = vadd.f32 %v1458, %v1558
      %v1569 = vadd.f32 %v1459, %v1560
      %1570 = vst [vmem:[%s231] sm:$0xff] %v1562
      %1571 = vst [vmem:[%s231 + $0x8] sm:$0xff] %v1563
      %1572 = vst [vmem:[%s231 + $0x10] sm:$0xff] %v1564
      %1573 = vst [vmem:[%s231 + $0x18] sm:$0xff] %v1565
      %1574 = vst [vmem:[%s231 + $0x20] sm:$0xff] %v1566
      %1575 = vst [vmem:[%s231 + $0x28] sm:$0xff] %v1567
      %1576 = vst [vmem:[%s231 + $0x30] sm:$0xff] %v1568
      %1577 = vst [vmem:[%s231 + $0x38] sm:$0xff] %v1569
      %v1578 = vadd.f32 %v1562, %v1563
      %v1579 = vadd.f32 %v1578, %v1564
      %v1580 = vadd.f32 %v1579, %v1565
      %v1581 = vadd.f32 %v1580, %v1566
      %v1582 = vadd.f32 %v1581, %v1567
      %v1583 = vadd.f32 %v1582, %v1568
      %v1584 = vadd.f32 %v1583, %v1569
      %v1585 = vrot.slane %v1584, 4
      %v1586 = vadd.f32 %v1584, %v1585
      %v1587 = vrot.slane %v1586, 2
      %v1588 = vadd.f32 %v1586, %v1587
      %v1589 = vrot.slane %v1588, 1
      %v1590 = vadd.f32 %v1588, %v1589
      %v1591 = vmul.f32 %v1562, %v1562
      %v1592 = vmul.f32 %v1563, %v1563
      %v1593 = vmul.f32 %v1564, %v1564
      %v1594 = vmul.f32 %v1565, %v1565
      %v1595 = vmul.f32 %v1566, %v1566
      %v1596 = vmul.f32 %v1567, %v1567
      %v1597 = vmul.f32 %v1568, %v1568
      %v1598 = vmul.f32 %v1569, %v1569
      %v1599 = vadd.f32 %v1591, %v1592
      %v1600 = vadd.f32 %v1599, %v1593
      %v1601 = vadd.f32 %v1600, %v1594
      %v1602 = vadd.f32 %v1601, %v1595
      %v1603 = vadd.f32 %v1602, %v1596
      %v1604 = vadd.f32 %v1603, %v1597
      %v1605 = vadd.f32 %v1604, %v1598
      %v1606 = vrot.slane %v1605, 4
      %v1607 = vadd.f32 %v1605, %v1606
      %v1608 = vrot.slane %v1607, 2
      %v1609 = vadd.f32 %v1607, %v1608
      %v1610 = vrot.slane %v1609, 1
      %v1611 = vadd.f32 %v1609, %v1610
      %vm1612 = vcmask 1040384
      %v1613 = vsel %vm1612, %v1590, %v1611
      %vm1614 = vcmask 1041408
      %v1615 = vsel %vm1614, %v1613, 0.0
      %1616 = vst [vmem:[%s235] sm:$0xff] %v1615
      %p1617 = scmp.lt.s32.totalorder %s17, 1
      %s1618 = scalar_select %p1617, %s17, 1
      %s1619 = smul.addr %s1618, 8
      %s1620 = smul.addr %s1619, 8
      %s1621 = scalar_lea.vmem %s4, %s1620
      %p1622 = scmp.lt.s32.totalorder %s17, 1
      %s1623 = scalar_select %p1622, %s17, 1
      %s1624 = smul.addr %s1623, 8
      %s1625 = scalar_lea.vmem %s5, %s1624
      // Predicated region
      $region37: #{frru_forward.5} parent=35 // pred_check
        %p1626 = pneg %p124
      $region38: #{frru_forward.5} parent=35 // pred_check_branch
        %1628 = sbr.rel (%p1626) target = $region40
      $region39: #{frru_forward.5} parent=35 // pred_region
        _
      $region40: #{frru_forward.5} parent=35 // pred_fallthru
        _
      // Predicated region
      $region41: #{frru_forward.5} parent=35 // pred_check
        %p1629 = pneg %p150
      $region42: #{frru_forward.5} parent=35 // pred_check_branch
        %1631 = sbr.rel (%p1629) target = $region44
      $region43: #{frru_forward.5} parent=35 // pred_region
        _
      $region44: #{frru_forward.5} parent=35 // pred_fallthru
        _
    $region36: #{frru_forward.5} parent=5 // pred_fallthru
      _
    %p1632 = scmp.le.s32.totalorder 2, %s12
    // Predicated region
    $region45: #{frru_forward.5} parent=5 // pred_check
      %p1633 = pneg %p1632
    $region46: #{frru_forward.5} parent=5 // pred_check_branch
      %1635 = sbr.rel (%p1633) target = $region48
    $region47: #{frru_forward.5} parent=5 // pred_region
      %s1636 = ssub.s32 %s12, 2
      // Predicated region
      $region49: #{frru_forward.5} parent=47 // pred_check
        %p1637 = pneg %p130
      $region50: #{frru_forward.5} parent=47 // pred_check_branch
        %1639 = sbr.rel (%p1637) target = $region52
      $region51: #{frru_forward.5} parent=47 // pred_region
        %p1640 = scmp.lt.s32.totalorder %s18, 1
        %s1641 = scalar_select %p1640, %s18, 1
        %s1642 = smul.addr %s1641, 8
        %s1643 = smul.addr %s1642, 8
        %s1644 = scalar_lea.vmem %s4, %s1643
      $region52: #{frru_forward.5} parent=47 // pred_fallthru
        _
      // Predicated region
      $region53: #{frru_forward.5} parent=47 // pred_check
        %p1645 = pneg %p156
      $region54: #{frru_forward.5} parent=47 // pred_check_branch
        %1647 = sbr.rel (%p1645) target = $region56
      $region55: #{frru_forward.5} parent=47 // pred_region
        %p1648 = scmp.lt.s32.totalorder %s18, 1
        %s1649 = scalar_select %p1648, %s18, 1
        %s1650 = smul.addr %s1649, 8
        %s1651 = scalar_lea.vmem %s5, %s1650
      $region56: #{frru_forward.5} parent=47 // pred_fallthru
        _
    $region48: #{frru_forward.5} parent=5 // pred_fallthru
      _
  $region6: #{frru_forward.5} parent=0 // loop_footer
    %s16 = sadd.s32 1, %s12
  $region7: #{frru_forward.5} parent=0 // loop_footer_branch
    %11 = sbr.rel target = $region3
  $region8: #{frru_forward.5} parent=0 // loop_exit
    _

// kernel: frru_forward.7
$region0: #{frru_forward.7}
  #allocation0 [shape = 'u32[]', space=smem, size = 0x4, offset = 0x4, fixed_abs, tag = 'smem constant byte address 0x4 - core index']
  #allocation1 [shape = 'u32[72,128]{1,0:T(1,128)}', space=vmem, size = 0x9000, scoped, tag = 'internal scratch']
  %s0 = inlined_call_operand.vmem [shape: f32[32,512], index: 0, kind: input, shape index: {}]
  %s1 = inlined_call_operand.vmem [shape: f32[32,512], index: 1, kind: input, shape index: {}]
  %s2 = inlined_call_operand.vmem [shape: f32[32,512], index: 2, kind: output, shape index: {}]
  %s3 = sld [smem:[#allocation0]]
  $region18: #{frru_forward.7} parent=0
    _
  %s5 = ssub.s32 1, %s3
  %s6 = scalar_select 0, %s5, %s3
  // Predicated region
  $region2: #{frru_forward.7} parent=0 // pred_check
    _
  $region3: #{frru_forward.7} parent=0 // pred_check_branch
    %8 = sbr.rel (0) target = $region5
  $region4: #{frru_forward.7} parent=0 // pred_region
    _
  $region5: #{frru_forward.7} parent=0 // pred_fallthru
    _
  // Predicated region
  $region6: #{frru_forward.7} parent=0 // pred_check
    _
  $region7: #{frru_forward.7} parent=0 // pred_check_branch
    %10 = sbr.rel (0) target = $region9
  $region8: #{frru_forward.7} parent=0 // pred_region
    _
  $region9: #{frru_forward.7} parent=0 // pred_fallthru
    _
  %v11 = vld [vmem:[%s0] sm:$0xff]
  %v12 = vld [vmem:[%s0 + $0x8] sm:$0xff]
  %v13 = vld [vmem:[%s0 + $0x10] sm:$0xff]
  %v14 = vld [vmem:[%s0 + $0x18] sm:$0xff]
  %v15 = vld [vmem:[%s0 + $0x20] sm:$0xff]
  %v16 = vld [vmem:[%s0 + $0x28] sm:$0xff]
  %v17 = vld [vmem:[%s0 + $0x30] sm:$0xff]
  %v18 = vld [vmem:[%s0 + $0x38] sm:$0xff]
  %v19 = vld [vmem:[%s0 + $0x40] sm:$0xff]
  %v20 = vld [vmem:[%s0 + $0x48] sm:$0xff]
  %v21 = vld [vmem:[%s0 + $0x50] sm:$0xff]
  %v22 = vld [vmem:[%s0 + $0x58] sm:$0xff]
  %v23 = vld [vmem:[%s0 + $0x60] sm:$0xff]
  %v24 = vld [vmem:[%s0 + $0x68] sm:$0xff]
  %v25 = vld [vmem:[%s0 + $0x70] sm:$0xff]
  %v26 = vld [vmem:[%s0 + $0x78] sm:$0xff]
  %v27 = vld [vmem:[%s1] sm:$0xff]
  %v28 = vld [vmem:[%s1 + $0x8] sm:$0xff]
  %v29 = vld [vmem:[%s1 + $0x10] sm:$0xff]
  %v30 = vld [vmem:[%s1 + $0x18] sm:$0xff]
  %v31 = vld [vmem:[%s1 + $0x20] sm:$0xff]
  %v32 = vld [vmem:[%s1 + $0x28] sm:$0xff]
  %v33 = vld [vmem:[%s1 + $0x30] sm:$0xff]
  %v34 = vld [vmem:[%s1 + $0x38] sm:$0xff]
  %v35 = vld [vmem:[%s1 + $0x40] sm:$0xff]
  %v36 = vld [vmem:[%s1 + $0x48] sm:$0xff]
  %v37 = vld [vmem:[%s1 + $0x50] sm:$0xff]
  %v38 = vld [vmem:[%s1 + $0x58] sm:$0xff]
  %v39 = vld [vmem:[%s1 + $0x60] sm:$0xff]
  %v40 = vld [vmem:[%s1 + $0x68] sm:$0xff]
  %v41 = vld [vmem:[%s1 + $0x70] sm:$0xff]
  %v42 = vld [vmem:[%s1 + $0x78] sm:$0xff]
  %v43 = vadd.f32 %v11, %v27
  %v44 = vadd.f32 %v12, %v28
  %v45 = vadd.f32 %v13, %v29
  %v46 = vadd.f32 %v14, %v30
  %v47 = vadd.f32 %v15, %v31
  %v48 = vadd.f32 %v16, %v32
  %v49 = vadd.f32 %v17, %v33
  %v50 = vadd.f32 %v18, %v34
  %v51 = vadd.f32 %v19, %v35
  %v52 = vadd.f32 %v20, %v36
  %v53 = vadd.f32 %v21, %v37
  %v54 = vadd.f32 %v22, %v38
  %v55 = vadd.f32 %v23, %v39
  %v56 = vadd.f32 %v24, %v40
  %v57 = vadd.f32 %v25, %v41
  %v58 = vadd.f32 %v26, %v42
  %59 = vst [vmem:[%s2] sm:$0xff] %v43
  %60 = vst [vmem:[%s2 + $0x8] sm:$0xff] %v44
  %61 = vst [vmem:[%s2 + $0x10] sm:$0xff] %v45
  %62 = vst [vmem:[%s2 + $0x18] sm:$0xff] %v46
  %63 = vst [vmem:[%s2 + $0x20] sm:$0xff] %v47
  %64 = vst [vmem:[%s2 + $0x28] sm:$0xff] %v48
  %65 = vst [vmem:[%s2 + $0x30] sm:$0xff] %v49
  %66 = vst [vmem:[%s2 + $0x38] sm:$0xff] %v50
  %67 = vst [vmem:[%s2 + $0x40] sm:$0xff] %v51
  %68 = vst [vmem:[%s2 + $0x48] sm:$0xff] %v52
  %69 = vst [vmem:[%s2 + $0x50] sm:$0xff] %v53
  %70 = vst [vmem:[%s2 + $0x58] sm:$0xff] %v54
  %71 = vst [vmem:[%s2 + $0x60] sm:$0xff] %v55
  %72 = vst [vmem:[%s2 + $0x68] sm:$0xff] %v56
  %73 = vst [vmem:[%s2 + $0x70] sm:$0xff] %v57
  %74 = vst [vmem:[%s2 + $0x78] sm:$0xff] %v58
  // Predicated region
  $region10: #{frru_forward.7} parent=0 // pred_check
    _
  $region11: #{frru_forward.7} parent=0 // pred_check_branch
    %76 = sbr.rel (0) target = $region13
  $region12: #{frru_forward.7} parent=0 // pred_region
    _
  $region13: #{frru_forward.7} parent=0 // pred_fallthru
    _
  // Predicated region
  $region14: #{frru_forward.7} parent=0 // pred_check
    _
  $region15: #{frru_forward.7} parent=0 // pred_check_branch
    %78 = sbr.rel (0) target = $region17
  $region16: #{frru_forward.7} parent=0 // pred_region
    _
  $region17: #{frru_forward.7} parent=0 // pred_fallthru
    _

</llo_original>
